<compile_context>
chip_gen: v6e
topology: v6e:2x2x1
jax: 0.10.0
libtpu: 0.0.40
codegen_flags: <defaults>
</compile_context>

<pallas_src>
import jax
import jax.numpy as jnp
from jax.experimental import pallas as pl
from jax.experimental.pallas import tpu as pltpu


def _conv1x1_hs_pad_kernel(x_ref, er_ref, ect_ref, w_ref, b_ref, o_ref):
    """One batch image per grid step.

    x_ref  : (Cin, H, W)       f32 VMEM  -- unpadded input image
    er_ref : (H+2, H)          f32 VMEM  -- 0/1 row-shift matrix, er[i, j] = (i == j+1)
    ect_ref: (W, W+2)          f32 VMEM  -- 0/1 col-shift matrix, ect[j, i] = (i == j+1)
    w_ref  : (Cout, Cin)       f32 SMEM  -- 1x1 conv weights (scalars)
    b_ref  : (Cout,)           f32 SMEM  -- bias (scalars)
    o_ref  : (Cout, H+2, W+2)  f32 VMEM  -- full padded output (border included)
    """
    cin = x_ref.shape[0]
    cout = o_ref.shape[0]
    er = er_ref[...]
    ect = ect_ref[...]

    # Zero-pad each input channel into the (H+2, W+2) canvas with two small,
    # exact 0/1 shift matmuls (E_r @ x @ E_c^T).  This keeps the whole padded
    # output producible in one kernel pass without in-kernel pad/concatenate
    # or unaligned slice stores.
    xp = []
    for c in range(cin):  # static, Cin == 3
        t = jnp.dot(er, x_ref[c],
                    precision=jax.lax.Precision.HIGHEST,
                    preferred_element_type=jnp.float32)
        xp.append(jnp.dot(t, ect,
                          precision=jax.lax.Precision.HIGHEST,
                          preferred_element_type=jnp.float32))

    # VPU broadcast-FMA channel mix + fused activation:
    #   ((y+3).clamp(min=0)-3).clamp(max=6)/6  ==  clip(y, -3, 6) * (1/6)
    # Border pixels see only zero-padded input -> y = bias there, exactly
    # matching Conv2d(padding=1) semantics for a 1x1 kernel.
    for o in range(cout):  # static, Cout == 8
        y = b_ref[o] + w_ref[o, 0] * xp[0]
        for c in range(1, cin):
            y = y + w_ref[o, c] * xp[c]
        o_ref[o] = (jnp.clip(y, -3.0, 6.0) * (1.0 / 6.0)).astype(o_ref.dtype)


def model_forward(x_nchw, weight, bias):
    """x_nchw: (N, 3, H, W). weight: (8, 3) or PyTorch (8, 3, 1, 1). bias: (8,)."""
    N, Cin, H, W = x_nchw.shape
    weight = weight.reshape(weight.shape[0], -1)   # accept (Cout, Cin, 1, 1) too
    Cout = weight.shape[0]
    Hp, Wp = H + 2, W + 2

    x_nchw = x_nchw.astype(jnp.float32)
    weight = weight.astype(jnp.float32)
    bias = bias.astype(jnp.float32)

    # Tiny 0/1 shift matrices used by the kernel to embed each (H, W) channel
    # at offset (1, 1) of the (H+2, W+2) canvas.
    er = (jnp.arange(Hp)[:, None] == (jnp.arange(H)[None, :] + 1)).astype(jnp.float32)
    ect = ((jnp.arange(W)[:, None] + 1) == jnp.arange(Wp)[None, :]).astype(jnp.float32)

    return pl.pallas_call(
        _conv1x1_hs_pad_kernel,
        out_shape=jax.ShapeDtypeStruct((N, Cout, Hp, Wp), jnp.float32),
        grid=(N,),
        in_specs=[
            pl.BlockSpec((None, Cin, H, W), lambda n: (n, 0, 0, 0)),
            pl.BlockSpec((Hp, H), lambda n: (0, 0)),
            pl.BlockSpec((W, Wp), lambda n: (0, 0)),
            pl.BlockSpec(memory_space=pltpu.MemorySpace.SMEM),   # weight scalars
            pl.BlockSpec(memory_space=pltpu.MemorySpace.SMEM),   # bias scalars
        ],
        out_specs=pl.BlockSpec((None, Cout, Hp, Wp), lambda n: (n, 0, 0, 0)),
        compiler_params=pltpu.CompilerParams(
            dimension_semantics=("parallel",)),
    )(x_nchw, er, ect, weight, bias)


def _reference(x_nchw, weight, bias):
    # Pure-JAX reference mirroring the PyTorch module exactly.
    x_nhwc = jnp.transpose(x_nchw, (0, 2, 3, 1))
    x_pad = jnp.pad(x_nhwc, ((0, 0), (1, 1), (1, 1), (0, 0)))
    v1 = jnp.einsum("nhwc,oc->nhwo", x_pad, weight) + bias
    v2 = v1 + 3.0
    v3 = jnp.maximum(v2, 0.0)
    v4 = v3 - 3.0
    v5 = jnp.minimum(v4, 6.0)
    v6 = v5 / 6.0
    return jnp.transpose(v6, (0, 3, 1, 2))


if __name__ == "__main__":
    key = jax.random.PRNGKey(0)
    kx, kw, kb = jax.random.split(key, 3)

    # Small shapes consistent with the module: N=2, Cin=3, H=W=16, Cout=8.
    x = jax.random.normal(kx, (2, 3, 16, 16), dtype=jnp.float32)
    weight = jax.random.normal(kw, (8, 3, 1, 1), dtype=jnp.float32) * 0.5  # PyTorch layout
    bias = jax.random.normal(kb, (8,), dtype=jnp.float32) * 0.1

    out = jax.block_until_ready(model_forward(x, weight, bias))

    ref = _reference(x, weight.reshape(8, 3), bias)
    assert out.shape == (2, 8, 18, 18), out.shape
    assert jnp.allclose(out, ref, atol=1e-4, rtol=1e-4), "mismatch vs reference"

    print("KERNEL_OK")
</pallas_src>

<mosaic_0001>
module attributes {stable_mosaic.version = 11 : i64} {
  func.func @_conv1x1_hs_pad_kernel(%arg0: i32, %arg1: memref<1x3x16x16xf32, #tpu.memory_space<vmem>>, %arg2: memref<18x16xf32, #tpu.memory_space<vmem>>, %arg3: memref<16x18xf32, #tpu.memory_space<vmem>>, %arg4: memref<8x3xf32, #tpu.memory_space<smem>>, %arg5: memref<8xf32, #tpu.memory_space<smem>>, %arg6: memref<1x8x18x18xf32, #tpu.memory_space<vmem>>) attributes {dimension_semantics = [#tpu.dimension_semantics<parallel>], iteration_bounds = array<i64: 2>, scalar_prefetch = 0 : i64, scratch_operands = 0 : i64, tpu.core_type = #tpu.core_type<tc>, window_params = [{transform_indices = @transform_0, window_bounds = array<i64: 1, 3, 16, 16>}, {pipeline_mode = #tpu.pipeline_mode<synchronous>, transform_indices = @transform_1, window_bounds = array<i64: 18, 16>}, {pipeline_mode = #tpu.pipeline_mode<synchronous>, transform_indices = @transform_2, window_bounds = array<i64: 16, 18>}, {transform_indices = @transform_3, window_bounds = array<i64: 8, 3>}, {transform_indices = @transform_4, window_bounds = array<i64: 8>}, {transform_indices = @transform_5, window_bounds = array<i64: 1, 8, 18, 18>}]} {
    %c0 = arith.constant 0 : index
    %c0_0 = arith.constant 0 : index
    %0 = vector.load %arg2[%c0, %c0_0] : memref<18x16xf32, #tpu.memory_space<vmem>>, vector<18x16xf32>
    %c0_1 = arith.constant 0 : index
    %c0_2 = arith.constant 0 : index
    %1 = vector.load %arg3[%c0_1, %c0_2] : memref<16x18xf32, #tpu.memory_space<vmem>>, vector<16x18xf32>
    %c0_3 = arith.constant 0 : index
    %c0_4 = arith.constant 0 : index
    %c0_5 = arith.constant 0 : index
    %c0_6 = arith.constant 0 : index
    %2 = vector.load %arg1[%c0_3, %c0_4, %c0_5, %c0_6] : memref<1x3x16x16xf32, #tpu.memory_space<vmem>>, vector<1x1x16x16xf32>
    %3 = vector.shape_cast %2 : vector<1x1x16x16xf32> to vector<16x16xf32>
    %cst = arith.constant dense<0.000000e+00> : vector<18x16xf32>
    %4 = tpu.matmul %0, %3, %cst {dimension_numbers = #tpu.dot_dimension_numbers<[1], [0], [0], [1], [0, 0, 1, 1], [], []>, precision = #tpu.contract_precision<fp32>} : vector<18x16xf32>, vector<16x16xf32>, vector<18x16xf32> -> vector<18x16xf32>
    %cst_7 = arith.constant dense<0.000000e+00> : vector<18x18xf32>
    %5 = tpu.matmul %4, %1, %cst_7 {dimension_numbers = #tpu.dot_dimension_numbers<[1], [0], [0], [1], [0, 0, 1, 1], [], []>, precision = #tpu.contract_precision<fp32>} : vector<18x16xf32>, vector<16x18xf32>, vector<18x18xf32> -> vector<18x18xf32>
    %c0_8 = arith.constant 0 : index
    %c1 = arith.constant 1 : index
    %c0_9 = arith.constant 0 : index
    %c0_10 = arith.constant 0 : index
    %6 = vector.load %arg1[%c0_8, %c1, %c0_9, %c0_10] : memref<1x3x16x16xf32, #tpu.memory_space<vmem>>, vector<1x1x16x16xf32>
    %7 = vector.shape_cast %6 : vector<1x1x16x16xf32> to vector<16x16xf32>
    %cst_11 = arith.constant dense<0.000000e+00> : vector<18x16xf32>
    %8 = tpu.matmul %0, %7, %cst_11 {dimension_numbers = #tpu.dot_dimension_numbers<[1], [0], [0], [1], [0, 0, 1, 1], [], []>, precision = #tpu.contract_precision<fp32>} : vector<18x16xf32>, vector<16x16xf32>, vector<18x16xf32> -> vector<18x16xf32>
    %cst_12 = arith.constant dense<0.000000e+00> : vector<18x18xf32>
    %9 = tpu.matmul %8, %1, %cst_12 {dimension_numbers = #tpu.dot_dimension_numbers<[1], [0], [0], [1], [0, 0, 1, 1], [], []>, precision = #tpu.contract_precision<fp32>} : vector<18x16xf32>, vector<16x18xf32>, vector<18x18xf32> -> vector<18x18xf32>
    %c0_13 = arith.constant 0 : index
    %c2 = arith.constant 2 : index
    %c0_14 = arith.constant 0 : index
    %c0_15 = arith.constant 0 : index
    %10 = vector.load %arg1[%c0_13, %c2, %c0_14, %c0_15] : memref<1x3x16x16xf32, #tpu.memory_space<vmem>>, vector<1x1x16x16xf32>
    %11 = vector.shape_cast %10 : vector<1x1x16x16xf32> to vector<16x16xf32>
    %cst_16 = arith.constant dense<0.000000e+00> : vector<18x16xf32>
    %12 = tpu.matmul %0, %11, %cst_16 {dimension_numbers = #tpu.dot_dimension_numbers<[1], [0], [0], [1], [0, 0, 1, 1], [], []>, precision = #tpu.contract_precision<fp32>} : vector<18x16xf32>, vector<16x16xf32>, vector<18x16xf32> -> vector<18x16xf32>
    %cst_17 = arith.constant dense<0.000000e+00> : vector<18x18xf32>
    %13 = tpu.matmul %12, %1, %cst_17 {dimension_numbers = #tpu.dot_dimension_numbers<[1], [0], [0], [1], [0, 0, 1, 1], [], []>, precision = #tpu.contract_precision<fp32>} : vector<18x16xf32>, vector<16x18xf32>, vector<18x18xf32> -> vector<18x18xf32>
    %c0_18 = arith.constant 0 : index
    %14 = memref.load %arg5[%c0_18] : memref<8xf32, #tpu.memory_space<smem>>
    %c0_19 = arith.constant 0 : index
    %c0_20 = arith.constant 0 : index
    %15 = memref.load %arg4[%c0_19, %c0_20] : memref<8x3xf32, #tpu.memory_space<smem>>
    %16 = vector.broadcast %15 : f32 to vector<18x18xf32>
    %17 = arith.mulf %16, %5 : vector<18x18xf32>
    %18 = vector.broadcast %14 : f32 to vector<18x18xf32>
    %19 = arith.addf %18, %17 : vector<18x18xf32>
    %c0_21 = arith.constant 0 : index
    %c1_22 = arith.constant 1 : index
    %20 = memref.load %arg4[%c0_21, %c1_22] : memref<8x3xf32, #tpu.memory_space<smem>>
    %21 = vector.broadcast %20 : f32 to vector<18x18xf32>
    %22 = arith.mulf %21, %9 : vector<18x18xf32>
    %23 = arith.addf %19, %22 : vector<18x18xf32>
    %c0_23 = arith.constant 0 : index
    %c2_24 = arith.constant 2 : index
    %24 = memref.load %arg4[%c0_23, %c2_24] : memref<8x3xf32, #tpu.memory_space<smem>>
    %25 = vector.broadcast %24 : f32 to vector<18x18xf32>
    %26 = arith.mulf %25, %13 : vector<18x18xf32>
    %27 = arith.addf %23, %26 : vector<18x18xf32>
    %cst_25 = arith.constant -3.000000e+00 : f32
    %cst_26 = arith.constant 6.000000e+00 : f32
    %28 = vector.broadcast %cst_25 : f32 to vector<18x18xf32>
    %29 = arith.maximumf %28, %27 : vector<18x18xf32>
    %30 = vector.broadcast %cst_26 : f32 to vector<18x18xf32>
    %31 = arith.minimumf %30, %29 : vector<18x18xf32>
    %cst_27 = arith.constant 0.166666672 : f32
    %32 = vector.broadcast %cst_27 : f32 to vector<18x18xf32>
    %33 = arith.mulf %31, %32 : vector<18x18xf32>
    %c0_28 = arith.constant 0 : index
    %c0_29 = arith.constant 0 : index
    %c0_30 = arith.constant 0 : index
    %c0_31 = arith.constant 0 : index
    %34 = vector.load %arg6[%c0_28, %c0_29, %c0_30, %c0_31] : memref<1x8x18x18xf32, #tpu.memory_space<vmem>>, vector<1x1x18x18xf32>
    %35 = vector.shape_cast %34 : vector<1x1x18x18xf32> to vector<18x18xf32>
    %36 = vector.shape_cast %33 : vector<18x18xf32> to vector<1x1x18x18xf32>
    tpu.vector_store %arg6[%c0_28, %c0_29, %c0_30, %c0_31], %36 {strides = array<i32>} : memref<1x8x18x18xf32, #tpu.memory_space<vmem>>, vector<1x1x18x18xf32>,
    %c1_32 = arith.constant 1 : index
    %37 = memref.load %arg5[%c1_32] : memref<8xf32, #tpu.memory_space<smem>>
    %c1_33 = arith.constant 1 : index
    %c0_34 = arith.constant 0 : index
    %38 = memref.load %arg4[%c1_33, %c0_34] : memref<8x3xf32, #tpu.memory_space<smem>>
    %39 = vector.broadcast %38 : f32 to vector<18x18xf32>
    %40 = arith.mulf %39, %5 : vector<18x18xf32>
    %41 = vector.broadcast %37 : f32 to vector<18x18xf32>
    %42 = arith.addf %41, %40 : vector<18x18xf32>
    %c1_35 = arith.constant 1 : index
    %c1_36 = arith.constant 1 : index
    %43 = memref.load %arg4[%c1_35, %c1_36] : memref<8x3xf32, #tpu.memory_space<smem>>
    %44 = vector.broadcast %43 : f32 to vector<18x18xf32>
    %45 = arith.mulf %44, %9 : vector<18x18xf32>
    %46 = arith.addf %42, %45 : vector<18x18xf32>
    %c1_37 = arith.constant 1 : index
    %c2_38 = arith.constant 2 : index
    %47 = memref.load %arg4[%c1_37, %c2_38] : memref<8x3xf32, #tpu.memory_space<smem>>
    %48 = vector.broadcast %47 : f32 to vector<18x18xf32>
    %49 = arith.mulf %48, %13 : vector<18x18xf32>
    %50 = arith.addf %46, %49 : vector<18x18xf32>
    %cst_39 = arith.constant -3.000000e+00 : f32
    %cst_40 = arith.constant 6.000000e+00 : f32
    %51 = vector.broadcast %cst_39 : f32 to vector<18x18xf32>
    %52 = arith.maximumf %51, %50 : vector<18x18xf32>
    %53 = vector.broadcast %cst_40 : f32 to vector<18x18xf32>
    %54 = arith.minimumf %53, %52 : vector<18x18xf32>
    %cst_41 = arith.constant 0.166666672 : f32
    %55 = vector.broadcast %cst_41 : f32 to vector<18x18xf32>
    %56 = arith.mulf %54, %55 : vector<18x18xf32>
    %c0_42 = arith.constant 0 : index
    %c1_43 = arith.constant 1 : index
    %c0_44 = arith.constant 0 : index
    %c0_45 = arith.constant 0 : index
    %57 = vector.load %arg6[%c0_42, %c1_43, %c0_44, %c0_45] : memref<1x8x18x18xf32, #tpu.memory_space<vmem>>, vector<1x1x18x18xf32>
    %58 = vector.shape_cast %57 : vector<1x1x18x18xf32> to vector<18x18xf32>
    %59 = vector.shape_cast %56 : vector<18x18xf32> to vector<1x1x18x18xf32>
    tpu.vector_store %arg6[%c0_42, %c1_43, %c0_44, %c0_45], %59 {strides = array<i32>} : memref<1x8x18x18xf32, #tpu.memory_space<vmem>>, vector<1x1x18x18xf32>,
    %c2_46 = arith.constant 2 : index
    %60 = memref.load %arg5[%c2_46] : memref<8xf32, #tpu.memory_space<smem>>
    %c2_47 = arith.constant 2 : index
    %c0_48 = arith.constant 0 : index
    %61 = memref.load %arg4[%c2_47, %c0_48] : memref<8x3xf32, #tpu.memory_space<smem>>
    %62 = vector.broadcast %61 : f32 to vector<18x18xf32>
    %63 = arith.mulf %62, %5 : vector<18x18xf32>
    %64 = vector.broadcast %60 : f32 to vector<18x18xf32>
    %65 = arith.addf %64, %63 : vector<18x18xf32>
    %c2_49 = arith.constant 2 : index
    %c1_50 = arith.constant 1 : index
    %66 = memref.load %arg4[%c2_49, %c1_50] : memref<8x3xf32, #tpu.memory_space<smem>>
    %67 = vector.broadcast %66 : f32 to vector<18x18xf32>
    %68 = arith.mulf %67, %9 : vector<18x18xf32>
    %69 = arith.addf %65, %68 : vector<18x18xf32>
    %c2_51 = arith.constant 2 : index
    %c2_52 = arith.constant 2 : index
    %70 = memref.load %arg4[%c2_51, %c2_52] : memref<8x3xf32, #tpu.memory_space<smem>>
    %71 = vector.broadcast %70 : f32 to vector<18x18xf32>
    %72 = arith.mulf %71, %13 : vector<18x18xf32>
    %73 = arith.addf %69, %72 : vector<18x18xf32>
    %cst_53 = arith.constant -3.000000e+00 : f32
    %cst_54 = arith.constant 6.000000e+00 : f32
    %74 = vector.broadcast %cst_53 : f32 to vector<18x18xf32>
    %75 = arith.maximumf %74, %73 : vector<18x18xf32>
    %76 = vector.broadcast %cst_54 : f32 to vector<18x18xf32>
    %77 = arith.minimumf %76, %75 : vector<18x18xf32>
    %cst_55 = arith.constant 0.166666672 : f32
    %78 = vector.broadcast %cst_55 : f32 to vector<18x18xf32>
    %79 = arith.mulf %77, %78 : vector<18x18xf32>
    %c0_56 = arith.constant 0 : index
    %c2_57 = arith.constant 2 : index
    %c0_58 = arith.constant 0 : index
    %c0_59 = arith.constant 0 : index
    %80 = vector.load %arg6[%c0_56, %c2_57, %c0_58, %c0_59] : memref<1x8x18x18xf32, #tpu.memory_space<vmem>>, vector<1x1x18x18xf32>
    %81 = vector.shape_cast %80 : vector<1x1x18x18xf32> to vector<18x18xf32>
    %82 = vector.shape_cast %79 : vector<18x18xf32> to vector<1x1x18x18xf32>
    tpu.vector_store %arg6[%c0_56, %c2_57, %c0_58, %c0_59], %82 {strides = array<i32>} : memref<1x8x18x18xf32, #tpu.memory_space<vmem>>, vector<1x1x18x18xf32>,
    %c3 = arith.constant 3 : index
    %83 = memref.load %arg5[%c3] : memref<8xf32, #tpu.memory_space<smem>>
    %c3_60 = arith.constant 3 : index
    %c0_61 = arith.constant 0 : index
    %84 = memref.load %arg4[%c3_60, %c0_61] : memref<8x3xf32, #tpu.memory_space<smem>>
    %85 = vector.broadcast %84 : f32 to vector<18x18xf32>
    %86 = arith.mulf %85, %5 : vector<18x18xf32>
    %87 = vector.broadcast %83 : f32 to vector<18x18xf32>
    %88 = arith.addf %87, %86 : vector<18x18xf32>
    %c3_62 = arith.constant 3 : index
    %c1_63 = arith.constant 1 : index
    %89 = memref.load %arg4[%c3_62, %c1_63] : memref<8x3xf32, #tpu.memory_space<smem>>
    %90 = vector.broadcast %89 : f32 to vector<18x18xf32>
    %91 = arith.mulf %90, %9 : vector<18x18xf32>
    %92 = arith.addf %88, %91 : vector<18x18xf32>
    %c3_64 = arith.constant 3 : index
    %c2_65 = arith.constant 2 : index
    %93 = memref.load %arg4[%c3_64, %c2_65] : memref<8x3xf32, #tpu.memory_space<smem>>
    %94 = vector.broadcast %93 : f32 to vector<18x18xf32>
    %95 = arith.mulf %94, %13 : vector<18x18xf32>
    %96 = arith.addf %92, %95 : vector<18x18xf32>
    %cst_66 = arith.constant -3.000000e+00 : f32
    %cst_67 = arith.constant 6.000000e+00 : f32
    %97 = vector.broadcast %cst_66 : f32 to vector<18x18xf32>
    %98 = arith.maximumf %97, %96 : vector<18x18xf32>
    %99 = vector.broadcast %cst_67 : f32 to vector<18x18xf32>
    %100 = arith.minimumf %99, %98 : vector<18x18xf32>
    %cst_68 = arith.constant 0.166666672 : f32
    %101 = vector.broadcast %cst_68 : f32 to vector<18x18xf32>
    %102 = arith.mulf %100, %101 : vector<18x18xf32>
    %c0_69 = arith.constant 0 : index
    %c3_70 = arith.constant 3 : index
    %c0_71 = arith.constant 0 : index
    %c0_72 = arith.constant 0 : index
    %103 = vector.load %arg6[%c0_69, %c3_70, %c0_71, %c0_72] : memref<1x8x18x18xf32, #tpu.memory_space<vmem>>, vector<1x1x18x18xf32>
    %104 = vector.shape_cast %103 : vector<1x1x18x18xf32> to vector<18x18xf32>
    %105 = vector.shape_cast %102 : vector<18x18xf32> to vector<1x1x18x18xf32>
    tpu.vector_store %arg6[%c0_69, %c3_70, %c0_71, %c0_72], %105 {strides = array<i32>} : memref<1x8x18x18xf32, #tpu.memory_space<vmem>>, vector<1x1x18x18xf32>,
    %c4 = arith.constant 4 : index
    %106 = memref.load %arg5[%c4] : memref<8xf32, #tpu.memory_space<smem>>
    %c4_73 = arith.constant 4 : index
    %c0_74 = arith.constant 0 : index
    %107 = memref.load %arg4[%c4_73, %c0_74] : memref<8x3xf32, #tpu.memory_space<smem>>
    %108 = vector.broadcast %107 : f32 to vector<18x18xf32>
    %109 = arith.mulf %108, %5 : vector<18x18xf32>
    %110 = vector.broadcast %106 : f32 to vector<18x18xf32>
    %111 = arith.addf %110, %109 : vector<18x18xf32>
    %c4_75 = arith.constant 4 : index
    %c1_76 = arith.constant 1 : index
    %112 = memref.load %arg4[%c4_75, %c1_76] : memref<8x3xf32, #tpu.memory_space<smem>>
    %113 = vector.broadcast %112 : f32 to vector<18x18xf32>
    %114 = arith.mulf %113, %9 : vector<18x18xf32>
    %115 = arith.addf %111, %114 : vector<18x18xf32>
    %c4_77 = arith.constant 4 : index
    %c2_78 = arith.constant 2 : index
    %116 = memref.load %arg4[%c4_77, %c2_78] : memref<8x3xf32, #tpu.memory_space<smem>>
    %117 = vector.broadcast %116 : f32 to vector<18x18xf32>
    %118 = arith.mulf %117, %13 : vector<18x18xf32>
    %119 = arith.addf %115, %118 : vector<18x18xf32>
    %cst_79 = arith.constant -3.000000e+00 : f32
    %cst_80 = arith.constant 6.000000e+00 : f32
    %120 = vector.broadcast %cst_79 : f32 to vector<18x18xf32>
    %121 = arith.maximumf %120, %119 : vector<18x18xf32>
    %122 = vector.broadcast %cst_80 : f32 to vector<18x18xf32>
    %123 = arith.minimumf %122, %121 : vector<18x18xf32>
    %cst_81 = arith.constant 0.166666672 : f32
    %124 = vector.broadcast %cst_81 : f32 to vector<18x18xf32>
    %125 = arith.mulf %123, %124 : vector<18x18xf32>
    %c0_82 = arith.constant 0 : index
    %c4_83 = arith.constant 4 : index
    %c0_84 = arith.constant 0 : index
    %c0_85 = arith.constant 0 : index
    %126 = vector.load %arg6[%c0_82, %c4_83, %c0_84, %c0_85] : memref<1x8x18x18xf32, #tpu.memory_space<vmem>>, vector<1x1x18x18xf32>
    %127 = vector.shape_cast %126 : vector<1x1x18x18xf32> to vector<18x18xf32>
    %128 = vector.shape_cast %125 : vector<18x18xf32> to vector<1x1x18x18xf32>
    tpu.vector_store %arg6[%c0_82, %c4_83, %c0_84, %c0_85], %128 {strides = array<i32>} : memref<1x8x18x18xf32, #tpu.memory_space<vmem>>, vector<1x1x18x18xf32>,
    %c5 = arith.constant 5 : index
    %129 = memref.load %arg5[%c5] : memref<8xf32, #tpu.memory_space<smem>>
    %c5_86 = arith.constant 5 : index
    %c0_87 = arith.constant 0 : index
    %130 = memref.load %arg4[%c5_86, %c0_87] : memref<8x3xf32, #tpu.memory_space<smem>>
    %131 = vector.broadcast %130 : f32 to vector<18x18xf32>
    %132 = arith.mulf %131, %5 : vector<18x18xf32>
    %133 = vector.broadcast %129 : f32 to vector<18x18xf32>
    %134 = arith.addf %133, %132 : vector<18x18xf32>
    %c5_88 = arith.constant 5 : index
    %c1_89 = arith.constant 1 : index
    %135 = memref.load %arg4[%c5_88, %c1_89] : memref<8x3xf32, #tpu.memory_space<smem>>
    %136 = vector.broadcast %135 : f32 to vector<18x18xf32>
    %137 = arith.mulf %136, %9 : vector<18x18xf32>
    %138 = arith.addf %134, %137 : vector<18x18xf32>
    %c5_90 = arith.constant 5 : index
    %c2_91 = arith.constant 2 : index
    %139 = memref.load %arg4[%c5_90, %c2_91] : memref<8x3xf32, #tpu.memory_space<smem>>
    %140 = vector.broadcast %139 : f32 to vector<18x18xf32>
    %141 = arith.mulf %140, %13 : vector<18x18xf32>
    %142 = arith.addf %138, %141 : vector<18x18xf32>
    %cst_92 = arith.constant -3.000000e+00 : f32
    %cst_93 = arith.constant 6.000000e+00 : f32
    %143 = vector.broadcast %cst_92 : f32 to vector<18x18xf32>
    %144 = arith.maximumf %143, %142 : vector<18x18xf32>
    %145 = vector.broadcast %cst_93 : f32 to vector<18x18xf32>
    %146 = arith.minimumf %145, %144 : vector<18x18xf32>
    %cst_94 = arith.constant 0.166666672 : f32
    %147 = vector.broadcast %cst_94 : f32 to vector<18x18xf32>
    %148 = arith.mulf %146, %147 : vector<18x18xf32>
    %c0_95 = arith.constant 0 : index
    %c5_96 = arith.constant 5 : index
    %c0_97 = arith.constant 0 : index
    %c0_98 = arith.constant 0 : index
    %149 = vector.load %arg6[%c0_95, %c5_96, %c0_97, %c0_98] : memref<1x8x18x18xf32, #tpu.memory_space<vmem>>, vector<1x1x18x18xf32>
    %150 = vector.shape_cast %149 : vector<1x1x18x18xf32> to vector<18x18xf32>
    %151 = vector.shape_cast %148 : vector<18x18xf32> to vector<1x1x18x18xf32>
    tpu.vector_store %arg6[%c0_95, %c5_96, %c0_97, %c0_98], %151 {strides = array<i32>} : memref<1x8x18x18xf32, #tpu.memory_space<vmem>>, vector<1x1x18x18xf32>,
    %c6 = arith.constant 6 : index
    %152 = memref.load %arg5[%c6] : memref<8xf32, #tpu.memory_space<smem>>
    %c6_99 = arith.constant 6 : index
    %c0_100 = arith.constant 0 : index
    %153 = memref.load %arg4[%c6_99, %c0_100] : memref<8x3xf32, #tpu.memory_space<smem>>
    %154 = vector.broadcast %153 : f32 to vector<18x18xf32>
    %155 = arith.mulf %154, %5 : vector<18x18xf32>
    %156 = vector.broadcast %152 : f32 to vector<18x18xf32>
    %157 = arith.addf %156, %155 : vector<18x18xf32>
    %c6_101 = arith.constant 6 : index
    %c1_102 = arith.constant 1 : index
    %158 = memref.load %arg4[%c6_101, %c1_102] : memref<8x3xf32, #tpu.memory_space<smem>>
    %159 = vector.broadcast %158 : f32 to vector<18x18xf32>
    %160 = arith.mulf %159, %9 : vector<18x18xf32>
    %161 = arith.addf %157, %160 : vector<18x18xf32>
    %c6_103 = arith.constant 6 : index
    %c2_104 = arith.constant 2 : index
    %162 = memref.load %arg4[%c6_103, %c2_104] : memref<8x3xf32, #tpu.memory_space<smem>>
    %163 = vector.broadcast %162 : f32 to vector<18x18xf32>
    %164 = arith.mulf %163, %13 : vector<18x18xf32>
    %165 = arith.addf %161, %164 : vector<18x18xf32>
    %cst_105 = arith.constant -3.000000e+00 : f32
    %cst_106 = arith.constant 6.000000e+00 : f32
    %166 = vector.broadcast %cst_105 : f32 to vector<18x18xf32>
    %167 = arith.maximumf %166, %165 : vector<18x18xf32>
    %168 = vector.broadcast %cst_106 : f32 to vector<18x18xf32>
    %169 = arith.minimumf %168, %167 : vector<18x18xf32>
    %cst_107 = arith.constant 0.166666672 : f32
    %170 = vector.broadcast %cst_107 : f32 to vector<18x18xf32>
    %171 = arith.mulf %169, %170 : vector<18x18xf32>
    %c0_108 = arith.constant 0 : index
    %c6_109 = arith.constant 6 : index
    %c0_110 = arith.constant 0 : index
    %c0_111 = arith.constant 0 : index
    %172 = vector.load %arg6[%c0_108, %c6_109, %c0_110, %c0_111] : memref<1x8x18x18xf32, #tpu.memory_space<vmem>>, vector<1x1x18x18xf32>
    %173 = vector.shape_cast %172 : vector<1x1x18x18xf32> to vector<18x18xf32>
    %174 = vector.shape_cast %171 : vector<18x18xf32> to vector<1x1x18x18xf32>
    tpu.vector_store %arg6[%c0_108, %c6_109, %c0_110, %c0_111], %174 {strides = array<i32>} : memref<1x8x18x18xf32, #tpu.memory_space<vmem>>, vector<1x1x18x18xf32>,
    %c7 = arith.constant 7 : index
    %175 = memref.load %arg5[%c7] : memref<8xf32, #tpu.memory_space<smem>>
    %c7_112 = arith.constant 7 : index
    %c0_113 = arith.constant 0 : index
    %176 = memref.load %arg4[%c7_112, %c0_113] : memref<8x3xf32, #tpu.memory_space<smem>>
    %177 = vector.broadcast %176 : f32 to vector<18x18xf32>
    %178 = arith.mulf %177, %5 : vector<18x18xf32>
    %179 = vector.broadcast %175 : f32 to vector<18x18xf32>
    %180 = arith.addf %179, %178 : vector<18x18xf32>
    %c7_114 = arith.constant 7 : index
    %c1_115 = arith.constant 1 : index
    %181 = memref.load %arg4[%c7_114, %c1_115] : memref<8x3xf32, #tpu.memory_space<smem>>
    %182 = vector.broadcast %181 : f32 to vector<18x18xf32>
    %183 = arith.mulf %182, %9 : vector<18x18xf32>
    %184 = arith.addf %180, %183 : vector<18x18xf32>
    %c7_116 = arith.constant 7 : index
    %c2_117 = arith.constant 2 : index
    %185 = memref.load %arg4[%c7_116, %c2_117] : memref<8x3xf32, #tpu.memory_space<smem>>
    %186 = vector.broadcast %185 : f32 to vector<18x18xf32>
    %187 = arith.mulf %186, %13 : vector<18x18xf32>
    %188 = arith.addf %184, %187 : vector<18x18xf32>
    %cst_118 = arith.constant -3.000000e+00 : f32
    %cst_119 = arith.constant 6.000000e+00 : f32
    %189 = vector.broadcast %cst_118 : f32 to vector<18x18xf32>
    %190 = arith.maximumf %189, %188 : vector<18x18xf32>
    %191 = vector.broadcast %cst_119 : f32 to vector<18x18xf32>
    %192 = arith.minimumf %191, %190 : vector<18x18xf32>
    %cst_120 = arith.constant 0.166666672 : f32
    %193 = vector.broadcast %cst_120 : f32 to vector<18x18xf32>
    %194 = arith.mulf %192, %193 : vector<18x18xf32>
    %c0_121 = arith.constant 0 : index
    %c7_122 = arith.constant 7 : index
    %c0_123 = arith.constant 0 : index
    %c0_124 = arith.constant 0 : index
    %195 = vector.load %arg6[%c0_121, %c7_122, %c0_123, %c0_124] : memref<1x8x18x18xf32, #tpu.memory_space<vmem>>, vector<1x1x18x18xf32>
    %196 = vector.shape_cast %195 : vector<1x1x18x18xf32> to vector<18x18xf32>
    %197 = vector.shape_cast %194 : vector<18x18xf32> to vector<1x1x18x18xf32>
    tpu.vector_store %arg6[%c0_121, %c7_122, %c0_123, %c0_124], %197 {strides = array<i32>} : memref<1x8x18x18xf32, #tpu.memory_space<vmem>>, vector<1x1x18x18xf32>,
    return
  }
  func.func @transform_0(%arg0: i32) -> (i32, i32, i32, i32) {
    %c0_i32 = arith.constant 0 : i32
    %c0_i32_0 = arith.constant 0 : i32
    %c0_i32_1 = arith.constant 0 : i32
    %c0_i32_2 = arith.constant 0 : i32
    return %arg0, %c0_i32, %c0_i32_0, %c0_i32_1 : i32, i32, i32, i32
  }
  func.func @transform_1(%arg0: i32) -> (i32, i32) {
    %c0_i32 = arith.constant 0 : i32
    %c0_i32_0 = arith.constant 0 : i32
    %c0_i32_1 = arith.constant 0 : i32
    return %c0_i32, %c0_i32_0 : i32, i32
  }
  func.func @transform_2(%arg0: i32) -> (i32, i32) {
    %c0_i32 = arith.constant 0 : i32
    %c0_i32_0 = arith.constant 0 : i32
    %c0_i32_1 = arith.constant 0 : i32
    return %c0_i32, %c0_i32_0 : i32, i32
  }
  func.func @transform_3(%arg0: i32) -> (i32, i32) {
    %c0_i32 = arith.constant 0 : i32
    %c0_i32_0 = arith.constant 0 : i32
    %c0_i32_1 = arith.constant 0 : i32
    return %c0_i32, %c0_i32_0 : i32, i32
  }
  func.func @transform_4(%arg0: i32) -> i32 {
    %c0_i32 = arith.constant 0 : i32
    %c0_i32_0 = arith.constant 0 : i32
    return %c0_i32 : i32
  }
  func.func @transform_5(%arg0: i32) -> (i32, i32, i32, i32) {
    %c0_i32 = arith.constant 0 : i32
    %c0_i32_0 = arith.constant 0 : i32
    %c0_i32_1 = arith.constant 0 : i32
    %c0_i32_2 = arith.constant 0 : i32
    return %arg0, %c0_i32, %c0_i32_0, %c0_i32_1 : i32, i32, i32, i32
  }
}

</mosaic_0001>

<llo_original>
// kernel: tpu_custom_call.1
$region0: #{tpu_custom_call.1}
  #allocation0 [shape = 'u32[]', space=smem, size = 0x4, offset = 0x4, fixed_abs, tag = 'smem constant byte address 0x4 - core index']
  #allocation1 [shape = 'u32[144,128]{1,0:T(1,128)}', space=vmem, size = 0x12000, scoped, tag = 'internal scratch']
  %s0 = inlined_call_operand.hbm [shape: f32[2,3,16,16], index: 0, kind: input, shape index: {}]
  %s1 = inlined_call_operand.vmem [shape: f32[18,16], index: 1, kind: input, shape index: {}]
  %s2 = inlined_call_operand.vmem [shape: f32[16,18], index: 2, kind: input, shape index: {}]
  %s3 = inlined_call_operand.vmem [shape: f32[8,3], index: 3, kind: input, shape index: {}]
  %s4 = inlined_call_operand.vmem [shape: f32[8], index: 4, kind: input, shape index: {}]
  %s5 = inlined_call_operand.vmem [shape: f32[2,8,18,18], index: 5, kind: output, shape index: {}]
  %s6 = sld [smem:[#allocation0]]
  $region65: #{tpu_custom_call.1} parent=0
    _
  %s8 = ssub.s32 1, %s6
  %s9 = scalar_select 0, %s8, %s6
  $region1: #{tpu_custom_call.1} parent=0
    #allocation2 [shape = 'u8[49152]{0}', space=vmem, size = 0xc000, scoped, tag = 'input window, operand 0']
    #allocation3 [shape = 's32[2]{0}', space=sflag, size = 0x8, scoped, tag = 'scoped memory for tpu_custom_call.1']
    #allocation4 [shape = 's32[2]{0}', space=sflag, size = 0x8, scoped, tag = 'scoped memory for tpu_custom_call.1']
    #allocation5 [shape = 'u8[4096]{0}', space=smem, size = 0x1000, scoped, tag = 'input window, operand 3, single buffered']
    #allocation6 [shape = 'u8[512]{0}', space=smem, size = 0x200, scoped, tag = 'input window, operand 4, single buffered']
    #allocation7 [shape = 's32[1]{0}', space=sflag, size = 0x4, scoped, tag = 'scoped memory for tpu_custom_call.1']
    %10 = vsyncpa [#allocation3], 0
    %s11 = scalar_lea.sflag [#allocation3], 1
    %12 = vsyncpa %s11, 0
    %13 = vsyncpa [#allocation4], 0
    %14 = vsyncpa [#allocation7], 0
    loop: start=0, step=1, limit=4
    $region2: #{tpu_custom_call.1} parent=1 // loop_pre_header
      _
    $region3: #{tpu_custom_call.1} parent=1 // loop_header
      %s16 = sphi 0, %s20
      %p17 = scmp.ge.s32.totalorder %s16, 4
      %s26 = sphi 0, %s28
      %s29 = sphi 0, %s26
      %s30 = sphi 0, %s29
      %s46 = sphi 0, %s30
      %s50 = sphi 0, %s50
      %s52 = sphi 0, %s50
      %s53 = sphi 0, %s52
      %s67 = sphi 0, %s53
      %s71 = sphi 0, %s71
      %s73 = sphi 0, %s71
      %s74 = sphi 0, %s73
      %s88 = sphi 0, %s74
      %s92 = sphi 0, %s92
      %s94 = sphi 0, %s92
      %s95 = sphi 0, %s94
      %s109 = sphi 0, %s95
      %s113 = sphi 0, %s113
      %s115 = sphi 0, %s113
      %s116 = sphi 0, %s115
      %s130 = sphi 0, %s116
      %s136 = sphi 0, %s138
      %s139 = sphi 0, %s136
      %s140 = sphi 0, %s139
      %s156 = sphi 0, %s140
    $region4: #{tpu_custom_call.1} parent=1 // loop_header_branch
      %19 = sbr.rel (%p17) target = $region8
    $region5: #{tpu_custom_call.1} parent=1 // loop_body
      %s21 = ssub.s32 %s16, 1
      %s22 = ssub.s32 %s16, 2
      %s23 = sadd.s32 %s16, 1
      %s24 = ssub.s32 %s16, %s23
      %p25 = scmp.eq.s32.totalorder %s24, 0
      %s27 = sadd.s32 %s26, 1
      %s28 = scalar_select %p25, %s26, %s27
      %p31 = pneg %p25
      %p32 = scmp.eq.s32.totalorder %s16, 1
      %p33 = por %p31, %p32
      %p34 = scmp.ne.s32.totalorder %s26, %s29
      %p35 = scmp.eq.s32.totalorder %s16, 0
      %p36 = por %p34, %p35
      %p37 = scmp.ne.s32.totalorder %s26, %s29
      %p38 = scmp.eq.s32.totalorder %s21, 1
      %p39 = por %p37, %p38
      %p40 = scmp.ne.s32.totalorder %s29, %s30
      %p41 = scmp.eq.s32.totalorder %s21, 0
      %p42 = por %p40, %p41
      %p43 = scmp.ne.s32.totalorder %s29, %s30
      %p44 = scmp.eq.s32.totalorder %s22, 1
      %p45 = por %p43, %p44
      %p47 = scmp.ne.s32.totalorder %s30, %s46
      %p48 = scmp.eq.s32.totalorder %s22, 0
      %p49 = por %p47, %p48
      %s51 = sadd.s32 %s50, 1
      %p54 = scmp.eq.s32.totalorder %s16, 1
      %p55 = scmp.ne.s32.totalorder %s50, %s52
      %p56 = scmp.eq.s32.totalorder %s16, 0
      %p57 = por %p55, %p56
      %p58 = scmp.ne.s32.totalorder %s50, %s52
      %p59 = scmp.eq.s32.totalorder %s21, 1
      %p60 = por %p58, %p59
      %p61 = scmp.ne.s32.totalorder %s52, %s53
      %p62 = scmp.eq.s32.totalorder %s21, 0
      %p63 = por %p61, %p62
      %p64 = scmp.ne.s32.totalorder %s52, %s53
      %p65 = scmp.eq.s32.totalorder %s22, 1
      %p66 = por %p64, %p65
      %p68 = scmp.ne.s32.totalorder %s53, %s67
      %p69 = scmp.eq.s32.totalorder %s22, 0
      %p70 = por %p68, %p69
      %s72 = sadd.s32 %s71, 1
      %p75 = scmp.eq.s32.totalorder %s16, 1
      %p76 = scmp.ne.s32.totalorder %s71, %s73
      %p77 = scmp.eq.s32.totalorder %s16, 0
      %p78 = por %p76, %p77
      %p79 = scmp.ne.s32.totalorder %s71, %s73
      %p80 = scmp.eq.s32.totalorder %s21, 1
      %p81 = por %p79, %p80
      %p82 = scmp.ne.s32.totalorder %s73, %s74
      %p83 = scmp.eq.s32.totalorder %s21, 0
      %p84 = por %p82, %p83
      %p85 = scmp.ne.s32.totalorder %s73, %s74
      %p86 = scmp.eq.s32.totalorder %s22, 1
      %p87 = por %p85, %p86
      %p89 = scmp.ne.s32.totalorder %s74, %s88
      %p90 = scmp.eq.s32.totalorder %s22, 0
      %p91 = por %p89, %p90
      %s93 = sadd.s32 %s92, 1
      %p96 = scmp.eq.s32.totalorder %s16, 1
      %p97 = scmp.ne.s32.totalorder %s92, %s94
      %p98 = scmp.eq.s32.totalorder %s16, 0
      %p99 = por %p97, %p98
      %p100 = scmp.ne.s32.totalorder %s92, %s94
      %p101 = scmp.eq.s32.totalorder %s21, 1
      %p102 = por %p100, %p101
      %p103 = scmp.ne.s32.totalorder %s94, %s95
      %p104 = scmp.eq.s32.totalorder %s21, 0
      %p105 = por %p103, %p104
      %p106 = scmp.ne.s32.totalorder %s94, %s95
      %p107 = scmp.eq.s32.totalorder %s22, 1
      %p108 = por %p106, %p107
      %p110 = scmp.ne.s32.totalorder %s95, %s109
      %p111 = scmp.eq.s32.totalorder %s22, 0
      %p112 = por %p110, %p111
      %s114 = sadd.s32 %s113, 1
      %p117 = scmp.eq.s32.totalorder %s16, 1
      %p118 = scmp.ne.s32.totalorder %s113, %s115
      %p119 = scmp.eq.s32.totalorder %s16, 0
      %p120 = por %p118, %p119
      %p121 = scmp.ne.s32.totalorder %s113, %s115
      %p122 = scmp.eq.s32.totalorder %s21, 1
      %p123 = por %p121, %p122
      %p124 = scmp.ne.s32.totalorder %s115, %s116
      %p125 = scmp.eq.s32.totalorder %s21, 0
      %p126 = por %p124, %p125
      %p127 = scmp.ne.s32.totalorder %s115, %s116
      %p128 = scmp.eq.s32.totalorder %s22, 1
      %p129 = por %p127, %p128
      %p131 = scmp.ne.s32.totalorder %s116, %s130
      %p132 = scmp.eq.s32.totalorder %s22, 0
      %p133 = por %p131, %p132
      %s134 = ssub.s32 %s16, %s23
      %p135 = scmp.eq.s32.totalorder %s134, 0
      %s137 = sadd.s32 %s136, 1
      %s138 = scalar_select %p135, %s136, %s137
      %p141 = pneg %p135
      %p142 = scmp.eq.s32.totalorder %s16, 1
      %p143 = por %p141, %p142
      %p144 = scmp.ne.s32.totalorder %s136, %s139
      %p145 = scmp.eq.s32.totalorder %s16, 0
      %p146 = por %p144, %p145
      %p147 = scmp.ne.s32.totalorder %s136, %s139
      %p148 = scmp.eq.s32.totalorder %s21, 1
      %p149 = por %p147, %p148
      %p150 = scmp.ne.s32.totalorder %s139, %s140
      %p151 = scmp.eq.s32.totalorder %s21, 0
      %p152 = por %p150, %p151
      %p153 = scmp.ne.s32.totalorder %s139, %s140
      %p154 = scmp.eq.s32.totalorder %s22, 1
      %p155 = por %p153, %p154
      %p157 = scmp.ne.s32.totalorder %s140, %s156
      %p158 = scmp.eq.s32.totalorder %s22, 0
      %p159 = por %p157, %p158
      %p160 = scmp.le.s32.totalorder 1, %s16
      %p161 = scmp.lt.s32.totalorder %s16, 3
      %p162 = pnand %p160, %p161
      %p163 = pneg %p162
      // Predicated region
      $region9: #{tpu_custom_call.1} parent=5 // pred_check
        _
      $region10: #{tpu_custom_call.1} parent=5 // pred_check_branch
        %165 = sbr.rel (%p162) target = $region12
      $region11: #{tpu_custom_call.1} parent=5 // pred_region
        %s166 = ssub.s32 %s16, 1
        // Predicated region
        $region13: #{tpu_custom_call.1} parent=11 // pred_check
          %p167 = pneg %p63
        $region14: #{tpu_custom_call.1} parent=11 // pred_check_branch
          %169 = sbr.rel (%p167) target = $region16
        $region15: #{tpu_custom_call.1} parent=11 // pred_region
          _
        $region16: #{tpu_custom_call.1} parent=11 // pred_fallthru
          _
        // Predicated region
        $region17: #{tpu_custom_call.1} parent=11 // pred_check
          %p170 = pneg %p84
        $region18: #{tpu_custom_call.1} parent=11 // pred_check_branch
          %172 = sbr.rel (%p170) target = $region20
        $region19: #{tpu_custom_call.1} parent=11 // pred_region
          _
        $region20: #{tpu_custom_call.1} parent=11 // pred_fallthru
          _
        // Predicated region
        $region21: #{tpu_custom_call.1} parent=11 // pred_check
          %p173 = pneg %p105
        $region22: #{tpu_custom_call.1} parent=11 // pred_check_branch
          %175 = sbr.rel (%p173) target = $region24
        $region23: #{tpu_custom_call.1} parent=11 // pred_region
          %s177 = ssub.s32 128, 128
          %178 = vsyncadd [#allocation4], %s177
          %s180 = sshll.u32 %s3, 4
          %s181 = int_to_ptr.vmem [resolvable:$true] %s180
          %183 = dma.vmem_to_smem %s181, 128, [#allocation5], [#allocation4]
        $region24: #{tpu_custom_call.1} parent=11 // pred_fallthru
          _
        // Predicated region
        $region25: #{tpu_custom_call.1} parent=11 // pred_check
          %p184 = pneg %p126
        $region26: #{tpu_custom_call.1} parent=11 // pred_check_branch
          %186 = sbr.rel (%p184) target = $region28
        $region27: #{tpu_custom_call.1} parent=11 // pred_region
          %s188 = ssub.s32 16, 16
          %189 = vsyncadd [#allocation7], %s188
          %s191 = sshll.u32 %s4, 4
          %s192 = int_to_ptr.vmem [resolvable:$true] %s191
          %194 = dma.vmem_to_smem %s192, 16, [#allocation6], [#allocation7]
        $region28: #{tpu_custom_call.1} parent=11 // pred_fallthru
          _
      $region12: #{tpu_custom_call.1} parent=5 // pred_fallthru
        _
      %p195 = scmp.lt.s32.totalorder %s16, 2
      // Predicated region
      $region29: #{tpu_custom_call.1} parent=5 // pred_check
        %p196 = pneg %p195
      $region30: #{tpu_custom_call.1} parent=5 // pred_check_branch
        %198 = sbr.rel (%p196) target = $region32
      $region31: #{tpu_custom_call.1} parent=5 // pred_region
        // Predicated region
        $region33: #{tpu_custom_call.1} parent=31 // pred_check
          %p199 = pneg %p36
        $region34: #{tpu_custom_call.1} parent=31 // pred_check_branch
          %201 = sbr.rel (%p199) target = $region36
        $region35: #{tpu_custom_call.1} parent=31 // pred_region
          %s202 = sand.u32 %s26, 1
          %s203 = scalar_lea.sflag [#allocation3], %s202
          %s204 = sand.u32 %s26, 1
          %s205 = smul.addr %s204, 48
          %s206 = scalar_lea.vmem [#allocation2], %s205
          %s208 = ssub.s32 768, 768
          %209 = vsyncadd %s203, %s208
          %s210 = smul.addr %s16, 6
          %s211 = smul.addr %s210, 128
          %s212 = scalar_lea.hbm %s0, %s211
          %s213 = sshll.u32 %s206, 4
          %s214 = int_to_ptr.vmem [resolvable:$true] %s213
          %219 = dma.hbm_to_vmem [thread:$0]  %s212, 768, %s214, %s203, 128, 128, 8
        $region36: #{tpu_custom_call.1} parent=31 // pred_fallthru
          _
      $region32: #{tpu_custom_call.1} parent=5 // pred_fallthru
        _
      %p220 = scmp.le.s32.totalorder 1, %s16
      %p221 = scmp.lt.s32.totalorder %s16, 3
      %p222 = pnand %p220, %p221
      %p223 = pneg %p222
      // Predicated region
      $region37: #{tpu_custom_call.1} parent=5 // pred_check
        _
      $region38: #{tpu_custom_call.1} parent=5 // pred_check_branch
        %225 = sbr.rel (%p222) target = $region40
      $region39: #{tpu_custom_call.1} parent=5 // pred_region
        %s226 = ssub.s32 %s16, 1
        %s227 = sand.u32 %s29, 1
        %s228 = scalar_lea.sflag [#allocation3], %s227
        %s229 = sand.u32 %s29, 1
        %s230 = smul.addr %s229, 48
        %s231 = scalar_lea.vmem [#allocation2], %s230
        // Predicated region
        $region41: #{tpu_custom_call.1} parent=39 // pred_check
          %p232 = pneg %p42
        $region42: #{tpu_custom_call.1} parent=39 // pred_check_branch
          %234 = sbr.rel (%p232) target = $region44
        $region43: #{tpu_custom_call.1} parent=39 // pred_region
          %235 = dma.done %s228, 768
        $region44: #{tpu_custom_call.1} parent=39 // pred_fallthru
          _
        // Predicated region
        $region45: #{tpu_custom_call.1} parent=39 // pred_check
          %p236 = pneg %p105
        $region46: #{tpu_custom_call.1} parent=39 // pred_check_branch
          %238 = sbr.rel (%p236) target = $region48
        $region47: #{tpu_custom_call.1} parent=39 // pred_region
          %239 = dma.done [#allocation4], 128
        $region48: #{tpu_custom_call.1} parent=39 // pred_fallthru
          _
        // Predicated region
        $region49: #{tpu_custom_call.1} parent=39 // pred_check
          %p240 = pneg %p126
        $region50: #{tpu_custom_call.1} parent=39 // pred_check_branch
          %242 = sbr.rel (%p240) target = $region52
        $region51: #{tpu_custom_call.1} parent=39 // pred_region
          %243 = dma.done [#allocation7], 16
        $region52: #{tpu_custom_call.1} parent=39 // pred_fallthru
          _
        %244 = sfence
        %s245 = sand.u32 %s29, 1
        %s246 = scalar_lea.sflag [#allocation3], %s245
        %s247 = sand.u32 %s29, 1
        %s248 = smul.addr %s247, 48
        %s249 = scalar_lea.vmem [#allocation2], %s248
        %p250 = pneg %p42
        %p251 = pneg %p39
        %p252 = pneg %p63
        %p253 = pneg %p60
        %p254 = pneg %p84
        %p255 = pneg %p81
        %p256 = pneg %p105
        %p257 = pneg %p102
        %p258 = pneg %p126
        %p259 = pneg %p123
        %p260 = pneg %p152
        %p261 = pneg %p149
        %p262 = scmp.lt.s32.totalorder %s21, 1
        %s263 = scalar_select %p262, %s21, 1
        %s264 = smul.addr %s263, 24
        %s265 = smul.addr %s264, 8
        %s266 = scalar_lea.vmem %s5, %s265
        %p267 = scmp.lt.s32.totalorder %s21, 1
        %s268 = scalar_select %p267, %s21, 1
        %s269 = smul.addr %s268, 24
        %s270 = smul.addr %s269, 8
        %s271 = scalar_lea.vmem %s5, %s270
        %v272 = vld [vmem:[%s1] sm:$0xff]
        %v273 = vld [vmem:[%s1 + $0x8] sm:$0xff]
        %v274 = vld [vmem:[%s1 + $0x10] sm:$0x3]
        %v275 = vld [vmem:[%s2] sm:$0xff]
        %v276 = vld [vmem:[%s2 + $0x8] sm:$0xff]
        %v277 = vld [vmem:[%s231] sm:$0xff]
        %v278 = vld [vmem:[%s231 + $0x8] sm:$0xff]
        %vm279 = vcmask 130048
        %v281 = vsel %vm279, %v272, 0
        %v284 = vsel %vm279, %v273, 0
        %v287 = vsel %vm279, %v274, 0
        %289 = vmatprep.subr.mxu0 0.0
        %290 = vmatpush1.msra.mxu0 0.0
        %291 = vmatprep.subr.mxu0 0.0
        %292 = vmatpush1.msra.mxu0 0.0
        %293 = vmatprep.subr.mxu0 0.0
        %294 = vmatpush1.msra.mxu0 0.0
        %295 = vmatprep.subr.mxu0 0.0
        %296 = vmatpush1.msra.mxu0 0.0
        %297 = vmatprep.subr.mxu0 0.0
        %298 = vmatpush1.msra.mxu0 0.0
        %299 = vmatprep.subr.mxu0 0.0
        %300 = vmatpush1.msra.mxu0 0.0
        %301 = vmatprep.subr.mxu0 0.0
        %302 = vmatpush1.msra.mxu0 0.0
        %303 = vmatprep.subr.mxu0 0.0
        %304 = vmatpush1.msra.mxu0 0.0
        %305 = vmatprep.subr.mxu0 0.0
        %306 = vmatpush1.msra.mxu0 0.0
        %307 = vmatprep.subr.mxu0 0.0
        %308 = vmatpush1.msra.mxu0 0.0
        %309 = vmatprep.subr.mxu0 0.0
        %310 = vmatpush1.msra.mxu0 0.0
        %311 = vmatprep.subr.mxu0 0.0
        %312 = vmatpush1.msra.mxu0 0.0
        %313 = vmatprep.subr.mxu0 0.0
        %314 = vmatpush1.msra.mxu0 0.0
        %315 = vmatprep.subr.mxu0 0.0
        %316 = vmatpush1.msra.mxu0 0.0
        %317 = vmatprep.subr.mxu0 0.0
        %v318 = vand.u32 %v278, 4294901760
        %319 = vmatpush1.msra.mxu0 %v318
        %320 = vmatprep.subr.mxu0 0.0
        %v321 = vand.u32 %v277, 4294901760
        %322 = vmatpush1.msra.mxu0 %v321
        %323 = vmatprep.subr.mxu0 0.0
        %324 = vmatpush2.msra.mxu0 0.0
        %325 = vmatprep.subr.mxu0 0.0
        %326 = vmatpush2.msra.mxu0 0.0
        %327 = vmatprep.subr.mxu0 0.0
        %328 = vmatpush2.msra.mxu0 0.0
        %329 = vmatprep.subr.mxu0 0.0
        %330 = vmatpush2.msra.mxu0 0.0
        %331 = vmatprep.subr.mxu0 0.0
        %332 = vmatpush2.msra.mxu0 0.0
        %333 = vmatprep.subr.mxu0 0.0
        %334 = vmatpush2.msra.mxu0 0.0
        %335 = vmatprep.subr.mxu0 0.0
        %336 = vmatpush2.msra.mxu0 0.0
        %337 = vmatprep.subr.mxu0 0.0
        %338 = vmatpush2.msra.mxu0 0.0
        %339 = vmatprep.subr.mxu0 0.0
        %340 = vmatpush2.msra.mxu0 0.0
        %341 = vmatprep.subr.mxu0 0.0
        %342 = vmatpush2.msra.mxu0 0.0
        %343 = vmatprep.subr.mxu0 0.0
        %344 = vmatpush2.msra.mxu0 0.0
        %345 = vmatprep.subr.mxu0 0.0
        %346 = vmatpush2.msra.mxu0 0.0
        %347 = vmatprep.subr.mxu0 0.0
        %348 = vmatpush2.msra.mxu0 0.0
        %349 = vmatprep.subr.mxu0 0.0
        %350 = vmatpush2.msra.mxu0 0.0
        %351 = vmatprep.subr.mxu0 0.0
        %352 = vmatpush2.msra.mxu0 0.0
        %353 = vmatprep.subr.mxu0 0.0
        %354 = vmatpush2.msra.mxu0 0.0
        %355 = vmatprep.mubr.f32.mxu0 0.0
        %v356 = vand.u32 %v281, 4294901760
        %v357 = vsub.f32 %v281, %v356
        %v358 = vand.u32 %v357, 4294901760
        %v359 = vsub.f32 %v357, %v358
        %v360 = vand.u32 %v359, 4294901760
        %361 = vmatmul.mubr.f32.gmra.mxu0 %v360
        %v362 = vpop.f32.mrf.mxu0
        %v363 = vadd.f32 0.0, %v362
        %v364 = vpop.f32.mrf.mxu0
        %365 = vmatprep.mubr.f32.mxu0 0.0
        %v366 = vand.u32 %v284, 4294901760
        %v367 = vsub.f32 %v284, %v366
        %v368 = vand.u32 %v367, 4294901760
        %v369 = vsub.f32 %v367, %v368
        %v370 = vand.u32 %v369, 4294901760
        %371 = vmatmul.mubr.f32.gmra.mxu0 %v370
        %v372 = vpop.f32.mrf.mxu0
        %v373 = vadd.f32 0.0, %v372
        %v374 = vpop.f32.mrf.mxu0
        %375 = vmatprep.mubr.f32.mxu0 0.0
        %v376 = vand.u32 %v287, 4294901760
        %v377 = vsub.f32 %v287, %v376
        %v378 = vand.u32 %v377, 4294901760
        %v379 = vsub.f32 %v377, %v378
        %v380 = vand.u32 %v379, 4294901760
        %381 = vmatmul.mubr.f32.gmra.mxu0 %v380
        %v382 = vpop.f32.mrf.mxu0
        %v383 = vadd.f32 0.0, %v382
        %v384 = vpop.f32.mrf.mxu0
        %385 = vdwg.mxu0
        %386 = vmatprep.subr.mxu0 0.0
        %387 = vmatpush1.msra.mxu0 0.0
        %388 = vmatprep.subr.mxu0 0.0
        %389 = vmatpush1.msra.mxu0 0.0
        %390 = vmatprep.subr.mxu0 0.0
        %391 = vmatpush1.msra.mxu0 0.0
        %392 = vmatprep.subr.mxu0 0.0
        %393 = vmatpush1.msra.mxu0 0.0
        %394 = vmatprep.subr.mxu0 0.0
        %395 = vmatpush1.msra.mxu0 0.0
        %396 = vmatprep.subr.mxu0 0.0
        %397 = vmatpush1.msra.mxu0 0.0
        %398 = vmatprep.subr.mxu0 0.0
        %399 = vmatpush1.msra.mxu0 0.0
        %400 = vmatprep.subr.mxu0 0.0
        %401 = vmatpush1.msra.mxu0 0.0
        %402 = vmatprep.subr.mxu0 0.0
        %403 = vmatpush1.msra.mxu0 0.0
        %404 = vmatprep.subr.mxu0 0.0
        %405 = vmatpush1.msra.mxu0 0.0
        %406 = vmatprep.subr.mxu0 0.0
        %407 = vmatpush1.msra.mxu0 0.0
        %408 = vmatprep.subr.mxu0 0.0
        %409 = vmatpush1.msra.mxu0 0.0
        %410 = vmatprep.subr.mxu0 0.0
        %411 = vmatpush1.msra.mxu0 0.0
        %412 = vmatprep.subr.mxu0 0.0
        %413 = vmatpush1.msra.mxu0 0.0
        %414 = vmatprep.subr.mxu0 0.0
        %v415 = vand.u32 %v278, 4294901760
        %v416 = vsub.f32 %v278, %v415
        %v417 = vand.u32 %v416, 4294901760
        %v418 = vsub.f32 %v416, %v417
        %v419 = vand.u32 %v418, 4294901760
        %420 = vmatpush1.msra.mxu0 %v419
        %421 = vmatprep.subr.mxu0 0.0
        %v422 = vand.u32 %v277, 4294901760
        %v423 = vsub.f32 %v277, %v422
        %v424 = vand.u32 %v423, 4294901760
        %v425 = vsub.f32 %v423, %v424
        %v426 = vand.u32 %v425, 4294901760
        %427 = vmatpush1.msra.mxu0 %v426
        %428 = vmatprep.subr.mxu0 0.0
        %429 = vmatpush2.msra.mxu0 0.0
        %430 = vmatprep.subr.mxu0 0.0
        %431 = vmatpush2.msra.mxu0 0.0
        %432 = vmatprep.subr.mxu0 0.0
        %433 = vmatpush2.msra.mxu0 0.0
        %434 = vmatprep.subr.mxu0 0.0
        %435 = vmatpush2.msra.mxu0 0.0
        %436 = vmatprep.subr.mxu0 0.0
        %437 = vmatpush2.msra.mxu0 0.0
        %438 = vmatprep.subr.mxu0 0.0
        %439 = vmatpush2.msra.mxu0 0.0
        %440 = vmatprep.subr.mxu0 0.0
        %441 = vmatpush2.msra.mxu0 0.0
        %442 = vmatprep.subr.mxu0 0.0
        %443 = vmatpush2.msra.mxu0 0.0
        %444 = vmatprep.subr.mxu0 0.0
        %445 = vmatpush2.msra.mxu0 0.0
        %446 = vmatprep.subr.mxu0 0.0
        %447 = vmatpush2.msra.mxu0 0.0
        %448 = vmatprep.subr.mxu0 0.0
        %449 = vmatpush2.msra.mxu0 0.0
        %450 = vmatprep.subr.mxu0 0.0
        %451 = vmatpush2.msra.mxu0 0.0
        %452 = vmatprep.subr.mxu0 0.0
        %453 = vmatpush2.msra.mxu0 0.0
        %454 = vmatprep.subr.mxu0 0.0
        %455 = vmatpush2.msra.mxu0 0.0
        %456 = vmatprep.subr.mxu0 0.0
        %457 = vmatpush2.msra.mxu0 0.0
        %458 = vmatprep.subr.mxu0 0.0
        %459 = vmatpush2.msra.mxu0 0.0
        %460 = vmatprep.mubr.f32.mxu0 0.0
        %v461 = vand.u32 %v281, 4294901760
        %462 = vmatmul.mubr.f32.gmra.mxu0 %v461
        %v463 = vpop.f32.mrf.mxu0
        %v464 = vadd.f32 %v363, %v463
        %v465 = vpop.f32.mrf.mxu0
        %466 = vmatprep.mubr.f32.mxu0 0.0
        %v467 = vand.u32 %v284, 4294901760
        %468 = vmatmul.mubr.f32.gmra.mxu0 %v467
        %v469 = vpop.f32.mrf.mxu0
        %v470 = vadd.f32 %v373, %v469
        %v471 = vpop.f32.mrf.mxu0
        %472 = vmatprep.mubr.f32.mxu0 0.0
        %v473 = vand.u32 %v287, 4294901760
        %474 = vmatmul.mubr.f32.gmra.mxu0 %v473
        %v475 = vpop.f32.mrf.mxu0
        %v476 = vadd.f32 %v383, %v475
        %v477 = vpop.f32.mrf.mxu0
        %478 = vdwg.mxu0
        %479 = vmatprep.subr.mxu0 0.0
        %480 = vmatpush1.msra.mxu0 0.0
        %481 = vmatprep.subr.mxu0 0.0
        %482 = vmatpush1.msra.mxu0 0.0
        %483 = vmatprep.subr.mxu0 0.0
        %484 = vmatpush1.msra.mxu0 0.0
        %485 = vmatprep.subr.mxu0 0.0
        %486 = vmatpush1.msra.mxu0 0.0
        %487 = vmatprep.subr.mxu0 0.0
        %488 = vmatpush1.msra.mxu0 0.0
        %489 = vmatprep.subr.mxu0 0.0
        %490 = vmatpush1.msra.mxu0 0.0
        %491 = vmatprep.subr.mxu0 0.0
        %492 = vmatpush1.msra.mxu0 0.0
        %493 = vmatprep.subr.mxu0 0.0
        %494 = vmatpush1.msra.mxu0 0.0
        %495 = vmatprep.subr.mxu0 0.0
        %496 = vmatpush1.msra.mxu0 0.0
        %497 = vmatprep.subr.mxu0 0.0
        %498 = vmatpush1.msra.mxu0 0.0
        %499 = vmatprep.subr.mxu0 0.0
        %500 = vmatpush1.msra.mxu0 0.0
        %501 = vmatprep.subr.mxu0 0.0
        %502 = vmatpush1.msra.mxu0 0.0
        %503 = vmatprep.subr.mxu0 0.0
        %504 = vmatpush1.msra.mxu0 0.0
        %505 = vmatprep.subr.mxu0 0.0
        %506 = vmatpush1.msra.mxu0 0.0
        %507 = vmatprep.subr.mxu0 0.0
        %v508 = vand.u32 %v278, 4294901760
        %v509 = vsub.f32 %v278, %v508
        %510 = vmatpush1.msra.mxu0 %v509
        %511 = vmatprep.subr.mxu0 0.0
        %v512 = vand.u32 %v277, 4294901760
        %v513 = vsub.f32 %v277, %v512
        %514 = vmatpush1.msra.mxu0 %v513
        %515 = vmatprep.subr.mxu0 0.0
        %516 = vmatpush2.msra.mxu0 0.0
        %517 = vmatprep.subr.mxu0 0.0
        %518 = vmatpush2.msra.mxu0 0.0
        %519 = vmatprep.subr.mxu0 0.0
        %520 = vmatpush2.msra.mxu0 0.0
        %521 = vmatprep.subr.mxu0 0.0
        %522 = vmatpush2.msra.mxu0 0.0
        %523 = vmatprep.subr.mxu0 0.0
        %524 = vmatpush2.msra.mxu0 0.0
        %525 = vmatprep.subr.mxu0 0.0
        %526 = vmatpush2.msra.mxu0 0.0
        %527 = vmatprep.subr.mxu0 0.0
        %528 = vmatpush2.msra.mxu0 0.0
        %529 = vmatprep.subr.mxu0 0.0
        %530 = vmatpush2.msra.mxu0 0.0
        %531 = vmatprep.subr.mxu0 0.0
        %532 = vmatpush2.msra.mxu0 0.0
        %533 = vmatprep.subr.mxu0 0.0
        %534 = vmatpush2.msra.mxu0 0.0
        %535 = vmatprep.subr.mxu0 0.0
        %536 = vmatpush2.msra.mxu0 0.0
        %537 = vmatprep.subr.mxu0 0.0
        %538 = vmatpush2.msra.mxu0 0.0
        %539 = vmatprep.subr.mxu0 0.0
        %540 = vmatpush2.msra.mxu0 0.0
        %541 = vmatprep.subr.mxu0 0.0
        %542 = vmatpush2.msra.mxu0 0.0
        %543 = vmatprep.subr.mxu0 0.0
        %544 = vmatpush2.msra.mxu0 0.0
        %545 = vmatprep.subr.mxu0 0.0
        %546 = vmatpush2.msra.mxu0 0.0
        %547 = vmatprep.mubr.f32.mxu0 0.0
        %v548 = vand.u32 %v281, 4294901760
        %v549 = vsub.f32 %v281, %v548
        %550 = vmatmul.mubr.f32.gmra.mxu0 %v549
        %v551 = vpop.f32.mrf.mxu0
        %v552 = vadd.f32 %v464, %v551
        %v553 = vpop.f32.mrf.mxu0
        %554 = vmatprep.mubr.f32.mxu0 0.0
        %v555 = vand.u32 %v284, 4294901760
        %v556 = vsub.f32 %v284, %v555
        %557 = vmatmul.mubr.f32.gmra.mxu0 %v556
        %v558 = vpop.f32.mrf.mxu0
        %v559 = vadd.f32 %v470, %v558
        %v560 = vpop.f32.mrf.mxu0
        %561 = vmatprep.mubr.f32.mxu0 0.0
        %v562 = vand.u32 %v287, 4294901760
        %v563 = vsub.f32 %v287, %v562
        %564 = vmatmul.mubr.f32.gmra.mxu0 %v563
        %v565 = vpop.f32.mrf.mxu0
        %v566 = vadd.f32 %v476, %v565
        %v567 = vpop.f32.mrf.mxu0
        %568 = vdwg.mxu0
        %569 = vmatprep.subr.mxu0 0.0
        %570 = vmatpush1.msra.mxu0 0.0
        %571 = vmatprep.subr.mxu0 0.0
        %572 = vmatpush1.msra.mxu0 0.0
        %573 = vmatprep.subr.mxu0 0.0
        %574 = vmatpush1.msra.mxu0 0.0
        %575 = vmatprep.subr.mxu0 0.0
        %576 = vmatpush1.msra.mxu0 0.0
        %577 = vmatprep.subr.mxu0 0.0
        %578 = vmatpush1.msra.mxu0 0.0
        %579 = vmatprep.subr.mxu0 0.0
        %580 = vmatpush1.msra.mxu0 0.0
        %581 = vmatprep.subr.mxu0 0.0
        %582 = vmatpush1.msra.mxu0 0.0
        %583 = vmatprep.subr.mxu0 0.0
        %584 = vmatpush1.msra.mxu0 0.0
        %585 = vmatprep.subr.mxu0 0.0
        %586 = vmatpush1.msra.mxu0 0.0
        %587 = vmatprep.subr.mxu0 0.0
        %588 = vmatpush1.msra.mxu0 0.0
        %589 = vmatprep.subr.mxu0 0.0
        %590 = vmatpush1.msra.mxu0 0.0
        %591 = vmatprep.subr.mxu0 0.0
        %592 = vmatpush1.msra.mxu0 0.0
        %593 = vmatprep.subr.mxu0 0.0
        %594 = vmatpush1.msra.mxu0 0.0
        %595 = vmatprep.subr.mxu0 0.0
        %596 = vmatpush1.msra.mxu0 0.0
        %597 = vmatprep.subr.mxu0 0.0
        %v598 = vand.u32 %v278, 4294901760
        %599 = vmatpush1.msra.mxu0 %v598
        %600 = vmatprep.subr.mxu0 0.0
        %v601 = vand.u32 %v277, 4294901760
        %602 = vmatpush1.msra.mxu0 %v601
        %603 = vmatprep.subr.mxu0 0.0
        %604 = vmatpush2.msra.mxu0 0.0
        %605 = vmatprep.subr.mxu0 0.0
        %606 = vmatpush2.msra.mxu0 0.0
        %607 = vmatprep.subr.mxu0 0.0
        %608 = vmatpush2.msra.mxu0 0.0
        %609 = vmatprep.subr.mxu0 0.0
        %610 = vmatpush2.msra.mxu0 0.0
        %611 = vmatprep.subr.mxu0 0.0
        %612 = vmatpush2.msra.mxu0 0.0
        %613 = vmatprep.subr.mxu0 0.0
        %614 = vmatpush2.msra.mxu0 0.0
        %615 = vmatprep.subr.mxu0 0.0
        %616 = vmatpush2.msra.mxu0 0.0
        %617 = vmatprep.subr.mxu0 0.0
        %618 = vmatpush2.msra.mxu0 0.0
        %619 = vmatprep.subr.mxu0 0.0
        %620 = vmatpush2.msra.mxu0 0.0
        %621 = vmatprep.subr.mxu0 0.0
        %622 = vmatpush2.msra.mxu0 0.0
        %623 = vmatprep.subr.mxu0 0.0
        %624 = vmatpush2.msra.mxu0 0.0
        %625 = vmatprep.subr.mxu0 0.0
        %626 = vmatpush2.msra.mxu0 0.0
        %627 = vmatprep.subr.mxu0 0.0
        %628 = vmatpush2.msra.mxu0 0.0
        %629 = vmatprep.subr.mxu0 0.0
        %630 = vmatpush2.msra.mxu0 0.0
        %631 = vmatprep.subr.mxu0 0.0
        %632 = vmatpush2.msra.mxu0 0.0
        %633 = vmatprep.subr.mxu0 0.0
        %634 = vmatpush2.msra.mxu0 0.0
        %635 = vmatprep.mubr.f32.mxu0 0.0
        %v636 = vand.u32 %v281, 4294901760
        %v637 = vsub.f32 %v281, %v636
        %v638 = vand.u32 %v637, 4294901760
        %639 = vmatmul.mubr.f32.gmra.mxu0 %v638
        %v640 = vpop.f32.mrf.mxu0
        %v641 = vadd.f32 %v552, %v640
        %v642 = vpop.f32.mrf.mxu0
        %643 = vmatprep.mubr.f32.mxu0 0.0
        %v644 = vand.u32 %v284, 4294901760
        %v645 = vsub.f32 %v284, %v644
        %v646 = vand.u32 %v645, 4294901760
        %647 = vmatmul.mubr.f32.gmra.mxu0 %v646
        %v648 = vpop.f32.mrf.mxu0
        %v649 = vadd.f32 %v559, %v648
        %v650 = vpop.f32.mrf.mxu0
        %651 = vmatprep.mubr.f32.mxu0 0.0
        %v652 = vand.u32 %v287, 4294901760
        %v653 = vsub.f32 %v287, %v652
        %v654 = vand.u32 %v653, 4294901760
        %655 = vmatmul.mubr.f32.gmra.mxu0 %v654
        %v656 = vpop.f32.mrf.mxu0
        %v657 = vadd.f32 %v566, %v656
        %v658 = vpop.f32.mrf.mxu0
        %659 = vdwg.mxu0
        %660 = vmatprep.subr.mxu0 0.0
        %661 = vmatpush1.msra.mxu0 0.0
        %662 = vmatprep.subr.mxu0 0.0
        %663 = vmatpush1.msra.mxu0 0.0
        %664 = vmatprep.subr.mxu0 0.0
        %665 = vmatpush1.msra.mxu0 0.0
        %666 = vmatprep.subr.mxu0 0.0
        %667 = vmatpush1.msra.mxu0 0.0
        %668 = vmatprep.subr.mxu0 0.0
        %669 = vmatpush1.msra.mxu0 0.0
        %670 = vmatprep.subr.mxu0 0.0
        %671 = vmatpush1.msra.mxu0 0.0
        %672 = vmatprep.subr.mxu0 0.0
        %673 = vmatpush1.msra.mxu0 0.0
        %674 = vmatprep.subr.mxu0 0.0
        %675 = vmatpush1.msra.mxu0 0.0
        %676 = vmatprep.subr.mxu0 0.0
        %677 = vmatpush1.msra.mxu0 0.0
        %678 = vmatprep.subr.mxu0 0.0
        %679 = vmatpush1.msra.mxu0 0.0
        %680 = vmatprep.subr.mxu0 0.0
        %681 = vmatpush1.msra.mxu0 0.0
        %682 = vmatprep.subr.mxu0 0.0
        %683 = vmatpush1.msra.mxu0 0.0
        %684 = vmatprep.subr.mxu0 0.0
        %685 = vmatpush1.msra.mxu0 0.0
        %686 = vmatprep.subr.mxu0 0.0
        %687 = vmatpush1.msra.mxu0 0.0
        %688 = vmatprep.subr.mxu0 0.0
        %v689 = vand.u32 %v278, 4294901760
        %v690 = vsub.f32 %v278, %v689
        %v691 = vand.u32 %v690, 4294901760
        %692 = vmatpush1.msra.mxu0 %v691
        %693 = vmatprep.subr.mxu0 0.0
        %v694 = vand.u32 %v277, 4294901760
        %v695 = vsub.f32 %v277, %v694
        %v696 = vand.u32 %v695, 4294901760
        %697 = vmatpush1.msra.mxu0 %v696
        %698 = vmatprep.subr.mxu0 0.0
        %699 = vmatpush2.msra.mxu0 0.0
        %700 = vmatprep.subr.mxu0 0.0
        %701 = vmatpush2.msra.mxu0 0.0
        %702 = vmatprep.subr.mxu0 0.0
        %703 = vmatpush2.msra.mxu0 0.0
        %704 = vmatprep.subr.mxu0 0.0
        %705 = vmatpush2.msra.mxu0 0.0
        %706 = vmatprep.subr.mxu0 0.0
        %707 = vmatpush2.msra.mxu0 0.0
        %708 = vmatprep.subr.mxu0 0.0
        %709 = vmatpush2.msra.mxu0 0.0
        %710 = vmatprep.subr.mxu0 0.0
        %711 = vmatpush2.msra.mxu0 0.0
        %712 = vmatprep.subr.mxu0 0.0
        %713 = vmatpush2.msra.mxu0 0.0
        %714 = vmatprep.subr.mxu0 0.0
        %715 = vmatpush2.msra.mxu0 0.0
        %716 = vmatprep.subr.mxu0 0.0
        %717 = vmatpush2.msra.mxu0 0.0
        %718 = vmatprep.subr.mxu0 0.0
        %719 = vmatpush2.msra.mxu0 0.0
        %720 = vmatprep.subr.mxu0 0.0
        %721 = vmatpush2.msra.mxu0 0.0
        %722 = vmatprep.subr.mxu0 0.0
        %723 = vmatpush2.msra.mxu0 0.0
        %724 = vmatprep.subr.mxu0 0.0
        %725 = vmatpush2.msra.mxu0 0.0
        %726 = vmatprep.subr.mxu0 0.0
        %727 = vmatpush2.msra.mxu0 0.0
        %728 = vmatprep.subr.mxu0 0.0
        %729 = vmatpush2.msra.mxu0 0.0
        %730 = vmatprep.mubr.f32.mxu0 0.0
        %v731 = vand.u32 %v281, 4294901760
        %732 = vmatmul.mubr.f32.gmra.mxu0 %v731
        %v733 = vpop.f32.mrf.mxu0
        %v734 = vadd.f32 %v641, %v733
        %v735 = vpop.f32.mrf.mxu0
        %736 = vmatprep.mubr.f32.mxu0 0.0
        %v737 = vand.u32 %v284, 4294901760
        %738 = vmatmul.mubr.f32.gmra.mxu0 %v737
        %v739 = vpop.f32.mrf.mxu0
        %v740 = vadd.f32 %v649, %v739
        %v741 = vpop.f32.mrf.mxu0
        %742 = vmatprep.mubr.f32.mxu0 0.0
        %v743 = vand.u32 %v287, 4294901760
        %744 = vmatmul.mubr.f32.gmra.mxu0 %v743
        %v745 = vpop.f32.mrf.mxu0
        %v746 = vadd.f32 %v657, %v745
        %v747 = vpop.f32.mrf.mxu0
        %748 = vdwg.mxu0
        %749 = vmatprep.subr.mxu0 0.0
        %750 = vmatpush1.msra.mxu0 0.0
        %751 = vmatprep.subr.mxu0 0.0
        %752 = vmatpush1.msra.mxu0 0.0
        %753 = vmatprep.subr.mxu0 0.0
        %754 = vmatpush1.msra.mxu0 0.0
        %755 = vmatprep.subr.mxu0 0.0
        %756 = vmatpush1.msra.mxu0 0.0
        %757 = vmatprep.subr.mxu0 0.0
        %758 = vmatpush1.msra.mxu0 0.0
        %759 = vmatprep.subr.mxu0 0.0
        %760 = vmatpush1.msra.mxu0 0.0
        %761 = vmatprep.subr.mxu0 0.0
        %762 = vmatpush1.msra.mxu0 0.0
        %763 = vmatprep.subr.mxu0 0.0
        %764 = vmatpush1.msra.mxu0 0.0
        %765 = vmatprep.subr.mxu0 0.0
        %766 = vmatpush1.msra.mxu0 0.0
        %767 = vmatprep.subr.mxu0 0.0
        %768 = vmatpush1.msra.mxu0 0.0
        %769 = vmatprep.subr.mxu0 0.0
        %770 = vmatpush1.msra.mxu0 0.0
        %771 = vmatprep.subr.mxu0 0.0
        %772 = vmatpush1.msra.mxu0 0.0
        %773 = vmatprep.subr.mxu0 0.0
        %774 = vmatpush1.msra.mxu0 0.0
        %775 = vmatprep.subr.mxu0 0.0
        %776 = vmatpush1.msra.mxu0 0.0
        %777 = vmatprep.subr.mxu0 0.0
        %v778 = vand.u32 %v278, 4294901760
        %779 = vmatpush1.msra.mxu0 %v778
        %780 = vmatprep.subr.mxu0 0.0
        %v781 = vand.u32 %v277, 4294901760
        %782 = vmatpush1.msra.mxu0 %v781
        %783 = vmatprep.subr.mxu0 0.0
        %784 = vmatpush2.msra.mxu0 0.0
        %785 = vmatprep.subr.mxu0 0.0
        %786 = vmatpush2.msra.mxu0 0.0
        %787 = vmatprep.subr.mxu0 0.0
        %788 = vmatpush2.msra.mxu0 0.0
        %789 = vmatprep.subr.mxu0 0.0
        %790 = vmatpush2.msra.mxu0 0.0
        %791 = vmatprep.subr.mxu0 0.0
        %792 = vmatpush2.msra.mxu0 0.0
        %793 = vmatprep.subr.mxu0 0.0
        %794 = vmatpush2.msra.mxu0 0.0
        %795 = vmatprep.subr.mxu0 0.0
        %796 = vmatpush2.msra.mxu0 0.0
        %797 = vmatprep.subr.mxu0 0.0
        %798 = vmatpush2.msra.mxu0 0.0
        %799 = vmatprep.subr.mxu0 0.0
        %800 = vmatpush2.msra.mxu0 0.0
        %801 = vmatprep.subr.mxu0 0.0
        %802 = vmatpush2.msra.mxu0 0.0
        %803 = vmatprep.subr.mxu0 0.0
        %804 = vmatpush2.msra.mxu0 0.0
        %805 = vmatprep.subr.mxu0 0.0
        %806 = vmatpush2.msra.mxu0 0.0
        %807 = vmatprep.subr.mxu0 0.0
        %808 = vmatpush2.msra.mxu0 0.0
        %809 = vmatprep.subr.mxu0 0.0
        %810 = vmatpush2.msra.mxu0 0.0
        %811 = vmatprep.subr.mxu0 0.0
        %812 = vmatpush2.msra.mxu0 0.0
        %813 = vmatprep.subr.mxu0 0.0
        %814 = vmatpush2.msra.mxu0 0.0
        %815 = vmatprep.mubr.f32.mxu0 0.0
        %v816 = vand.u32 %v281, 4294901760
        %817 = vmatmul.mubr.f32.gmra.mxu0 %v816
        %v818 = vpop.f32.mrf.mxu0
        %v819 = vadd.f32 %v734, %v818
        %v820 = vpop.f32.mrf.mxu0
        %821 = vmatprep.mubr.f32.mxu0 0.0
        %v822 = vand.u32 %v284, 4294901760
        %823 = vmatmul.mubr.f32.gmra.mxu0 %v822
        %v824 = vpop.f32.mrf.mxu0
        %v825 = vadd.f32 %v740, %v824
        %v826 = vpop.f32.mrf.mxu0
        %827 = vmatprep.mubr.f32.mxu0 0.0
        %v828 = vand.u32 %v287, 4294901760
        %829 = vmatmul.mubr.f32.gmra.mxu0 %v828
        %v830 = vpop.f32.mrf.mxu0
        %v831 = vadd.f32 %v746, %v830
        %v832 = vpop.f32.mrf.mxu0
        %833 = vdwg.mxu0
        %v835 = vsel %vm279, %v819, 0
        %v838 = vsel %vm279, %v825, 0
        %v841 = vsel %vm279, %v831, 0
        %843 = vmatprep.subr.mxu0 0.0
        %844 = vmatpush1.msra.mxu0 0.0
        %845 = vmatprep.subr.mxu0 0.0
        %846 = vmatpush1.msra.mxu0 0.0
        %847 = vmatprep.subr.mxu0 0.0
        %848 = vmatpush1.msra.mxu0 0.0
        %849 = vmatprep.subr.mxu0 0.0
        %850 = vmatpush1.msra.mxu0 0.0
        %851 = vmatprep.subr.mxu0 0.0
        %852 = vmatpush1.msra.mxu0 0.0
        %853 = vmatprep.subr.mxu0 0.0
        %854 = vmatpush1.msra.mxu0 0.0
        %855 = vmatprep.subr.mxu0 0.0
        %856 = vmatpush1.msra.mxu0 0.0
        %857 = vmatprep.subr.mxu0 0.0
        %858 = vmatpush1.msra.mxu0 0.0
        %859 = vmatprep.subr.mxu0 0.0
        %860 = vmatpush1.msra.mxu0 0.0
        %861 = vmatprep.subr.mxu0 0.0
        %862 = vmatpush1.msra.mxu0 0.0
        %863 = vmatprep.subr.mxu0 0.0
        %864 = vmatpush1.msra.mxu0 0.0
        %865 = vmatprep.subr.mxu0 0.0
        %866 = vmatpush1.msra.mxu0 0.0
        %867 = vmatprep.subr.mxu0 0.0
        %868 = vmatpush1.msra.mxu0 0.0
        %869 = vmatprep.subr.mxu0 0.0
        %870 = vmatpush1.msra.mxu0 0.0
        %871 = vmatprep.subr.mxu0 0.0
        %v872 = vand.u32 %v276, 4294901760
        %873 = vmatpush1.msra.mxu0 %v872
        %874 = vmatprep.subr.mxu0 0.0
        %v875 = vand.u32 %v275, 4294901760
        %876 = vmatpush1.msra.mxu0 %v875
        %877 = vmatprep.subr.mxu0 0.0
        %878 = vmatpush2.msra.mxu0 0.0
        %879 = vmatprep.subr.mxu0 0.0
        %880 = vmatpush2.msra.mxu0 0.0
        %881 = vmatprep.subr.mxu0 0.0
        %882 = vmatpush2.msra.mxu0 0.0
        %883 = vmatprep.subr.mxu0 0.0
        %884 = vmatpush2.msra.mxu0 0.0
        %885 = vmatprep.subr.mxu0 0.0
        %886 = vmatpush2.msra.mxu0 0.0
        %887 = vmatprep.subr.mxu0 0.0
        %888 = vmatpush2.msra.mxu0 0.0
        %889 = vmatprep.subr.mxu0 0.0
        %890 = vmatpush2.msra.mxu0 0.0
        %891 = vmatprep.subr.mxu0 0.0
        %892 = vmatpush2.msra.mxu0 0.0
        %893 = vmatprep.subr.mxu0 0.0
        %894 = vmatpush2.msra.mxu0 0.0
        %895 = vmatprep.subr.mxu0 0.0
        %896 = vmatpush2.msra.mxu0 0.0
        %897 = vmatprep.subr.mxu0 0.0
        %898 = vmatpush2.msra.mxu0 0.0
        %899 = vmatprep.subr.mxu0 0.0
        %900 = vmatpush2.msra.mxu0 0.0
        %901 = vmatprep.subr.mxu0 0.0
        %902 = vmatpush2.msra.mxu0 0.0
        %903 = vmatprep.subr.mxu0 0.0
        %904 = vmatpush2.msra.mxu0 0.0
        %905 = vmatprep.subr.mxu0 0.0
        %906 = vmatpush2.msra.mxu0 0.0
        %907 = vmatprep.subr.mxu0 0.0
        %908 = vmatpush2.msra.mxu0 0.0
        %909 = vmatprep.mubr.f32.mxu0 0.0
        %v910 = vand.u32 %v835, 4294901760
        %v911 = vsub.f32 %v835, %v910
        %v912 = vand.u32 %v911, 4294901760
        %v913 = vsub.f32 %v911, %v912
        %v914 = vand.u32 %v913, 4294901760
        %915 = vmatmul.mubr.f32.gmra.mxu0 %v914
        %v916 = vpop.f32.mrf.mxu0
        %v917 = vadd.f32 0.0, %v916
        %v918 = vpop.f32.mrf.mxu0
        %919 = vmatprep.mubr.f32.mxu0 0.0
        %v920 = vand.u32 %v838, 4294901760
        %v921 = vsub.f32 %v838, %v920
        %v922 = vand.u32 %v921, 4294901760
        %v923 = vsub.f32 %v921, %v922
        %v924 = vand.u32 %v923, 4294901760
        %925 = vmatmul.mubr.f32.gmra.mxu0 %v924
        %v926 = vpop.f32.mrf.mxu0
        %v927 = vadd.f32 0.0, %v926
        %v928 = vpop.f32.mrf.mxu0
        %929 = vmatprep.mubr.f32.mxu0 0.0
        %v930 = vand.u32 %v841, 4294901760
        %v931 = vsub.f32 %v841, %v930
        %v932 = vand.u32 %v931, 4294901760
        %v933 = vsub.f32 %v931, %v932
        %v934 = vand.u32 %v933, 4294901760
        %935 = vmatmul.mubr.f32.gmra.mxu0 %v934
        %v936 = vpop.f32.mrf.mxu0
        %v937 = vadd.f32 0.0, %v936
        %v938 = vpop.f32.mrf.mxu0
        %939 = vdwg.mxu0
        %940 = vmatprep.subr.mxu0 0.0
        %941 = vmatpush1.msra.mxu0 0.0
        %942 = vmatprep.subr.mxu0 0.0
        %943 = vmatpush1.msra.mxu0 0.0
        %944 = vmatprep.subr.mxu0 0.0
        %945 = vmatpush1.msra.mxu0 0.0
        %946 = vmatprep.subr.mxu0 0.0
        %947 = vmatpush1.msra.mxu0 0.0
        %948 = vmatprep.subr.mxu0 0.0
        %949 = vmatpush1.msra.mxu0 0.0
        %950 = vmatprep.subr.mxu0 0.0
        %951 = vmatpush1.msra.mxu0 0.0
        %952 = vmatprep.subr.mxu0 0.0
        %953 = vmatpush1.msra.mxu0 0.0
        %954 = vmatprep.subr.mxu0 0.0
        %955 = vmatpush1.msra.mxu0 0.0
        %956 = vmatprep.subr.mxu0 0.0
        %957 = vmatpush1.msra.mxu0 0.0
        %958 = vmatprep.subr.mxu0 0.0
        %959 = vmatpush1.msra.mxu0 0.0
        %960 = vmatprep.subr.mxu0 0.0
        %961 = vmatpush1.msra.mxu0 0.0
        %962 = vmatprep.subr.mxu0 0.0
        %963 = vmatpush1.msra.mxu0 0.0
        %964 = vmatprep.subr.mxu0 0.0
        %965 = vmatpush1.msra.mxu0 0.0
        %966 = vmatprep.subr.mxu0 0.0
        %967 = vmatpush1.msra.mxu0 0.0
        %968 = vmatprep.subr.mxu0 0.0
        %v969 = vand.u32 %v276, 4294901760
        %v970 = vsub.f32 %v276, %v969
        %v971 = vand.u32 %v970, 4294901760
        %v972 = vsub.f32 %v970, %v971
        %v973 = vand.u32 %v972, 4294901760
        %974 = vmatpush1.msra.mxu0 %v973
        %975 = vmatprep.subr.mxu0 0.0
        %v976 = vand.u32 %v275, 4294901760
        %v977 = vsub.f32 %v275, %v976
        %v978 = vand.u32 %v977, 4294901760
        %v979 = vsub.f32 %v977, %v978
        %v980 = vand.u32 %v979, 4294901760
        %981 = vmatpush1.msra.mxu0 %v980
        %982 = vmatprep.subr.mxu0 0.0
        %983 = vmatpush2.msra.mxu0 0.0
        %984 = vmatprep.subr.mxu0 0.0
        %985 = vmatpush2.msra.mxu0 0.0
        %986 = vmatprep.subr.mxu0 0.0
        %987 = vmatpush2.msra.mxu0 0.0
        %988 = vmatprep.subr.mxu0 0.0
        %989 = vmatpush2.msra.mxu0 0.0
        %990 = vmatprep.subr.mxu0 0.0
        %991 = vmatpush2.msra.mxu0 0.0
        %992 = vmatprep.subr.mxu0 0.0
        %993 = vmatpush2.msra.mxu0 0.0
        %994 = vmatprep.subr.mxu0 0.0
        %995 = vmatpush2.msra.mxu0 0.0
        %996 = vmatprep.subr.mxu0 0.0
        %997 = vmatpush2.msra.mxu0 0.0
        %998 = vmatprep.subr.mxu0 0.0
        %999 = vmatpush2.msra.mxu0 0.0
        %1000 = vmatprep.subr.mxu0 0.0
        %1001 = vmatpush2.msra.mxu0 0.0
        %1002 = vmatprep.subr.mxu0 0.0
        %1003 = vmatpush2.msra.mxu0 0.0
        %1004 = vmatprep.subr.mxu0 0.0
        %1005 = vmatpush2.msra.mxu0 0.0
        %1006 = vmatprep.subr.mxu0 0.0
        %1007 = vmatpush2.msra.mxu0 0.0
        %1008 = vmatprep.subr.mxu0 0.0
        %1009 = vmatpush2.msra.mxu0 0.0
        %1010 = vmatprep.subr.mxu0 0.0
        %1011 = vmatpush2.msra.mxu0 0.0
        %1012 = vmatprep.subr.mxu0 0.0
        %1013 = vmatpush2.msra.mxu0 0.0
        %1014 = vmatprep.mubr.f32.mxu0 0.0
        %v1015 = vand.u32 %v835, 4294901760
        %1016 = vmatmul.mubr.f32.gmra.mxu0 %v1015
        %v1017 = vpop.f32.mrf.mxu0
        %v1018 = vadd.f32 %v917, %v1017
        %v1019 = vpop.f32.mrf.mxu0
        %1020 = vmatprep.mubr.f32.mxu0 0.0
        %v1021 = vand.u32 %v838, 4294901760
        %1022 = vmatmul.mubr.f32.gmra.mxu0 %v1021
        %v1023 = vpop.f32.mrf.mxu0
        %v1024 = vadd.f32 %v927, %v1023
        %v1025 = vpop.f32.mrf.mxu0
        %1026 = vmatprep.mubr.f32.mxu0 0.0
        %v1027 = vand.u32 %v841, 4294901760
        %1028 = vmatmul.mubr.f32.gmra.mxu0 %v1027
        %v1029 = vpop.f32.mrf.mxu0
        %v1030 = vadd.f32 %v937, %v1029
        %v1031 = vpop.f32.mrf.mxu0
        %1032 = vdwg.mxu0
        %1033 = vmatprep.subr.mxu0 0.0
        %1034 = vmatpush1.msra.mxu0 0.0
        %1035 = vmatprep.subr.mxu0 0.0
        %1036 = vmatpush1.msra.mxu0 0.0
        %1037 = vmatprep.subr.mxu0 0.0
        %1038 = vmatpush1.msra.mxu0 0.0
        %1039 = vmatprep.subr.mxu0 0.0
        %1040 = vmatpush1.msra.mxu0 0.0
        %1041 = vmatprep.subr.mxu0 0.0
        %1042 = vmatpush1.msra.mxu0 0.0
        %1043 = vmatprep.subr.mxu0 0.0
        %1044 = vmatpush1.msra.mxu0 0.0
        %1045 = vmatprep.subr.mxu0 0.0
        %1046 = vmatpush1.msra.mxu0 0.0
        %1047 = vmatprep.subr.mxu0 0.0
        %1048 = vmatpush1.msra.mxu0 0.0
        %1049 = vmatprep.subr.mxu0 0.0
        %1050 = vmatpush1.msra.mxu0 0.0
        %1051 = vmatprep.subr.mxu0 0.0
        %1052 = vmatpush1.msra.mxu0 0.0
        %1053 = vmatprep.subr.mxu0 0.0
        %1054 = vmatpush1.msra.mxu0 0.0
        %1055 = vmatprep.subr.mxu0 0.0
        %1056 = vmatpush1.msra.mxu0 0.0
        %1057 = vmatprep.subr.mxu0 0.0
        %1058 = vmatpush1.msra.mxu0 0.0
        %1059 = vmatprep.subr.mxu0 0.0
        %1060 = vmatpush1.msra.mxu0 0.0
        %1061 = vmatprep.subr.mxu0 0.0
        %v1062 = vand.u32 %v276, 4294901760
        %v1063 = vsub.f32 %v276, %v1062
        %1064 = vmatpush1.msra.mxu0 %v1063
        %1065 = vmatprep.subr.mxu0 0.0
        %v1066 = vand.u32 %v275, 4294901760
        %v1067 = vsub.f32 %v275, %v1066
        %1068 = vmatpush1.msra.mxu0 %v1067
        %1069 = vmatprep.subr.mxu0 0.0
        %1070 = vmatpush2.msra.mxu0 0.0
        %1071 = vmatprep.subr.mxu0 0.0
        %1072 = vmatpush2.msra.mxu0 0.0
        %1073 = vmatprep.subr.mxu0 0.0
        %1074 = vmatpush2.msra.mxu0 0.0
        %1075 = vmatprep.subr.mxu0 0.0
        %1076 = vmatpush2.msra.mxu0 0.0
        %1077 = vmatprep.subr.mxu0 0.0
        %1078 = vmatpush2.msra.mxu0 0.0
        %1079 = vmatprep.subr.mxu0 0.0
        %1080 = vmatpush2.msra.mxu0 0.0
        %1081 = vmatprep.subr.mxu0 0.0
        %1082 = vmatpush2.msra.mxu0 0.0
        %1083 = vmatprep.subr.mxu0 0.0
        %1084 = vmatpush2.msra.mxu0 0.0
        %1085 = vmatprep.subr.mxu0 0.0
        %1086 = vmatpush2.msra.mxu0 0.0
        %1087 = vmatprep.subr.mxu0 0.0
        %1088 = vmatpush2.msra.mxu0 0.0
        %1089 = vmatprep.subr.mxu0 0.0
        %1090 = vmatpush2.msra.mxu0 0.0
        %1091 = vmatprep.subr.mxu0 0.0
        %1092 = vmatpush2.msra.mxu0 0.0
        %1093 = vmatprep.subr.mxu0 0.0
        %1094 = vmatpush2.msra.mxu0 0.0
        %1095 = vmatprep.subr.mxu0 0.0
        %1096 = vmatpush2.msra.mxu0 0.0
        %1097 = vmatprep.subr.mxu0 0.0
        %1098 = vmatpush2.msra.mxu0 0.0
        %1099 = vmatprep.subr.mxu0 0.0
        %1100 = vmatpush2.msra.mxu0 0.0
        %1101 = vmatprep.mubr.f32.mxu0 0.0
        %v1102 = vand.u32 %v835, 4294901760
        %v1103 = vsub.f32 %v835, %v1102
        %1104 = vmatmul.mubr.f32.gmra.mxu0 %v1103
        %v1105 = vpop.f32.mrf.mxu0
        %v1106 = vadd.f32 %v1018, %v1105
        %v1107 = vpop.f32.mrf.mxu0
        %1108 = vmatprep.mubr.f32.mxu0 0.0
        %v1109 = vand.u32 %v838, 4294901760
        %v1110 = vsub.f32 %v838, %v1109
        %1111 = vmatmul.mubr.f32.gmra.mxu0 %v1110
        %v1112 = vpop.f32.mrf.mxu0
        %v1113 = vadd.f32 %v1024, %v1112
        %v1114 = vpop.f32.mrf.mxu0
        %1115 = vmatprep.mubr.f32.mxu0 0.0
        %v1116 = vand.u32 %v841, 4294901760
        %v1117 = vsub.f32 %v841, %v1116
        %1118 = vmatmul.mubr.f32.gmra.mxu0 %v1117
        %v1119 = vpop.f32.mrf.mxu0
        %v1120 = vadd.f32 %v1030, %v1119
        %v1121 = vpop.f32.mrf.mxu0
        %1122 = vdwg.mxu0
        %1123 = vmatprep.subr.mxu0 0.0
        %1124 = vmatpush1.msra.mxu0 0.0
        %1125 = vmatprep.subr.mxu0 0.0
        %1126 = vmatpush1.msra.mxu0 0.0
        %1127 = vmatprep.subr.mxu0 0.0
        %1128 = vmatpush1.msra.mxu0 0.0
        %1129 = vmatprep.subr.mxu0 0.0
        %1130 = vmatpush1.msra.mxu0 0.0
        %1131 = vmatprep.subr.mxu0 0.0
        %1132 = vmatpush1.msra.mxu0 0.0
        %1133 = vmatprep.subr.mxu0 0.0
        %1134 = vmatpush1.msra.mxu0 0.0
        %1135 = vmatprep.subr.mxu0 0.0
        %1136 = vmatpush1.msra.mxu0 0.0
        %1137 = vmatprep.subr.mxu0 0.0
        %1138 = vmatpush1.msra.mxu0 0.0
        %1139 = vmatprep.subr.mxu0 0.0
        %1140 = vmatpush1.msra.mxu0 0.0
        %1141 = vmatprep.subr.mxu0 0.0
        %1142 = vmatpush1.msra.mxu0 0.0
        %1143 = vmatprep.subr.mxu0 0.0
        %1144 = vmatpush1.msra.mxu0 0.0
        %1145 = vmatprep.subr.mxu0 0.0
        %1146 = vmatpush1.msra.mxu0 0.0
        %1147 = vmatprep.subr.mxu0 0.0
        %1148 = vmatpush1.msra.mxu0 0.0
        %1149 = vmatprep.subr.mxu0 0.0
        %1150 = vmatpush1.msra.mxu0 0.0
        %1151 = vmatprep.subr.mxu0 0.0
        %v1152 = vand.u32 %v276, 4294901760
        %1153 = vmatpush1.msra.mxu0 %v1152
        %1154 = vmatprep.subr.mxu0 0.0
        %v1155 = vand.u32 %v275, 4294901760
        %1156 = vmatpush1.msra.mxu0 %v1155
        %1157 = vmatprep.subr.mxu0 0.0
        %1158 = vmatpush2.msra.mxu0 0.0
        %1159 = vmatprep.subr.mxu0 0.0
        %1160 = vmatpush2.msra.mxu0 0.0
        %1161 = vmatprep.subr.mxu0 0.0
        %1162 = vmatpush2.msra.mxu0 0.0
        %1163 = vmatprep.subr.mxu0 0.0
        %1164 = vmatpush2.msra.mxu0 0.0
        %1165 = vmatprep.subr.mxu0 0.0
        %1166 = vmatpush2.msra.mxu0 0.0
        %1167 = vmatprep.subr.mxu0 0.0
        %1168 = vmatpush2.msra.mxu0 0.0
        %1169 = vmatprep.subr.mxu0 0.0
        %1170 = vmatpush2.msra.mxu0 0.0
        %1171 = vmatprep.subr.mxu0 0.0
        %1172 = vmatpush2.msra.mxu0 0.0
        %1173 = vmatprep.subr.mxu0 0.0
        %1174 = vmatpush2.msra.mxu0 0.0
        %1175 = vmatprep.subr.mxu0 0.0
        %1176 = vmatpush2.msra.mxu0 0.0
        %1177 = vmatprep.subr.mxu0 0.0
        %1178 = vmatpush2.msra.mxu0 0.0
        %1179 = vmatprep.subr.mxu0 0.0
        %1180 = vmatpush2.msra.mxu0 0.0
        %1181 = vmatprep.subr.mxu0 0.0
        %1182 = vmatpush2.msra.mxu0 0.0
        %1183 = vmatprep.subr.mxu0 0.0
        %1184 = vmatpush2.msra.mxu0 0.0
        %1185 = vmatprep.subr.mxu0 0.0
        %1186 = vmatpush2.msra.mxu0 0.0
        %1187 = vmatprep.subr.mxu0 0.0
        %1188 = vmatpush2.msra.mxu0 0.0
        %1189 = vmatprep.mubr.f32.mxu0 0.0
        %v1190 = vand.u32 %v835, 4294901760
        %v1191 = vsub.f32 %v835, %v1190
        %v1192 = vand.u32 %v1191, 4294901760
        %1193 = vmatmul.mubr.f32.gmra.mxu0 %v1192
        %v1194 = vpop.f32.mrf.mxu0
        %v1195 = vadd.f32 %v1106, %v1194
        %v1196 = vpop.f32.mrf.mxu0
        %1197 = vmatprep.mubr.f32.mxu0 0.0
        %v1198 = vand.u32 %v838, 4294901760
        %v1199 = vsub.f32 %v838, %v1198
        %v1200 = vand.u32 %v1199, 4294901760
        %1201 = vmatmul.mubr.f32.gmra.mxu0 %v1200
        %v1202 = vpop.f32.mrf.mxu0
        %v1203 = vadd.f32 %v1113, %v1202
        %v1204 = vpop.f32.mrf.mxu0
        %1205 = vmatprep.mubr.f32.mxu0 0.0
        %v1206 = vand.u32 %v841, 4294901760
        %v1207 = vsub.f32 %v841, %v1206
        %v1208 = vand.u32 %v1207, 4294901760
        %1209 = vmatmul.mubr.f32.gmra.mxu0 %v1208
        %v1210 = vpop.f32.mrf.mxu0
        %v1211 = vadd.f32 %v1120, %v1210
        %v1212 = vpop.f32.mrf.mxu0
        %1213 = vdwg.mxu0
        %1214 = vmatprep.subr.mxu0 0.0
        %1215 = vmatpush1.msra.mxu0 0.0
        %1216 = vmatprep.subr.mxu0 0.0
        %1217 = vmatpush1.msra.mxu0 0.0
        %1218 = vmatprep.subr.mxu0 0.0
        %1219 = vmatpush1.msra.mxu0 0.0
        %1220 = vmatprep.subr.mxu0 0.0
        %1221 = vmatpush1.msra.mxu0 0.0
        %1222 = vmatprep.subr.mxu0 0.0
        %1223 = vmatpush1.msra.mxu0 0.0
        %1224 = vmatprep.subr.mxu0 0.0
        %1225 = vmatpush1.msra.mxu0 0.0
        %1226 = vmatprep.subr.mxu0 0.0
        %1227 = vmatpush1.msra.mxu0 0.0
        %1228 = vmatprep.subr.mxu0 0.0
        %1229 = vmatpush1.msra.mxu0 0.0
        %1230 = vmatprep.subr.mxu0 0.0
        %1231 = vmatpush1.msra.mxu0 0.0
        %1232 = vmatprep.subr.mxu0 0.0
        %1233 = vmatpush1.msra.mxu0 0.0
        %1234 = vmatprep.subr.mxu0 0.0
        %1235 = vmatpush1.msra.mxu0 0.0
        %1236 = vmatprep.subr.mxu0 0.0
        %1237 = vmatpush1.msra.mxu0 0.0
        %1238 = vmatprep.subr.mxu0 0.0
        %1239 = vmatpush1.msra.mxu0 0.0
        %1240 = vmatprep.subr.mxu0 0.0
        %1241 = vmatpush1.msra.mxu0 0.0
        %1242 = vmatprep.subr.mxu0 0.0
        %v1243 = vand.u32 %v276, 4294901760
        %v1244 = vsub.f32 %v276, %v1243
        %v1245 = vand.u32 %v1244, 4294901760
        %1246 = vmatpush1.msra.mxu0 %v1245
        %1247 = vmatprep.subr.mxu0 0.0
        %v1248 = vand.u32 %v275, 4294901760
        %v1249 = vsub.f32 %v275, %v1248
        %v1250 = vand.u32 %v1249, 4294901760
        %1251 = vmatpush1.msra.mxu0 %v1250
        %1252 = vmatprep.subr.mxu0 0.0
        %1253 = vmatpush2.msra.mxu0 0.0
        %1254 = vmatprep.subr.mxu0 0.0
        %1255 = vmatpush2.msra.mxu0 0.0
        %1256 = vmatprep.subr.mxu0 0.0
        %1257 = vmatpush2.msra.mxu0 0.0
        %1258 = vmatprep.subr.mxu0 0.0
        %1259 = vmatpush2.msra.mxu0 0.0
        %1260 = vmatprep.subr.mxu0 0.0
        %1261 = vmatpush2.msra.mxu0 0.0
        %1262 = vmatprep.subr.mxu0 0.0
        %1263 = vmatpush2.msra.mxu0 0.0
        %1264 = vmatprep.subr.mxu0 0.0
        %1265 = vmatpush2.msra.mxu0 0.0
        %1266 = vmatprep.subr.mxu0 0.0
        %1267 = vmatpush2.msra.mxu0 0.0
        %1268 = vmatprep.subr.mxu0 0.0
        %1269 = vmatpush2.msra.mxu0 0.0
        %1270 = vmatprep.subr.mxu0 0.0
        %1271 = vmatpush2.msra.mxu0 0.0
        %1272 = vmatprep.subr.mxu0 0.0
        %1273 = vmatpush2.msra.mxu0 0.0
        %1274 = vmatprep.subr.mxu0 0.0
        %1275 = vmatpush2.msra.mxu0 0.0
        %1276 = vmatprep.subr.mxu0 0.0
        %1277 = vmatpush2.msra.mxu0 0.0
        %1278 = vmatprep.subr.mxu0 0.0
        %1279 = vmatpush2.msra.mxu0 0.0
        %1280 = vmatprep.subr.mxu0 0.0
        %1281 = vmatpush2.msra.mxu0 0.0
        %1282 = vmatprep.subr.mxu0 0.0
        %1283 = vmatpush2.msra.mxu0 0.0
        %1284 = vmatprep.mubr.f32.mxu0 0.0
        %v1285 = vand.u32 %v835, 4294901760
        %1286 = vmatmul.mubr.f32.gmra.mxu0 %v1285
        %v1287 = vpop.f32.mrf.mxu0
        %v1288 = vadd.f32 %v1195, %v1287
        %v1289 = vpop.f32.mrf.mxu0
        %1290 = vmatprep.mubr.f32.mxu0 0.0
        %v1291 = vand.u32 %v838, 4294901760
        %1292 = vmatmul.mubr.f32.gmra.mxu0 %v1291
        %v1293 = vpop.f32.mrf.mxu0
        %v1294 = vadd.f32 %v1203, %v1293
        %v1295 = vpop.f32.mrf.mxu0
        %1296 = vmatprep.mubr.f32.mxu0 0.0
        %v1297 = vand.u32 %v841, 4294901760
        %1298 = vmatmul.mubr.f32.gmra.mxu0 %v1297
        %v1299 = vpop.f32.mrf.mxu0
        %v1300 = vadd.f32 %v1211, %v1299
        %v1301 = vpop.f32.mrf.mxu0
        %1302 = vdwg.mxu0
        %1303 = vmatprep.subr.mxu0 0.0
        %1304 = vmatpush1.msra.mxu0 0.0
        %1305 = vmatprep.subr.mxu0 0.0
        %1306 = vmatpush1.msra.mxu0 0.0
        %1307 = vmatprep.subr.mxu0 0.0
        %1308 = vmatpush1.msra.mxu0 0.0
        %1309 = vmatprep.subr.mxu0 0.0
        %1310 = vmatpush1.msra.mxu0 0.0
        %1311 = vmatprep.subr.mxu0 0.0
        %1312 = vmatpush1.msra.mxu0 0.0
        %1313 = vmatprep.subr.mxu0 0.0
        %1314 = vmatpush1.msra.mxu0 0.0
        %1315 = vmatprep.subr.mxu0 0.0
        %1316 = vmatpush1.msra.mxu0 0.0
        %1317 = vmatprep.subr.mxu0 0.0
        %1318 = vmatpush1.msra.mxu0 0.0
        %1319 = vmatprep.subr.mxu0 0.0
        %1320 = vmatpush1.msra.mxu0 0.0
        %1321 = vmatprep.subr.mxu0 0.0
        %1322 = vmatpush1.msra.mxu0 0.0
        %1323 = vmatprep.subr.mxu0 0.0
        %1324 = vmatpush1.msra.mxu0 0.0
        %1325 = vmatprep.subr.mxu0 0.0
        %1326 = vmatpush1.msra.mxu0 0.0
        %1327 = vmatprep.subr.mxu0 0.0
        %1328 = vmatpush1.msra.mxu0 0.0
        %1329 = vmatprep.subr.mxu0 0.0
        %1330 = vmatpush1.msra.mxu0 0.0
        %1331 = vmatprep.subr.mxu0 0.0
        %v1332 = vand.u32 %v276, 4294901760
        %1333 = vmatpush1.msra.mxu0 %v1332
        %1334 = vmatprep.subr.mxu0 0.0
        %v1335 = vand.u32 %v275, 4294901760
        %1336 = vmatpush1.msra.mxu0 %v1335
        %1337 = vmatprep.subr.mxu0 0.0
        %1338 = vmatpush2.msra.mxu0 0.0
        %1339 = vmatprep.subr.mxu0 0.0
        %1340 = vmatpush2.msra.mxu0 0.0
        %1341 = vmatprep.subr.mxu0 0.0
        %1342 = vmatpush2.msra.mxu0 0.0
        %1343 = vmatprep.subr.mxu0 0.0
        %1344 = vmatpush2.msra.mxu0 0.0
        %1345 = vmatprep.subr.mxu0 0.0
        %1346 = vmatpush2.msra.mxu0 0.0
        %1347 = vmatprep.subr.mxu0 0.0
        %1348 = vmatpush2.msra.mxu0 0.0
        %1349 = vmatprep.subr.mxu0 0.0
        %1350 = vmatpush2.msra.mxu0 0.0
        %1351 = vmatprep.subr.mxu0 0.0
        %1352 = vmatpush2.msra.mxu0 0.0
        %1353 = vmatprep.subr.mxu0 0.0
        %1354 = vmatpush2.msra.mxu0 0.0
        %1355 = vmatprep.subr.mxu0 0.0
        %1356 = vmatpush2.msra.mxu0 0.0
        %1357 = vmatprep.subr.mxu0 0.0
        %1358 = vmatpush2.msra.mxu0 0.0
        %1359 = vmatprep.subr.mxu0 0.0
        %1360 = vmatpush2.msra.mxu0 0.0
        %1361 = vmatprep.subr.mxu0 0.0
        %1362 = vmatpush2.msra.mxu0 0.0
        %1363 = vmatprep.subr.mxu0 0.0
        %1364 = vmatpush2.msra.mxu0 0.0
        %1365 = vmatprep.subr.mxu0 0.0
        %1366 = vmatpush2.msra.mxu0 0.0
        %1367 = vmatprep.subr.mxu0 0.0
        %1368 = vmatpush2.msra.mxu0 0.0
        %1369 = vmatprep.mubr.f32.mxu0 0.0
        %v1370 = vand.u32 %v835, 4294901760
        %1371 = vmatmul.mubr.f32.gmra.mxu0 %v1370
        %v1372 = vpop.f32.mrf.mxu0
        %v1373 = vadd.f32 %v1288, %v1372
        %v1374 = vpop.f32.mrf.mxu0
        %1375 = vmatprep.mubr.f32.mxu0 0.0
        %v1376 = vand.u32 %v838, 4294901760
        %1377 = vmatmul.mubr.f32.gmra.mxu0 %v1376
        %v1378 = vpop.f32.mrf.mxu0
        %v1379 = vadd.f32 %v1294, %v1378
        %v1380 = vpop.f32.mrf.mxu0
        %1381 = vmatprep.mubr.f32.mxu0 0.0
        %v1382 = vand.u32 %v841, 4294901760
        %1383 = vmatmul.mubr.f32.gmra.mxu0 %v1382
        %v1384 = vpop.f32.mrf.mxu0
        %v1385 = vadd.f32 %v1300, %v1384
        %v1386 = vpop.f32.mrf.mxu0
        %1387 = vdwg.mxu0
        %s1388 = scalar_lea.vmem %s231, 16 [#allocation2]
        %v1389 = vld [vmem:[%s1388] sm:$0xff]
        %v1390 = vld [vmem:[%s1388 + $0x8] sm:$0xff]
        %1391 = vmatprep.subr.mxu0 0.0
        %1392 = vmatpush1.msra.mxu0 0.0
        %1393 = vmatprep.subr.mxu0 0.0
        %1394 = vmatpush1.msra.mxu0 0.0
        %1395 = vmatprep.subr.mxu0 0.0
        %1396 = vmatpush1.msra.mxu0 0.0
        %1397 = vmatprep.subr.mxu0 0.0
        %1398 = vmatpush1.msra.mxu0 0.0
        %1399 = vmatprep.subr.mxu0 0.0
        %1400 = vmatpush1.msra.mxu0 0.0
        %1401 = vmatprep.subr.mxu0 0.0
        %1402 = vmatpush1.msra.mxu0 0.0
        %1403 = vmatprep.subr.mxu0 0.0
        %1404 = vmatpush1.msra.mxu0 0.0
        %1405 = vmatprep.subr.mxu0 0.0
        %1406 = vmatpush1.msra.mxu0 0.0
        %1407 = vmatprep.subr.mxu0 0.0
        %1408 = vmatpush1.msra.mxu0 0.0
        %1409 = vmatprep.subr.mxu0 0.0
        %1410 = vmatpush1.msra.mxu0 0.0
        %1411 = vmatprep.subr.mxu0 0.0
        %1412 = vmatpush1.msra.mxu0 0.0
        %1413 = vmatprep.subr.mxu0 0.0
        %1414 = vmatpush1.msra.mxu0 0.0
        %1415 = vmatprep.subr.mxu0 0.0
        %1416 = vmatpush1.msra.mxu0 0.0
        %1417 = vmatprep.subr.mxu0 0.0
        %1418 = vmatpush1.msra.mxu0 0.0
        %1419 = vmatprep.subr.mxu0 0.0
        %v1420 = vand.u32 %v1390, 4294901760
        %1421 = vmatpush1.msra.mxu0 %v1420
        %1422 = vmatprep.subr.mxu0 0.0
        %v1423 = vand.u32 %v1389, 4294901760
        %1424 = vmatpush1.msra.mxu0 %v1423
        %1425 = vmatprep.subr.mxu0 0.0
        %1426 = vmatpush2.msra.mxu0 0.0
        %1427 = vmatprep.subr.mxu0 0.0
        %1428 = vmatpush2.msra.mxu0 0.0
        %1429 = vmatprep.subr.mxu0 0.0
        %1430 = vmatpush2.msra.mxu0 0.0
        %1431 = vmatprep.subr.mxu0 0.0
        %1432 = vmatpush2.msra.mxu0 0.0
        %1433 = vmatprep.subr.mxu0 0.0
        %1434 = vmatpush2.msra.mxu0 0.0
        %1435 = vmatprep.subr.mxu0 0.0
        %1436 = vmatpush2.msra.mxu0 0.0
        %1437 = vmatprep.subr.mxu0 0.0
        %1438 = vmatpush2.msra.mxu0 0.0
        %1439 = vmatprep.subr.mxu0 0.0
        %1440 = vmatpush2.msra.mxu0 0.0
        %1441 = vmatprep.subr.mxu0 0.0
        %1442 = vmatpush2.msra.mxu0 0.0
        %1443 = vmatprep.subr.mxu0 0.0
        %1444 = vmatpush2.msra.mxu0 0.0
        %1445 = vmatprep.subr.mxu0 0.0
        %1446 = vmatpush2.msra.mxu0 0.0
        %1447 = vmatprep.subr.mxu0 0.0
        %1448 = vmatpush2.msra.mxu0 0.0
        %1449 = vmatprep.subr.mxu0 0.0
        %1450 = vmatpush2.msra.mxu0 0.0
        %1451 = vmatprep.subr.mxu0 0.0
        %1452 = vmatpush2.msra.mxu0 0.0
        %1453 = vmatprep.subr.mxu0 0.0
        %1454 = vmatpush2.msra.mxu0 0.0
        %1455 = vmatprep.subr.mxu0 0.0
        %1456 = vmatpush2.msra.mxu0 0.0
        %1457 = vmatprep.mubr.f32.mxu0 0.0
        %v1458 = vand.u32 %v281, 4294901760
        %v1459 = vsub.f32 %v281, %v1458
        %v1460 = vand.u32 %v1459, 4294901760
        %v1461 = vsub.f32 %v1459, %v1460
        %v1462 = vand.u32 %v1461, 4294901760
        %1463 = vmatmul.mubr.f32.gmra.mxu0 %v1462
        %v1464 = vpop.f32.mrf.mxu0
        %v1465 = vadd.f32 0.0, %v1464
        %v1466 = vpop.f32.mrf.mxu0
        %1467 = vmatprep.mubr.f32.mxu0 0.0
        %v1468 = vand.u32 %v284, 4294901760
        %v1469 = vsub.f32 %v284, %v1468
        %v1470 = vand.u32 %v1469, 4294901760
        %v1471 = vsub.f32 %v1469, %v1470
        %v1472 = vand.u32 %v1471, 4294901760
        %1473 = vmatmul.mubr.f32.gmra.mxu0 %v1472
        %v1474 = vpop.f32.mrf.mxu0
        %v1475 = vadd.f32 0.0, %v1474
        %v1476 = vpop.f32.mrf.mxu0
        %1477 = vmatprep.mubr.f32.mxu0 0.0
        %v1478 = vand.u32 %v287, 4294901760
        %v1479 = vsub.f32 %v287, %v1478
        %v1480 = vand.u32 %v1479, 4294901760
        %v1481 = vsub.f32 %v1479, %v1480
        %v1482 = vand.u32 %v1481, 4294901760
        %1483 = vmatmul.mubr.f32.gmra.mxu0 %v1482
        %v1484 = vpop.f32.mrf.mxu0
        %v1485 = vadd.f32 0.0, %v1484
        %v1486 = vpop.f32.mrf.mxu0
        %1487 = vdwg.mxu0
        %1488 = vmatprep.subr.mxu0 0.0
        %1489 = vmatpush1.msra.mxu0 0.0
        %1490 = vmatprep.subr.mxu0 0.0
        %1491 = vmatpush1.msra.mxu0 0.0
        %1492 = vmatprep.subr.mxu0 0.0
        %1493 = vmatpush1.msra.mxu0 0.0
        %1494 = vmatprep.subr.mxu0 0.0
        %1495 = vmatpush1.msra.mxu0 0.0
        %1496 = vmatprep.subr.mxu0 0.0
        %1497 = vmatpush1.msra.mxu0 0.0
        %1498 = vmatprep.subr.mxu0 0.0
        %1499 = vmatpush1.msra.mxu0 0.0
        %1500 = vmatprep.subr.mxu0 0.0
        %1501 = vmatpush1.msra.mxu0 0.0
        %1502 = vmatprep.subr.mxu0 0.0
        %1503 = vmatpush1.msra.mxu0 0.0
        %1504 = vmatprep.subr.mxu0 0.0
        %1505 = vmatpush1.msra.mxu0 0.0
        %1506 = vmatprep.subr.mxu0 0.0
        %1507 = vmatpush1.msra.mxu0 0.0
        %1508 = vmatprep.subr.mxu0 0.0
        %1509 = vmatpush1.msra.mxu0 0.0
        %1510 = vmatprep.subr.mxu0 0.0
        %1511 = vmatpush1.msra.mxu0 0.0
        %1512 = vmatprep.subr.mxu0 0.0
        %1513 = vmatpush1.msra.mxu0 0.0
        %1514 = vmatprep.subr.mxu0 0.0
        %1515 = vmatpush1.msra.mxu0 0.0
        %1516 = vmatprep.subr.mxu0 0.0
        %v1517 = vand.u32 %v1390, 4294901760
        %v1518 = vsub.f32 %v1390, %v1517
        %v1519 = vand.u32 %v1518, 4294901760
        %v1520 = vsub.f32 %v1518, %v1519
        %v1521 = vand.u32 %v1520, 4294901760
        %1522 = vmatpush1.msra.mxu0 %v1521
        %1523 = vmatprep.subr.mxu0 0.0
        %v1524 = vand.u32 %v1389, 4294901760
        %v1525 = vsub.f32 %v1389, %v1524
        %v1526 = vand.u32 %v1525, 4294901760
        %v1527 = vsub.f32 %v1525, %v1526
        %v1528 = vand.u32 %v1527, 4294901760
        %1529 = vmatpush1.msra.mxu0 %v1528
        %1530 = vmatprep.subr.mxu0 0.0
        %1531 = vmatpush2.msra.mxu0 0.0
        %1532 = vmatprep.subr.mxu0 0.0
        %1533 = vmatpush2.msra.mxu0 0.0
        %1534 = vmatprep.subr.mxu0 0.0
        %1535 = vmatpush2.msra.mxu0 0.0
        %1536 = vmatprep.subr.mxu0 0.0
        %1537 = vmatpush2.msra.mxu0 0.0
        %1538 = vmatprep.subr.mxu0 0.0
        %1539 = vmatpush2.msra.mxu0 0.0
        %1540 = vmatprep.subr.mxu0 0.0
        %1541 = vmatpush2.msra.mxu0 0.0
        %1542 = vmatprep.subr.mxu0 0.0
        %1543 = vmatpush2.msra.mxu0 0.0
        %1544 = vmatprep.subr.mxu0 0.0
        %1545 = vmatpush2.msra.mxu0 0.0
        %1546 = vmatprep.subr.mxu0 0.0
        %1547 = vmatpush2.msra.mxu0 0.0
        %1548 = vmatprep.subr.mxu0 0.0
        %1549 = vmatpush2.msra.mxu0 0.0
        %1550 = vmatprep.subr.mxu0 0.0
        %1551 = vmatpush2.msra.mxu0 0.0
        %1552 = vmatprep.subr.mxu0 0.0
        %1553 = vmatpush2.msra.mxu0 0.0
        %1554 = vmatprep.subr.mxu0 0.0
        %1555 = vmatpush2.msra.mxu0 0.0
        %1556 = vmatprep.subr.mxu0 0.0
        %1557 = vmatpush2.msra.mxu0 0.0
        %1558 = vmatprep.subr.mxu0 0.0
        %1559 = vmatpush2.msra.mxu0 0.0
        %1560 = vmatprep.subr.mxu0 0.0
        %1561 = vmatpush2.msra.mxu0 0.0
        %1562 = vmatprep.mubr.f32.mxu0 0.0
        %v1563 = vand.u32 %v281, 4294901760
        %1564 = vmatmul.mubr.f32.gmra.mxu0 %v1563
        %v1565 = vpop.f32.mrf.mxu0
        %v1566 = vadd.f32 %v1465, %v1565
        %v1567 = vpop.f32.mrf.mxu0
        %1568 = vmatprep.mubr.f32.mxu0 0.0
        %v1569 = vand.u32 %v284, 4294901760
        %1570 = vmatmul.mubr.f32.gmra.mxu0 %v1569
        %v1571 = vpop.f32.mrf.mxu0
        %v1572 = vadd.f32 %v1475, %v1571
        %v1573 = vpop.f32.mrf.mxu0
        %1574 = vmatprep.mubr.f32.mxu0 0.0
        %v1575 = vand.u32 %v287, 4294901760
        %1576 = vmatmul.mubr.f32.gmra.mxu0 %v1575
        %v1577 = vpop.f32.mrf.mxu0
        %v1578 = vadd.f32 %v1485, %v1577
        %v1579 = vpop.f32.mrf.mxu0
        %1580 = vdwg.mxu0
        %1581 = vmatprep.subr.mxu0 0.0
        %1582 = vmatpush1.msra.mxu0 0.0
        %1583 = vmatprep.subr.mxu0 0.0
        %1584 = vmatpush1.msra.mxu0 0.0
        %1585 = vmatprep.subr.mxu0 0.0
        %1586 = vmatpush1.msra.mxu0 0.0
        %1587 = vmatprep.subr.mxu0 0.0
        %1588 = vmatpush1.msra.mxu0 0.0
        %1589 = vmatprep.subr.mxu0 0.0
        %1590 = vmatpush1.msra.mxu0 0.0
        %1591 = vmatprep.subr.mxu0 0.0
        %1592 = vmatpush1.msra.mxu0 0.0
        %1593 = vmatprep.subr.mxu0 0.0
        %1594 = vmatpush1.msra.mxu0 0.0
        %1595 = vmatprep.subr.mxu0 0.0
        %1596 = vmatpush1.msra.mxu0 0.0
        %1597 = vmatprep.subr.mxu0 0.0
        %1598 = vmatpush1.msra.mxu0 0.0
        %1599 = vmatprep.subr.mxu0 0.0
        %1600 = vmatpush1.msra.mxu0 0.0
        %1601 = vmatprep.subr.mxu0 0.0
        %1602 = vmatpush1.msra.mxu0 0.0
        %1603 = vmatprep.subr.mxu0 0.0
        %1604 = vmatpush1.msra.mxu0 0.0
        %1605 = vmatprep.subr.mxu0 0.0
        %1606 = vmatpush1.msra.mxu0 0.0
        %1607 = vmatprep.subr.mxu0 0.0
        %1608 = vmatpush1.msra.mxu0 0.0
        %1609 = vmatprep.subr.mxu0 0.0
        %v1610 = vand.u32 %v1390, 4294901760
        %v1611 = vsub.f32 %v1390, %v1610
        %1612 = vmatpush1.msra.mxu0 %v1611
        %1613 = vmatprep.subr.mxu0 0.0
        %v1614 = vand.u32 %v1389, 4294901760
        %v1615 = vsub.f32 %v1389, %v1614
        %1616 = vmatpush1.msra.mxu0 %v1615
        %1617 = vmatprep.subr.mxu0 0.0
        %1618 = vmatpush2.msra.mxu0 0.0
        %1619 = vmatprep.subr.mxu0 0.0
        %1620 = vmatpush2.msra.mxu0 0.0
        %1621 = vmatprep.subr.mxu0 0.0
        %1622 = vmatpush2.msra.mxu0 0.0
        %1623 = vmatprep.subr.mxu0 0.0
        %1624 = vmatpush2.msra.mxu0 0.0
        %1625 = vmatprep.subr.mxu0 0.0
        %1626 = vmatpush2.msra.mxu0 0.0
        %1627 = vmatprep.subr.mxu0 0.0
        %1628 = vmatpush2.msra.mxu0 0.0
        %1629 = vmatprep.subr.mxu0 0.0
        %1630 = vmatpush2.msra.mxu0 0.0
        %1631 = vmatprep.subr.mxu0 0.0
        %1632 = vmatpush2.msra.mxu0 0.0
        %1633 = vmatprep.subr.mxu0 0.0
        %1634 = vmatpush2.msra.mxu0 0.0
        %1635 = vmatprep.subr.mxu0 0.0
        %1636 = vmatpush2.msra.mxu0 0.0
        %1637 = vmatprep.subr.mxu0 0.0
        %1638 = vmatpush2.msra.mxu0 0.0
        %1639 = vmatprep.subr.mxu0 0.0
        %1640 = vmatpush2.msra.mxu0 0.0
        %1641 = vmatprep.subr.mxu0 0.0
        %1642 = vmatpush2.msra.mxu0 0.0
        %1643 = vmatprep.subr.mxu0 0.0
        %1644 = vmatpush2.msra.mxu0 0.0
        %1645 = vmatprep.subr.mxu0 0.0
        %1646 = vmatpush2.msra.mxu0 0.0
        %1647 = vmatprep.subr.mxu0 0.0
        %1648 = vmatpush2.msra.mxu0 0.0
        %1649 = vmatprep.mubr.f32.mxu0 0.0
        %v1650 = vand.u32 %v281, 4294901760
        %v1651 = vsub.f32 %v281, %v1650
        %1652 = vmatmul.mubr.f32.gmra.mxu0 %v1651
        %v1653 = vpop.f32.mrf.mxu0
        %v1654 = vadd.f32 %v1566, %v1653
        %v1655 = vpop.f32.mrf.mxu0
        %1656 = vmatprep.mubr.f32.mxu0 0.0
        %v1657 = vand.u32 %v284, 4294901760
        %v1658 = vsub.f32 %v284, %v1657
        %1659 = vmatmul.mubr.f32.gmra.mxu0 %v1658
        %v1660 = vpop.f32.mrf.mxu0
        %v1661 = vadd.f32 %v1572, %v1660
        %v1662 = vpop.f32.mrf.mxu0
        %1663 = vmatprep.mubr.f32.mxu0 0.0
        %v1664 = vand.u32 %v287, 4294901760
        %v1665 = vsub.f32 %v287, %v1664
        %1666 = vmatmul.mubr.f32.gmra.mxu0 %v1665
        %v1667 = vpop.f32.mrf.mxu0
        %v1668 = vadd.f32 %v1578, %v1667
        %v1669 = vpop.f32.mrf.mxu0
        %1670 = vdwg.mxu0
        %1671 = vmatprep.subr.mxu0 0.0
        %1672 = vmatpush1.msra.mxu0 0.0
        %1673 = vmatprep.subr.mxu0 0.0
        %1674 = vmatpush1.msra.mxu0 0.0
        %1675 = vmatprep.subr.mxu0 0.0
        %1676 = vmatpush1.msra.mxu0 0.0
        %1677 = vmatprep.subr.mxu0 0.0
        %1678 = vmatpush1.msra.mxu0 0.0
        %1679 = vmatprep.subr.mxu0 0.0
        %1680 = vmatpush1.msra.mxu0 0.0
        %1681 = vmatprep.subr.mxu0 0.0
        %1682 = vmatpush1.msra.mxu0 0.0
        %1683 = vmatprep.subr.mxu0 0.0
        %1684 = vmatpush1.msra.mxu0 0.0
        %1685 = vmatprep.subr.mxu0 0.0
        %1686 = vmatpush1.msra.mxu0 0.0
        %1687 = vmatprep.subr.mxu0 0.0
        %1688 = vmatpush1.msra.mxu0 0.0
        %1689 = vmatprep.subr.mxu0 0.0
        %1690 = vmatpush1.msra.mxu0 0.0
        %1691 = vmatprep.subr.mxu0 0.0
        %1692 = vmatpush1.msra.mxu0 0.0
        %1693 = vmatprep.subr.mxu0 0.0
        %1694 = vmatpush1.msra.mxu0 0.0
        %1695 = vmatprep.subr.mxu0 0.0
        %1696 = vmatpush1.msra.mxu0 0.0
        %1697 = vmatprep.subr.mxu0 0.0
        %1698 = vmatpush1.msra.mxu0 0.0
        %1699 = vmatprep.subr.mxu0 0.0
        %v1700 = vand.u32 %v1390, 4294901760
        %1701 = vmatpush1.msra.mxu0 %v1700
        %1702 = vmatprep.subr.mxu0 0.0
        %v1703 = vand.u32 %v1389, 4294901760
        %1704 = vmatpush1.msra.mxu0 %v1703
        %1705 = vmatprep.subr.mxu0 0.0
        %1706 = vmatpush2.msra.mxu0 0.0
        %1707 = vmatprep.subr.mxu0 0.0
        %1708 = vmatpush2.msra.mxu0 0.0
        %1709 = vmatprep.subr.mxu0 0.0
        %1710 = vmatpush2.msra.mxu0 0.0
        %1711 = vmatprep.subr.mxu0 0.0
        %1712 = vmatpush2.msra.mxu0 0.0
        %1713 = vmatprep.subr.mxu0 0.0
        %1714 = vmatpush2.msra.mxu0 0.0
        %1715 = vmatprep.subr.mxu0 0.0
        %1716 = vmatpush2.msra.mxu0 0.0
        %1717 = vmatprep.subr.mxu0 0.0
        %1718 = vmatpush2.msra.mxu0 0.0
        %1719 = vmatprep.subr.mxu0 0.0
        %1720 = vmatpush2.msra.mxu0 0.0
        %1721 = vmatprep.subr.mxu0 0.0
        %1722 = vmatpush2.msra.mxu0 0.0
        %1723 = vmatprep.subr.mxu0 0.0
        %1724 = vmatpush2.msra.mxu0 0.0
        %1725 = vmatprep.subr.mxu0 0.0
        %1726 = vmatpush2.msra.mxu0 0.0
        %1727 = vmatprep.subr.mxu0 0.0
        %1728 = vmatpush2.msra.mxu0 0.0
        %1729 = vmatprep.subr.mxu0 0.0
        %1730 = vmatpush2.msra.mxu0 0.0
        %1731 = vmatprep.subr.mxu0 0.0
        %1732 = vmatpush2.msra.mxu0 0.0
        %1733 = vmatprep.subr.mxu0 0.0
        %1734 = vmatpush2.msra.mxu0 0.0
        %1735 = vmatprep.subr.mxu0 0.0
        %1736 = vmatpush2.msra.mxu0 0.0
        %1737 = vmatprep.mubr.f32.mxu0 0.0
        %v1738 = vand.u32 %v281, 4294901760
        %v1739 = vsub.f32 %v281, %v1738
        %v1740 = vand.u32 %v1739, 4294901760
        %1741 = vmatmul.mubr.f32.gmra.mxu0 %v1740
        %v1742 = vpop.f32.mrf.mxu0
        %v1743 = vadd.f32 %v1654, %v1742
        %v1744 = vpop.f32.mrf.mxu0
        %1745 = vmatprep.mubr.f32.mxu0 0.0
        %v1746 = vand.u32 %v284, 4294901760
        %v1747 = vsub.f32 %v284, %v1746
        %v1748 = vand.u32 %v1747, 4294901760
        %1749 = vmatmul.mubr.f32.gmra.mxu0 %v1748
        %v1750 = vpop.f32.mrf.mxu0
        %v1751 = vadd.f32 %v1661, %v1750
        %v1752 = vpop.f32.mrf.mxu0
        %1753 = vmatprep.mubr.f32.mxu0 0.0
        %v1754 = vand.u32 %v287, 4294901760
        %v1755 = vsub.f32 %v287, %v1754
        %v1756 = vand.u32 %v1755, 4294901760
        %1757 = vmatmul.mubr.f32.gmra.mxu0 %v1756
        %v1758 = vpop.f32.mrf.mxu0
        %v1759 = vadd.f32 %v1668, %v1758
        %v1760 = vpop.f32.mrf.mxu0
        %1761 = vdwg.mxu0
        %1762 = vmatprep.subr.mxu0 0.0
        %1763 = vmatpush1.msra.mxu0 0.0
        %1764 = vmatprep.subr.mxu0 0.0
        %1765 = vmatpush1.msra.mxu0 0.0
        %1766 = vmatprep.subr.mxu0 0.0
        %1767 = vmatpush1.msra.mxu0 0.0
        %1768 = vmatprep.subr.mxu0 0.0
        %1769 = vmatpush1.msra.mxu0 0.0
        %1770 = vmatprep.subr.mxu0 0.0
        %1771 = vmatpush1.msra.mxu0 0.0
        %1772 = vmatprep.subr.mxu0 0.0
        %1773 = vmatpush1.msra.mxu0 0.0
        %1774 = vmatprep.subr.mxu0 0.0
        %1775 = vmatpush1.msra.mxu0 0.0
        %1776 = vmatprep.subr.mxu0 0.0
        %1777 = vmatpush1.msra.mxu0 0.0
        %1778 = vmatprep.subr.mxu0 0.0
        %1779 = vmatpush1.msra.mxu0 0.0
        %1780 = vmatprep.subr.mxu0 0.0
        %1781 = vmatpush1.msra.mxu0 0.0
        %1782 = vmatprep.subr.mxu0 0.0
        %1783 = vmatpush1.msra.mxu0 0.0
        %1784 = vmatprep.subr.mxu0 0.0
        %1785 = vmatpush1.msra.mxu0 0.0
        %1786 = vmatprep.subr.mxu0 0.0
        %1787 = vmatpush1.msra.mxu0 0.0
        %1788 = vmatprep.subr.mxu0 0.0
        %1789 = vmatpush1.msra.mxu0 0.0
        %1790 = vmatprep.subr.mxu0 0.0
        %v1791 = vand.u32 %v1390, 4294901760
        %v1792 = vsub.f32 %v1390, %v1791
        %v1793 = vand.u32 %v1792, 4294901760
        %1794 = vmatpush1.msra.mxu0 %v1793
        %1795 = vmatprep.subr.mxu0 0.0
        %v1796 = vand.u32 %v1389, 4294901760
        %v1797 = vsub.f32 %v1389, %v1796
        %v1798 = vand.u32 %v1797, 4294901760
        %1799 = vmatpush1.msra.mxu0 %v1798
        %1800 = vmatprep.subr.mxu0 0.0
        %1801 = vmatpush2.msra.mxu0 0.0
        %1802 = vmatprep.subr.mxu0 0.0
        %1803 = vmatpush2.msra.mxu0 0.0
        %1804 = vmatprep.subr.mxu0 0.0
        %1805 = vmatpush2.msra.mxu0 0.0
        %1806 = vmatprep.subr.mxu0 0.0
        %1807 = vmatpush2.msra.mxu0 0.0
        %1808 = vmatprep.subr.mxu0 0.0
        %1809 = vmatpush2.msra.mxu0 0.0
        %1810 = vmatprep.subr.mxu0 0.0
        %1811 = vmatpush2.msra.mxu0 0.0
        %1812 = vmatprep.subr.mxu0 0.0
        %1813 = vmatpush2.msra.mxu0 0.0
        %1814 = vmatprep.subr.mxu0 0.0
        %1815 = vmatpush2.msra.mxu0 0.0
        %1816 = vmatprep.subr.mxu0 0.0
        %1817 = vmatpush2.msra.mxu0 0.0
        %1818 = vmatprep.subr.mxu0 0.0
        %1819 = vmatpush2.msra.mxu0 0.0
        %1820 = vmatprep.subr.mxu0 0.0
        %1821 = vmatpush2.msra.mxu0 0.0
        %1822 = vmatprep.subr.mxu0 0.0
        %1823 = vmatpush2.msra.mxu0 0.0
        %1824 = vmatprep.subr.mxu0 0.0
        %1825 = vmatpush2.msra.mxu0 0.0
        %1826 = vmatprep.subr.mxu0 0.0
        %1827 = vmatpush2.msra.mxu0 0.0
        %1828 = vmatprep.subr.mxu0 0.0
        %1829 = vmatpush2.msra.mxu0 0.0
        %1830 = vmatprep.subr.mxu0 0.0
        %1831 = vmatpush2.msra.mxu0 0.0
        %1832 = vmatprep.mubr.f32.mxu0 0.0
        %v1833 = vand.u32 %v281, 4294901760
        %1834 = vmatmul.mubr.f32.gmra.mxu0 %v1833
        %v1835 = vpop.f32.mrf.mxu0
        %v1836 = vadd.f32 %v1743, %v1835
        %v1837 = vpop.f32.mrf.mxu0
        %1838 = vmatprep.mubr.f32.mxu0 0.0
        %v1839 = vand.u32 %v284, 4294901760
        %1840 = vmatmul.mubr.f32.gmra.mxu0 %v1839
        %v1841 = vpop.f32.mrf.mxu0
        %v1842 = vadd.f32 %v1751, %v1841
        %v1843 = vpop.f32.mrf.mxu0
        %1844 = vmatprep.mubr.f32.mxu0 0.0
        %v1845 = vand.u32 %v287, 4294901760
        %1846 = vmatmul.mubr.f32.gmra.mxu0 %v1845
        %v1847 = vpop.f32.mrf.mxu0
        %v1848 = vadd.f32 %v1759, %v1847
        %v1849 = vpop.f32.mrf.mxu0
        %1850 = vdwg.mxu0
        %1851 = vmatprep.subr.mxu0 0.0
        %1852 = vmatpush1.msra.mxu0 0.0
        %1853 = vmatprep.subr.mxu0 0.0
        %1854 = vmatpush1.msra.mxu0 0.0
        %1855 = vmatprep.subr.mxu0 0.0
        %1856 = vmatpush1.msra.mxu0 0.0
        %1857 = vmatprep.subr.mxu0 0.0
        %1858 = vmatpush1.msra.mxu0 0.0
        %1859 = vmatprep.subr.mxu0 0.0
        %1860 = vmatpush1.msra.mxu0 0.0
        %1861 = vmatprep.subr.mxu0 0.0
        %1862 = vmatpush1.msra.mxu0 0.0
        %1863 = vmatprep.subr.mxu0 0.0
        %1864 = vmatpush1.msra.mxu0 0.0
        %1865 = vmatprep.subr.mxu0 0.0
        %1866 = vmatpush1.msra.mxu0 0.0
        %1867 = vmatprep.subr.mxu0 0.0
        %1868 = vmatpush1.msra.mxu0 0.0
        %1869 = vmatprep.subr.mxu0 0.0
        %1870 = vmatpush1.msra.mxu0 0.0
        %1871 = vmatprep.subr.mxu0 0.0
        %1872 = vmatpush1.msra.mxu0 0.0
        %1873 = vmatprep.subr.mxu0 0.0
        %1874 = vmatpush1.msra.mxu0 0.0
        %1875 = vmatprep.subr.mxu0 0.0
        %1876 = vmatpush1.msra.mxu0 0.0
        %1877 = vmatprep.subr.mxu0 0.0
        %1878 = vmatpush1.msra.mxu0 0.0
        %1879 = vmatprep.subr.mxu0 0.0
        %v1880 = vand.u32 %v1390, 4294901760
        %1881 = vmatpush1.msra.mxu0 %v1880
        %1882 = vmatprep.subr.mxu0 0.0
        %v1883 = vand.u32 %v1389, 4294901760
        %1884 = vmatpush1.msra.mxu0 %v1883
        %1885 = vmatprep.subr.mxu0 0.0
        %1886 = vmatpush2.msra.mxu0 0.0
        %1887 = vmatprep.subr.mxu0 0.0
        %1888 = vmatpush2.msra.mxu0 0.0
        %1889 = vmatprep.subr.mxu0 0.0
        %1890 = vmatpush2.msra.mxu0 0.0
        %1891 = vmatprep.subr.mxu0 0.0
        %1892 = vmatpush2.msra.mxu0 0.0
        %1893 = vmatprep.subr.mxu0 0.0
        %1894 = vmatpush2.msra.mxu0 0.0
        %1895 = vmatprep.subr.mxu0 0.0
        %1896 = vmatpush2.msra.mxu0 0.0
        %1897 = vmatprep.subr.mxu0 0.0
        %1898 = vmatpush2.msra.mxu0 0.0
        %1899 = vmatprep.subr.mxu0 0.0
        %1900 = vmatpush2.msra.mxu0 0.0
        %1901 = vmatprep.subr.mxu0 0.0
        %1902 = vmatpush2.msra.mxu0 0.0
        %1903 = vmatprep.subr.mxu0 0.0
        %1904 = vmatpush2.msra.mxu0 0.0
        %1905 = vmatprep.subr.mxu0 0.0
        %1906 = vmatpush2.msra.mxu0 0.0
        %1907 = vmatprep.subr.mxu0 0.0
        %1908 = vmatpush2.msra.mxu0 0.0
        %1909 = vmatprep.subr.mxu0 0.0
        %1910 = vmatpush2.msra.mxu0 0.0
        %1911 = vmatprep.subr.mxu0 0.0
        %1912 = vmatpush2.msra.mxu0 0.0
        %1913 = vmatprep.subr.mxu0 0.0
        %1914 = vmatpush2.msra.mxu0 0.0
        %1915 = vmatprep.subr.mxu0 0.0
        %1916 = vmatpush2.msra.mxu0 0.0
        %1917 = vmatprep.mubr.f32.mxu0 0.0
        %v1918 = vand.u32 %v281, 4294901760
        %1919 = vmatmul.mubr.f32.gmra.mxu0 %v1918
        %v1920 = vpop.f32.mrf.mxu0
        %v1921 = vadd.f32 %v1836, %v1920
        %v1922 = vpop.f32.mrf.mxu0
        %1923 = vmatprep.mubr.f32.mxu0 0.0
        %v1924 = vand.u32 %v284, 4294901760
        %1925 = vmatmul.mubr.f32.gmra.mxu0 %v1924
        %v1926 = vpop.f32.mrf.mxu0
        %v1927 = vadd.f32 %v1842, %v1926
        %v1928 = vpop.f32.mrf.mxu0
        %1929 = vmatprep.mubr.f32.mxu0 0.0
        %v1930 = vand.u32 %v287, 4294901760
        %1931 = vmatmul.mubr.f32.gmra.mxu0 %v1930
        %v1932 = vpop.f32.mrf.mxu0
        %v1933 = vadd.f32 %v1848, %v1932
        %v1934 = vpop.f32.mrf.mxu0
        %1935 = vdwg.mxu0
        %v1937 = vsel %vm279, %v1921, 0
        %v1940 = vsel %vm279, %v1927, 0
        %v1943 = vsel %vm279, %v1933, 0
        %1945 = vmatprep.subr.mxu0 0.0
        %1946 = vmatpush1.msra.mxu0 0.0
        %1947 = vmatprep.subr.mxu0 0.0
        %1948 = vmatpush1.msra.mxu0 0.0
        %1949 = vmatprep.subr.mxu0 0.0
        %1950 = vmatpush1.msra.mxu0 0.0
        %1951 = vmatprep.subr.mxu0 0.0
        %1952 = vmatpush1.msra.mxu0 0.0
        %1953 = vmatprep.subr.mxu0 0.0
        %1954 = vmatpush1.msra.mxu0 0.0
        %1955 = vmatprep.subr.mxu0 0.0
        %1956 = vmatpush1.msra.mxu0 0.0
        %1957 = vmatprep.subr.mxu0 0.0
        %1958 = vmatpush1.msra.mxu0 0.0
        %1959 = vmatprep.subr.mxu0 0.0
        %1960 = vmatpush1.msra.mxu0 0.0
        %1961 = vmatprep.subr.mxu0 0.0
        %1962 = vmatpush1.msra.mxu0 0.0
        %1963 = vmatprep.subr.mxu0 0.0
        %1964 = vmatpush1.msra.mxu0 0.0
        %1965 = vmatprep.subr.mxu0 0.0
        %1966 = vmatpush1.msra.mxu0 0.0
        %1967 = vmatprep.subr.mxu0 0.0
        %1968 = vmatpush1.msra.mxu0 0.0
        %1969 = vmatprep.subr.mxu0 0.0
        %1970 = vmatpush1.msra.mxu0 0.0
        %1971 = vmatprep.subr.mxu0 0.0
        %1972 = vmatpush1.msra.mxu0 0.0
        %1973 = vmatprep.subr.mxu0 0.0
        %v1974 = vand.u32 %v276, 4294901760
        %1975 = vmatpush1.msra.mxu0 %v1974
        %1976 = vmatprep.subr.mxu0 0.0
        %v1977 = vand.u32 %v275, 4294901760
        %1978 = vmatpush1.msra.mxu0 %v1977
        %1979 = vmatprep.subr.mxu0 0.0
        %1980 = vmatpush2.msra.mxu0 0.0
        %1981 = vmatprep.subr.mxu0 0.0
        %1982 = vmatpush2.msra.mxu0 0.0
        %1983 = vmatprep.subr.mxu0 0.0
        %1984 = vmatpush2.msra.mxu0 0.0
        %1985 = vmatprep.subr.mxu0 0.0
        %1986 = vmatpush2.msra.mxu0 0.0
        %1987 = vmatprep.subr.mxu0 0.0
        %1988 = vmatpush2.msra.mxu0 0.0
        %1989 = vmatprep.subr.mxu0 0.0
        %1990 = vmatpush2.msra.mxu0 0.0
        %1991 = vmatprep.subr.mxu0 0.0
        %1992 = vmatpush2.msra.mxu0 0.0
        %1993 = vmatprep.subr.mxu0 0.0
        %1994 = vmatpush2.msra.mxu0 0.0
        %1995 = vmatprep.subr.mxu0 0.0
        %1996 = vmatpush2.msra.mxu0 0.0
        %1997 = vmatprep.subr.mxu0 0.0
        %1998 = vmatpush2.msra.mxu0 0.0
        %1999 = vmatprep.subr.mxu0 0.0
        %2000 = vmatpush2.msra.mxu0 0.0
        %2001 = vmatprep.subr.mxu0 0.0
        %2002 = vmatpush2.msra.mxu0 0.0
        %2003 = vmatprep.subr.mxu0 0.0
        %2004 = vmatpush2.msra.mxu0 0.0
        %2005 = vmatprep.subr.mxu0 0.0
        %2006 = vmatpush2.msra.mxu0 0.0
        %2007 = vmatprep.subr.mxu0 0.0
        %2008 = vmatpush2.msra.mxu0 0.0
        %2009 = vmatprep.subr.mxu0 0.0
        %2010 = vmatpush2.msra.mxu0 0.0
        %2011 = vmatprep.mubr.f32.mxu0 0.0
        %v2012 = vand.u32 %v1937, 4294901760
        %v2013 = vsub.f32 %v1937, %v2012
        %v2014 = vand.u32 %v2013, 4294901760
        %v2015 = vsub.f32 %v2013, %v2014
        %v2016 = vand.u32 %v2015, 4294901760
        %2017 = vmatmul.mubr.f32.gmra.mxu0 %v2016
        %v2018 = vpop.f32.mrf.mxu0
        %v2019 = vadd.f32 0.0, %v2018
        %v2020 = vpop.f32.mrf.mxu0
        %2021 = vmatprep.mubr.f32.mxu0 0.0
        %v2022 = vand.u32 %v1940, 4294901760
        %v2023 = vsub.f32 %v1940, %v2022
        %v2024 = vand.u32 %v2023, 4294901760
        %v2025 = vsub.f32 %v2023, %v2024
        %v2026 = vand.u32 %v2025, 4294901760
        %2027 = vmatmul.mubr.f32.gmra.mxu0 %v2026
        %v2028 = vpop.f32.mrf.mxu0
        %v2029 = vadd.f32 0.0, %v2028
        %v2030 = vpop.f32.mrf.mxu0
        %2031 = vmatprep.mubr.f32.mxu0 0.0
        %v2032 = vand.u32 %v1943, 4294901760
        %v2033 = vsub.f32 %v1943, %v2032
        %v2034 = vand.u32 %v2033, 4294901760
        %v2035 = vsub.f32 %v2033, %v2034
        %v2036 = vand.u32 %v2035, 4294901760
        %2037 = vmatmul.mubr.f32.gmra.mxu0 %v2036
        %v2038 = vpop.f32.mrf.mxu0
        %v2039 = vadd.f32 0.0, %v2038
        %v2040 = vpop.f32.mrf.mxu0
        %2041 = vdwg.mxu0
        %2042 = vmatprep.subr.mxu0 0.0
        %2043 = vmatpush1.msra.mxu0 0.0
        %2044 = vmatprep.subr.mxu0 0.0
        %2045 = vmatpush1.msra.mxu0 0.0
        %2046 = vmatprep.subr.mxu0 0.0
        %2047 = vmatpush1.msra.mxu0 0.0
        %2048 = vmatprep.subr.mxu0 0.0
        %2049 = vmatpush1.msra.mxu0 0.0
        %2050 = vmatprep.subr.mxu0 0.0
        %2051 = vmatpush1.msra.mxu0 0.0
        %2052 = vmatprep.subr.mxu0 0.0
        %2053 = vmatpush1.msra.mxu0 0.0
        %2054 = vmatprep.subr.mxu0 0.0
        %2055 = vmatpush1.msra.mxu0 0.0
        %2056 = vmatprep.subr.mxu0 0.0
        %2057 = vmatpush1.msra.mxu0 0.0
        %2058 = vmatprep.subr.mxu0 0.0
        %2059 = vmatpush1.msra.mxu0 0.0
        %2060 = vmatprep.subr.mxu0 0.0
        %2061 = vmatpush1.msra.mxu0 0.0
        %2062 = vmatprep.subr.mxu0 0.0
        %2063 = vmatpush1.msra.mxu0 0.0
        %2064 = vmatprep.subr.mxu0 0.0
        %2065 = vmatpush1.msra.mxu0 0.0
        %2066 = vmatprep.subr.mxu0 0.0
        %2067 = vmatpush1.msra.mxu0 0.0
        %2068 = vmatprep.subr.mxu0 0.0
        %2069 = vmatpush1.msra.mxu0 0.0
        %2070 = vmatprep.subr.mxu0 0.0
        %v2071 = vand.u32 %v276, 4294901760
        %v2072 = vsub.f32 %v276, %v2071
        %v2073 = vand.u32 %v2072, 4294901760
        %v2074 = vsub.f32 %v2072, %v2073
        %v2075 = vand.u32 %v2074, 4294901760
        %2076 = vmatpush1.msra.mxu0 %v2075
        %2077 = vmatprep.subr.mxu0 0.0
        %v2078 = vand.u32 %v275, 4294901760
        %v2079 = vsub.f32 %v275, %v2078
        %v2080 = vand.u32 %v2079, 4294901760
        %v2081 = vsub.f32 %v2079, %v2080
        %v2082 = vand.u32 %v2081, 4294901760
        %2083 = vmatpush1.msra.mxu0 %v2082
        %2084 = vmatprep.subr.mxu0 0.0
        %2085 = vmatpush2.msra.mxu0 0.0
        %2086 = vmatprep.subr.mxu0 0.0
        %2087 = vmatpush2.msra.mxu0 0.0
        %2088 = vmatprep.subr.mxu0 0.0
        %2089 = vmatpush2.msra.mxu0 0.0
        %2090 = vmatprep.subr.mxu0 0.0
        %2091 = vmatpush2.msra.mxu0 0.0
        %2092 = vmatprep.subr.mxu0 0.0
        %2093 = vmatpush2.msra.mxu0 0.0
        %2094 = vmatprep.subr.mxu0 0.0
        %2095 = vmatpush2.msra.mxu0 0.0
        %2096 = vmatprep.subr.mxu0 0.0
        %2097 = vmatpush2.msra.mxu0 0.0
        %2098 = vmatprep.subr.mxu0 0.0
        %2099 = vmatpush2.msra.mxu0 0.0
        %2100 = vmatprep.subr.mxu0 0.0
        %2101 = vmatpush2.msra.mxu0 0.0
        %2102 = vmatprep.subr.mxu0 0.0
        %2103 = vmatpush2.msra.mxu0 0.0
        %2104 = vmatprep.subr.mxu0 0.0
        %2105 = vmatpush2.msra.mxu0 0.0
        %2106 = vmatprep.subr.mxu0 0.0
        %2107 = vmatpush2.msra.mxu0 0.0
        %2108 = vmatprep.subr.mxu0 0.0
        %2109 = vmatpush2.msra.mxu0 0.0
        %2110 = vmatprep.subr.mxu0 0.0
        %2111 = vmatpush2.msra.mxu0 0.0
        %2112 = vmatprep.subr.mxu0 0.0
        %2113 = vmatpush2.msra.mxu0 0.0
        %2114 = vmatprep.subr.mxu0 0.0
        %2115 = vmatpush2.msra.mxu0 0.0
        %2116 = vmatprep.mubr.f32.mxu0 0.0
        %v2117 = vand.u32 %v1937, 4294901760
        %2118 = vmatmul.mubr.f32.gmra.mxu0 %v2117
        %v2119 = vpop.f32.mrf.mxu0
        %v2120 = vadd.f32 %v2019, %v2119
        %v2121 = vpop.f32.mrf.mxu0
        %2122 = vmatprep.mubr.f32.mxu0 0.0
        %v2123 = vand.u32 %v1940, 4294901760
        %2124 = vmatmul.mubr.f32.gmra.mxu0 %v2123
        %v2125 = vpop.f32.mrf.mxu0
        %v2126 = vadd.f32 %v2029, %v2125
        %v2127 = vpop.f32.mrf.mxu0
        %2128 = vmatprep.mubr.f32.mxu0 0.0
        %v2129 = vand.u32 %v1943, 4294901760
        %2130 = vmatmul.mubr.f32.gmra.mxu0 %v2129
        %v2131 = vpop.f32.mrf.mxu0
        %v2132 = vadd.f32 %v2039, %v2131
        %v2133 = vpop.f32.mrf.mxu0
        %2134 = vdwg.mxu0
        %2135 = vmatprep.subr.mxu0 0.0
        %2136 = vmatpush1.msra.mxu0 0.0
        %2137 = vmatprep.subr.mxu0 0.0
        %2138 = vmatpush1.msra.mxu0 0.0
        %2139 = vmatprep.subr.mxu0 0.0
        %2140 = vmatpush1.msra.mxu0 0.0
        %2141 = vmatprep.subr.mxu0 0.0
        %2142 = vmatpush1.msra.mxu0 0.0
        %2143 = vmatprep.subr.mxu0 0.0
        %2144 = vmatpush1.msra.mxu0 0.0
        %2145 = vmatprep.subr.mxu0 0.0
        %2146 = vmatpush1.msra.mxu0 0.0
        %2147 = vmatprep.subr.mxu0 0.0
        %2148 = vmatpush1.msra.mxu0 0.0
        %2149 = vmatprep.subr.mxu0 0.0
        %2150 = vmatpush1.msra.mxu0 0.0
        %2151 = vmatprep.subr.mxu0 0.0
        %2152 = vmatpush1.msra.mxu0 0.0
        %2153 = vmatprep.subr.mxu0 0.0
        %2154 = vmatpush1.msra.mxu0 0.0
        %2155 = vmatprep.subr.mxu0 0.0
        %2156 = vmatpush1.msra.mxu0 0.0
        %2157 = vmatprep.subr.mxu0 0.0
        %2158 = vmatpush1.msra.mxu0 0.0
        %2159 = vmatprep.subr.mxu0 0.0
        %2160 = vmatpush1.msra.mxu0 0.0
        %2161 = vmatprep.subr.mxu0 0.0
        %2162 = vmatpush1.msra.mxu0 0.0
        %2163 = vmatprep.subr.mxu0 0.0
        %v2164 = vand.u32 %v276, 4294901760
        %v2165 = vsub.f32 %v276, %v2164
        %2166 = vmatpush1.msra.mxu0 %v2165
        %2167 = vmatprep.subr.mxu0 0.0
        %v2168 = vand.u32 %v275, 4294901760
        %v2169 = vsub.f32 %v275, %v2168
        %2170 = vmatpush1.msra.mxu0 %v2169
        %2171 = vmatprep.subr.mxu0 0.0
        %2172 = vmatpush2.msra.mxu0 0.0
        %2173 = vmatprep.subr.mxu0 0.0
        %2174 = vmatpush2.msra.mxu0 0.0
        %2175 = vmatprep.subr.mxu0 0.0
        %2176 = vmatpush2.msra.mxu0 0.0
        %2177 = vmatprep.subr.mxu0 0.0
        %2178 = vmatpush2.msra.mxu0 0.0
        %2179 = vmatprep.subr.mxu0 0.0
        %2180 = vmatpush2.msra.mxu0 0.0
        %2181 = vmatprep.subr.mxu0 0.0
        %2182 = vmatpush2.msra.mxu0 0.0
        %2183 = vmatprep.subr.mxu0 0.0
        %2184 = vmatpush2.msra.mxu0 0.0
        %2185 = vmatprep.subr.mxu0 0.0
        %2186 = vmatpush2.msra.mxu0 0.0
        %2187 = vmatprep.subr.mxu0 0.0
        %2188 = vmatpush2.msra.mxu0 0.0
        %2189 = vmatprep.subr.mxu0 0.0
        %2190 = vmatpush2.msra.mxu0 0.0
        %2191 = vmatprep.subr.mxu0 0.0
        %2192 = vmatpush2.msra.mxu0 0.0
        %2193 = vmatprep.subr.mxu0 0.0
        %2194 = vmatpush2.msra.mxu0 0.0
        %2195 = vmatprep.subr.mxu0 0.0
        %2196 = vmatpush2.msra.mxu0 0.0
        %2197 = vmatprep.subr.mxu0 0.0
        %2198 = vmatpush2.msra.mxu0 0.0
        %2199 = vmatprep.subr.mxu0 0.0
        %2200 = vmatpush2.msra.mxu0 0.0
        %2201 = vmatprep.subr.mxu0 0.0
        %2202 = vmatpush2.msra.mxu0 0.0
        %2203 = vmatprep.mubr.f32.mxu0 0.0
        %v2204 = vand.u32 %v1937, 4294901760
        %v2205 = vsub.f32 %v1937, %v2204
        %2206 = vmatmul.mubr.f32.gmra.mxu0 %v2205
        %v2207 = vpop.f32.mrf.mxu0
        %v2208 = vadd.f32 %v2120, %v2207
        %v2209 = vpop.f32.mrf.mxu0
        %2210 = vmatprep.mubr.f32.mxu0 0.0
        %v2211 = vand.u32 %v1940, 4294901760
        %v2212 = vsub.f32 %v1940, %v2211
        %2213 = vmatmul.mubr.f32.gmra.mxu0 %v2212
        %v2214 = vpop.f32.mrf.mxu0
        %v2215 = vadd.f32 %v2126, %v2214
        %v2216 = vpop.f32.mrf.mxu0
        %2217 = vmatprep.mubr.f32.mxu0 0.0
        %v2218 = vand.u32 %v1943, 4294901760
        %v2219 = vsub.f32 %v1943, %v2218
        %2220 = vmatmul.mubr.f32.gmra.mxu0 %v2219
        %v2221 = vpop.f32.mrf.mxu0
        %v2222 = vadd.f32 %v2132, %v2221
        %v2223 = vpop.f32.mrf.mxu0
        %2224 = vdwg.mxu0
        %2225 = vmatprep.subr.mxu0 0.0
        %2226 = vmatpush1.msra.mxu0 0.0
        %2227 = vmatprep.subr.mxu0 0.0
        %2228 = vmatpush1.msra.mxu0 0.0
        %2229 = vmatprep.subr.mxu0 0.0
        %2230 = vmatpush1.msra.mxu0 0.0
        %2231 = vmatprep.subr.mxu0 0.0
        %2232 = vmatpush1.msra.mxu0 0.0
        %2233 = vmatprep.subr.mxu0 0.0
        %2234 = vmatpush1.msra.mxu0 0.0
        %2235 = vmatprep.subr.mxu0 0.0
        %2236 = vmatpush1.msra.mxu0 0.0
        %2237 = vmatprep.subr.mxu0 0.0
        %2238 = vmatpush1.msra.mxu0 0.0
        %2239 = vmatprep.subr.mxu0 0.0
        %2240 = vmatpush1.msra.mxu0 0.0
        %2241 = vmatprep.subr.mxu0 0.0
        %2242 = vmatpush1.msra.mxu0 0.0
        %2243 = vmatprep.subr.mxu0 0.0
        %2244 = vmatpush1.msra.mxu0 0.0
        %2245 = vmatprep.subr.mxu0 0.0
        %2246 = vmatpush1.msra.mxu0 0.0
        %2247 = vmatprep.subr.mxu0 0.0
        %2248 = vmatpush1.msra.mxu0 0.0
        %2249 = vmatprep.subr.mxu0 0.0
        %2250 = vmatpush1.msra.mxu0 0.0
        %2251 = vmatprep.subr.mxu0 0.0
        %2252 = vmatpush1.msra.mxu0 0.0
        %2253 = vmatprep.subr.mxu0 0.0
        %v2254 = vand.u32 %v276, 4294901760
        %2255 = vmatpush1.msra.mxu0 %v2254
        %2256 = vmatprep.subr.mxu0 0.0
        %v2257 = vand.u32 %v275, 4294901760
        %2258 = vmatpush1.msra.mxu0 %v2257
        %2259 = vmatprep.subr.mxu0 0.0
        %2260 = vmatpush2.msra.mxu0 0.0
        %2261 = vmatprep.subr.mxu0 0.0
        %2262 = vmatpush2.msra.mxu0 0.0
        %2263 = vmatprep.subr.mxu0 0.0
        %2264 = vmatpush2.msra.mxu0 0.0
        %2265 = vmatprep.subr.mxu0 0.0
        %2266 = vmatpush2.msra.mxu0 0.0
        %2267 = vmatprep.subr.mxu0 0.0
        %2268 = vmatpush2.msra.mxu0 0.0
        %2269 = vmatprep.subr.mxu0 0.0
        %2270 = vmatpush2.msra.mxu0 0.0
        %2271 = vmatprep.subr.mxu0 0.0
        %2272 = vmatpush2.msra.mxu0 0.0
        %2273 = vmatprep.subr.mxu0 0.0
        %2274 = vmatpush2.msra.mxu0 0.0
        %2275 = vmatprep.subr.mxu0 0.0
        %2276 = vmatpush2.msra.mxu0 0.0
        %2277 = vmatprep.subr.mxu0 0.0
        %2278 = vmatpush2.msra.mxu0 0.0
        %2279 = vmatprep.subr.mxu0 0.0
        %2280 = vmatpush2.msra.mxu0 0.0
        %2281 = vmatprep.subr.mxu0 0.0
        %2282 = vmatpush2.msra.mxu0 0.0
        %2283 = vmatprep.subr.mxu0 0.0
        %2284 = vmatpush2.msra.mxu0 0.0
        %2285 = vmatprep.subr.mxu0 0.0
        %2286 = vmatpush2.msra.mxu0 0.0
        %2287 = vmatprep.subr.mxu0 0.0
        %2288 = vmatpush2.msra.mxu0 0.0
        %2289 = vmatprep.subr.mxu0 0.0
        %2290 = vmatpush2.msra.mxu0 0.0
        %2291 = vmatprep.mubr.f32.mxu0 0.0
        %v2292 = vand.u32 %v1937, 4294901760
        %v2293 = vsub.f32 %v1937, %v2292
        %v2294 = vand.u32 %v2293, 4294901760
        %2295 = vmatmul.mubr.f32.gmra.mxu0 %v2294
        %v2296 = vpop.f32.mrf.mxu0
        %v2297 = vadd.f32 %v2208, %v2296
        %v2298 = vpop.f32.mrf.mxu0
        %2299 = vmatprep.mubr.f32.mxu0 0.0
        %v2300 = vand.u32 %v1940, 4294901760
        %v2301 = vsub.f32 %v1940, %v2300
        %v2302 = vand.u32 %v2301, 4294901760
        %2303 = vmatmul.mubr.f32.gmra.mxu0 %v2302
        %v2304 = vpop.f32.mrf.mxu0
        %v2305 = vadd.f32 %v2215, %v2304
        %v2306 = vpop.f32.mrf.mxu0
        %2307 = vmatprep.mubr.f32.mxu0 0.0
        %v2308 = vand.u32 %v1943, 4294901760
        %v2309 = vsub.f32 %v1943, %v2308
        %v2310 = vand.u32 %v2309, 4294901760
        %2311 = vmatmul.mubr.f32.gmra.mxu0 %v2310
        %v2312 = vpop.f32.mrf.mxu0
        %v2313 = vadd.f32 %v2222, %v2312
        %v2314 = vpop.f32.mrf.mxu0
        %2315 = vdwg.mxu0
        %2316 = vmatprep.subr.mxu0 0.0
        %2317 = vmatpush1.msra.mxu0 0.0
        %2318 = vmatprep.subr.mxu0 0.0
        %2319 = vmatpush1.msra.mxu0 0.0
        %2320 = vmatprep.subr.mxu0 0.0
        %2321 = vmatpush1.msra.mxu0 0.0
        %2322 = vmatprep.subr.mxu0 0.0
        %2323 = vmatpush1.msra.mxu0 0.0
        %2324 = vmatprep.subr.mxu0 0.0
        %2325 = vmatpush1.msra.mxu0 0.0
        %2326 = vmatprep.subr.mxu0 0.0
        %2327 = vmatpush1.msra.mxu0 0.0
        %2328 = vmatprep.subr.mxu0 0.0
        %2329 = vmatpush1.msra.mxu0 0.0
        %2330 = vmatprep.subr.mxu0 0.0
        %2331 = vmatpush1.msra.mxu0 0.0
        %2332 = vmatprep.subr.mxu0 0.0
        %2333 = vmatpush1.msra.mxu0 0.0
        %2334 = vmatprep.subr.mxu0 0.0
        %2335 = vmatpush1.msra.mxu0 0.0
        %2336 = vmatprep.subr.mxu0 0.0
        %2337 = vmatpush1.msra.mxu0 0.0
        %2338 = vmatprep.subr.mxu0 0.0
        %2339 = vmatpush1.msra.mxu0 0.0
        %2340 = vmatprep.subr.mxu0 0.0
        %2341 = vmatpush1.msra.mxu0 0.0
        %2342 = vmatprep.subr.mxu0 0.0
        %2343 = vmatpush1.msra.mxu0 0.0
        %2344 = vmatprep.subr.mxu0 0.0
        %v2345 = vand.u32 %v276, 4294901760
        %v2346 = vsub.f32 %v276, %v2345
        %v2347 = vand.u32 %v2346, 4294901760
        %2348 = vmatpush1.msra.mxu0 %v2347
        %2349 = vmatprep.subr.mxu0 0.0
        %v2350 = vand.u32 %v275, 4294901760
        %v2351 = vsub.f32 %v275, %v2350
        %v2352 = vand.u32 %v2351, 4294901760
        %2353 = vmatpush1.msra.mxu0 %v2352
        %2354 = vmatprep.subr.mxu0 0.0
        %2355 = vmatpush2.msra.mxu0 0.0
        %2356 = vmatprep.subr.mxu0 0.0
        %2357 = vmatpush2.msra.mxu0 0.0
        %2358 = vmatprep.subr.mxu0 0.0
        %2359 = vmatpush2.msra.mxu0 0.0
        %2360 = vmatprep.subr.mxu0 0.0
        %2361 = vmatpush2.msra.mxu0 0.0
        %2362 = vmatprep.subr.mxu0 0.0
        %2363 = vmatpush2.msra.mxu0 0.0
        %2364 = vmatprep.subr.mxu0 0.0
        %2365 = vmatpush2.msra.mxu0 0.0
        %2366 = vmatprep.subr.mxu0 0.0
        %2367 = vmatpush2.msra.mxu0 0.0
        %2368 = vmatprep.subr.mxu0 0.0
        %2369 = vmatpush2.msra.mxu0 0.0
        %2370 = vmatprep.subr.mxu0 0.0
        %2371 = vmatpush2.msra.mxu0 0.0
        %2372 = vmatprep.subr.mxu0 0.0
        %2373 = vmatpush2.msra.mxu0 0.0
        %2374 = vmatprep.subr.mxu0 0.0
        %2375 = vmatpush2.msra.mxu0 0.0
        %2376 = vmatprep.subr.mxu0 0.0
        %2377 = vmatpush2.msra.mxu0 0.0
        %2378 = vmatprep.subr.mxu0 0.0
        %2379 = vmatpush2.msra.mxu0 0.0
        %2380 = vmatprep.subr.mxu0 0.0
        %2381 = vmatpush2.msra.mxu0 0.0
        %2382 = vmatprep.subr.mxu0 0.0
        %2383 = vmatpush2.msra.mxu0 0.0
        %2384 = vmatprep.subr.mxu0 0.0
        %2385 = vmatpush2.msra.mxu0 0.0
        %2386 = vmatprep.mubr.f32.mxu0 0.0
        %v2387 = vand.u32 %v1937, 4294901760
        %2388 = vmatmul.mubr.f32.gmra.mxu0 %v2387
        %v2389 = vpop.f32.mrf.mxu0
        %v2390 = vadd.f32 %v2297, %v2389
        %v2391 = vpop.f32.mrf.mxu0
        %2392 = vmatprep.mubr.f32.mxu0 0.0
        %v2393 = vand.u32 %v1940, 4294901760
        %2394 = vmatmul.mubr.f32.gmra.mxu0 %v2393
        %v2395 = vpop.f32.mrf.mxu0
        %v2396 = vadd.f32 %v2305, %v2395
        %v2397 = vpop.f32.mrf.mxu0
        %2398 = vmatprep.mubr.f32.mxu0 0.0
        %v2399 = vand.u32 %v1943, 4294901760
        %2400 = vmatmul.mubr.f32.gmra.mxu0 %v2399
        %v2401 = vpop.f32.mrf.mxu0
        %v2402 = vadd.f32 %v2313, %v2401
        %v2403 = vpop.f32.mrf.mxu0
        %2404 = vdwg.mxu0
        %2405 = vmatprep.subr.mxu0 0.0
        %2406 = vmatpush1.msra.mxu0 0.0
        %2407 = vmatprep.subr.mxu0 0.0
        %2408 = vmatpush1.msra.mxu0 0.0
        %2409 = vmatprep.subr.mxu0 0.0
        %2410 = vmatpush1.msra.mxu0 0.0
        %2411 = vmatprep.subr.mxu0 0.0
        %2412 = vmatpush1.msra.mxu0 0.0
        %2413 = vmatprep.subr.mxu0 0.0
        %2414 = vmatpush1.msra.mxu0 0.0
        %2415 = vmatprep.subr.mxu0 0.0
        %2416 = vmatpush1.msra.mxu0 0.0
        %2417 = vmatprep.subr.mxu0 0.0
        %2418 = vmatpush1.msra.mxu0 0.0
        %2419 = vmatprep.subr.mxu0 0.0
        %2420 = vmatpush1.msra.mxu0 0.0
        %2421 = vmatprep.subr.mxu0 0.0
        %2422 = vmatpush1.msra.mxu0 0.0
        %2423 = vmatprep.subr.mxu0 0.0
        %2424 = vmatpush1.msra.mxu0 0.0
        %2425 = vmatprep.subr.mxu0 0.0
        %2426 = vmatpush1.msra.mxu0 0.0
        %2427 = vmatprep.subr.mxu0 0.0
        %2428 = vmatpush1.msra.mxu0 0.0
        %2429 = vmatprep.subr.mxu0 0.0
        %2430 = vmatpush1.msra.mxu0 0.0
        %2431 = vmatprep.subr.mxu0 0.0
        %2432 = vmatpush1.msra.mxu0 0.0
        %2433 = vmatprep.subr.mxu0 0.0
        %v2434 = vand.u32 %v276, 4294901760
        %2435 = vmatpush1.msra.mxu0 %v2434
        %2436 = vmatprep.subr.mxu0 0.0
        %v2437 = vand.u32 %v275, 4294901760
        %2438 = vmatpush1.msra.mxu0 %v2437
        %2439 = vmatprep.subr.mxu0 0.0
        %2440 = vmatpush2.msra.mxu0 0.0
        %2441 = vmatprep.subr.mxu0 0.0
        %2442 = vmatpush2.msra.mxu0 0.0
        %2443 = vmatprep.subr.mxu0 0.0
        %2444 = vmatpush2.msra.mxu0 0.0
        %2445 = vmatprep.subr.mxu0 0.0
        %2446 = vmatpush2.msra.mxu0 0.0
        %2447 = vmatprep.subr.mxu0 0.0
        %2448 = vmatpush2.msra.mxu0 0.0
        %2449 = vmatprep.subr.mxu0 0.0
        %2450 = vmatpush2.msra.mxu0 0.0
        %2451 = vmatprep.subr.mxu0 0.0
        %2452 = vmatpush2.msra.mxu0 0.0
        %2453 = vmatprep.subr.mxu0 0.0
        %2454 = vmatpush2.msra.mxu0 0.0
        %2455 = vmatprep.subr.mxu0 0.0
        %2456 = vmatpush2.msra.mxu0 0.0
        %2457 = vmatprep.subr.mxu0 0.0
        %2458 = vmatpush2.msra.mxu0 0.0
        %2459 = vmatprep.subr.mxu0 0.0
        %2460 = vmatpush2.msra.mxu0 0.0
        %2461 = vmatprep.subr.mxu0 0.0
        %2462 = vmatpush2.msra.mxu0 0.0
        %2463 = vmatprep.subr.mxu0 0.0
        %2464 = vmatpush2.msra.mxu0 0.0
        %2465 = vmatprep.subr.mxu0 0.0
        %2466 = vmatpush2.msra.mxu0 0.0
        %2467 = vmatprep.subr.mxu0 0.0
        %2468 = vmatpush2.msra.mxu0 0.0
        %2469 = vmatprep.subr.mxu0 0.0
        %2470 = vmatpush2.msra.mxu0 0.0
        %2471 = vmatprep.mubr.f32.mxu0 0.0
        %v2472 = vand.u32 %v1937, 4294901760
        %2473 = vmatmul.mubr.f32.gmra.mxu0 %v2472
        %v2474 = vpop.f32.mrf.mxu0
        %v2475 = vadd.f32 %v2390, %v2474
        %v2476 = vpop.f32.mrf.mxu0
        %2477 = vmatprep.mubr.f32.mxu0 0.0
        %v2478 = vand.u32 %v1940, 4294901760
        %2479 = vmatmul.mubr.f32.gmra.mxu0 %v2478
        %v2480 = vpop.f32.mrf.mxu0
        %v2481 = vadd.f32 %v2396, %v2480
        %v2482 = vpop.f32.mrf.mxu0
        %2483 = vmatprep.mubr.f32.mxu0 0.0
        %v2484 = vand.u32 %v1943, 4294901760
        %2485 = vmatmul.mubr.f32.gmra.mxu0 %v2484
        %v2486 = vpop.f32.mrf.mxu0
        %v2487 = vadd.f32 %v2402, %v2486
        %v2488 = vpop.f32.mrf.mxu0
        %2489 = vdwg.mxu0
        %s2490 = scalar_lea.vmem %s231, 32 [#allocation2]
        %v2491 = vld [vmem:[%s2490] sm:$0xff]
        %v2492 = vld [vmem:[%s2490 + $0x8] sm:$0xff]
        %2493 = vmatprep.subr.mxu0 0.0
        %2494 = vmatpush1.msra.mxu0 0.0
        %2495 = vmatprep.subr.mxu0 0.0
        %2496 = vmatpush1.msra.mxu0 0.0
        %2497 = vmatprep.subr.mxu0 0.0
        %2498 = vmatpush1.msra.mxu0 0.0
        %2499 = vmatprep.subr.mxu0 0.0
        %2500 = vmatpush1.msra.mxu0 0.0
        %2501 = vmatprep.subr.mxu0 0.0
        %2502 = vmatpush1.msra.mxu0 0.0
        %2503 = vmatprep.subr.mxu0 0.0
        %2504 = vmatpush1.msra.mxu0 0.0
        %2505 = vmatprep.subr.mxu0 0.0
        %2506 = vmatpush1.msra.mxu0 0.0
        %2507 = vmatprep.subr.mxu0 0.0
        %2508 = vmatpush1.msra.mxu0 0.0
        %2509 = vmatprep.subr.mxu0 0.0
        %2510 = vmatpush1.msra.mxu0 0.0
        %2511 = vmatprep.subr.mxu0 0.0
        %2512 = vmatpush1.msra.mxu0 0.0
        %2513 = vmatprep.subr.mxu0 0.0
        %2514 = vmatpush1.msra.mxu0 0.0
        %2515 = vmatprep.subr.mxu0 0.0
        %2516 = vmatpush1.msra.mxu0 0.0
        %2517 = vmatprep.subr.mxu0 0.0
        %2518 = vmatpush1.msra.mxu0 0.0
        %2519 = vmatprep.subr.mxu0 0.0
        %2520 = vmatpush1.msra.mxu0 0.0
        %2521 = vmatprep.subr.mxu0 0.0
        %v2522 = vand.u32 %v2492, 4294901760
        %2523 = vmatpush1.msra.mxu0 %v2522
        %2524 = vmatprep.subr.mxu0 0.0
        %v2525 = vand.u32 %v2491, 4294901760
        %2526 = vmatpush1.msra.mxu0 %v2525
        %2527 = vmatprep.subr.mxu0 0.0
        %2528 = vmatpush2.msra.mxu0 0.0
        %2529 = vmatprep.subr.mxu0 0.0
        %2530 = vmatpush2.msra.mxu0 0.0
        %2531 = vmatprep.subr.mxu0 0.0
        %2532 = vmatpush2.msra.mxu0 0.0
        %2533 = vmatprep.subr.mxu0 0.0
        %2534 = vmatpush2.msra.mxu0 0.0
        %2535 = vmatprep.subr.mxu0 0.0
        %2536 = vmatpush2.msra.mxu0 0.0
        %2537 = vmatprep.subr.mxu0 0.0
        %2538 = vmatpush2.msra.mxu0 0.0
        %2539 = vmatprep.subr.mxu0 0.0
        %2540 = vmatpush2.msra.mxu0 0.0
        %2541 = vmatprep.subr.mxu0 0.0
        %2542 = vmatpush2.msra.mxu0 0.0
        %2543 = vmatprep.subr.mxu0 0.0
        %2544 = vmatpush2.msra.mxu0 0.0
        %2545 = vmatprep.subr.mxu0 0.0
        %2546 = vmatpush2.msra.mxu0 0.0
        %2547 = vmatprep.subr.mxu0 0.0
        %2548 = vmatpush2.msra.mxu0 0.0
        %2549 = vmatprep.subr.mxu0 0.0
        %2550 = vmatpush2.msra.mxu0 0.0
        %2551 = vmatprep.subr.mxu0 0.0
        %2552 = vmatpush2.msra.mxu0 0.0
        %2553 = vmatprep.subr.mxu0 0.0
        %2554 = vmatpush2.msra.mxu0 0.0
        %2555 = vmatprep.subr.mxu0 0.0
        %2556 = vmatpush2.msra.mxu0 0.0
        %2557 = vmatprep.subr.mxu0 0.0
        %2558 = vmatpush2.msra.mxu0 0.0
        %2559 = vmatprep.mubr.f32.mxu0 0.0
        %v2560 = vand.u32 %v281, 4294901760
        %v2561 = vsub.f32 %v281, %v2560
        %v2562 = vand.u32 %v2561, 4294901760
        %v2563 = vsub.f32 %v2561, %v2562
        %v2564 = vand.u32 %v2563, 4294901760
        %2565 = vmatmul.mubr.f32.gmra.mxu0 %v2564
        %v2566 = vpop.f32.mrf.mxu0
        %v2567 = vadd.f32 0.0, %v2566
        %v2568 = vpop.f32.mrf.mxu0
        %2569 = vmatprep.mubr.f32.mxu0 0.0
        %v2570 = vand.u32 %v284, 4294901760
        %v2571 = vsub.f32 %v284, %v2570
        %v2572 = vand.u32 %v2571, 4294901760
        %v2573 = vsub.f32 %v2571, %v2572
        %v2574 = vand.u32 %v2573, 4294901760
        %2575 = vmatmul.mubr.f32.gmra.mxu0 %v2574
        %v2576 = vpop.f32.mrf.mxu0
        %v2577 = vadd.f32 0.0, %v2576
        %v2578 = vpop.f32.mrf.mxu0
        %2579 = vmatprep.mubr.f32.mxu0 0.0
        %v2580 = vand.u32 %v287, 4294901760
        %v2581 = vsub.f32 %v287, %v2580
        %v2582 = vand.u32 %v2581, 4294901760
        %v2583 = vsub.f32 %v2581, %v2582
        %v2584 = vand.u32 %v2583, 4294901760
        %2585 = vmatmul.mubr.f32.gmra.mxu0 %v2584
        %v2586 = vpop.f32.mrf.mxu0
        %v2587 = vadd.f32 0.0, %v2586
        %v2588 = vpop.f32.mrf.mxu0
        %2589 = vdwg.mxu0
        %2590 = vmatprep.subr.mxu0 0.0
        %2591 = vmatpush1.msra.mxu0 0.0
        %2592 = vmatprep.subr.mxu0 0.0
        %2593 = vmatpush1.msra.mxu0 0.0
        %2594 = vmatprep.subr.mxu0 0.0
        %2595 = vmatpush1.msra.mxu0 0.0
        %2596 = vmatprep.subr.mxu0 0.0
        %2597 = vmatpush1.msra.mxu0 0.0
        %2598 = vmatprep.subr.mxu0 0.0
        %2599 = vmatpush1.msra.mxu0 0.0
        %2600 = vmatprep.subr.mxu0 0.0
        %2601 = vmatpush1.msra.mxu0 0.0
        %2602 = vmatprep.subr.mxu0 0.0
        %2603 = vmatpush1.msra.mxu0 0.0
        %2604 = vmatprep.subr.mxu0 0.0
        %2605 = vmatpush1.msra.mxu0 0.0
        %2606 = vmatprep.subr.mxu0 0.0
        %2607 = vmatpush1.msra.mxu0 0.0
        %2608 = vmatprep.subr.mxu0 0.0
        %2609 = vmatpush1.msra.mxu0 0.0
        %2610 = vmatprep.subr.mxu0 0.0
        %2611 = vmatpush1.msra.mxu0 0.0
        %2612 = vmatprep.subr.mxu0 0.0
        %2613 = vmatpush1.msra.mxu0 0.0
        %2614 = vmatprep.subr.mxu0 0.0
        %2615 = vmatpush1.msra.mxu0 0.0
        %2616 = vmatprep.subr.mxu0 0.0
        %2617 = vmatpush1.msra.mxu0 0.0
        %2618 = vmatprep.subr.mxu0 0.0
        %v2619 = vand.u32 %v2492, 4294901760
        %v2620 = vsub.f32 %v2492, %v2619
        %v2621 = vand.u32 %v2620, 4294901760
        %v2622 = vsub.f32 %v2620, %v2621
        %v2623 = vand.u32 %v2622, 4294901760
        %2624 = vmatpush1.msra.mxu0 %v2623
        %2625 = vmatprep.subr.mxu0 0.0
        %v2626 = vand.u32 %v2491, 4294901760
        %v2627 = vsub.f32 %v2491, %v2626
        %v2628 = vand.u32 %v2627, 4294901760
        %v2629 = vsub.f32 %v2627, %v2628
        %v2630 = vand.u32 %v2629, 4294901760
        %2631 = vmatpush1.msra.mxu0 %v2630
        %2632 = vmatprep.subr.mxu0 0.0
        %2633 = vmatpush2.msra.mxu0 0.0
        %2634 = vmatprep.subr.mxu0 0.0
        %2635 = vmatpush2.msra.mxu0 0.0
        %2636 = vmatprep.subr.mxu0 0.0
        %2637 = vmatpush2.msra.mxu0 0.0
        %2638 = vmatprep.subr.mxu0 0.0
        %2639 = vmatpush2.msra.mxu0 0.0
        %2640 = vmatprep.subr.mxu0 0.0
        %2641 = vmatpush2.msra.mxu0 0.0
        %2642 = vmatprep.subr.mxu0 0.0
        %2643 = vmatpush2.msra.mxu0 0.0
        %2644 = vmatprep.subr.mxu0 0.0
        %2645 = vmatpush2.msra.mxu0 0.0
        %2646 = vmatprep.subr.mxu0 0.0
        %2647 = vmatpush2.msra.mxu0 0.0
        %2648 = vmatprep.subr.mxu0 0.0
        %2649 = vmatpush2.msra.mxu0 0.0
        %2650 = vmatprep.subr.mxu0 0.0
        %2651 = vmatpush2.msra.mxu0 0.0
        %2652 = vmatprep.subr.mxu0 0.0
        %2653 = vmatpush2.msra.mxu0 0.0
        %2654 = vmatprep.subr.mxu0 0.0
        %2655 = vmatpush2.msra.mxu0 0.0
        %2656 = vmatprep.subr.mxu0 0.0
        %2657 = vmatpush2.msra.mxu0 0.0
        %2658 = vmatprep.subr.mxu0 0.0
        %2659 = vmatpush2.msra.mxu0 0.0
        %2660 = vmatprep.subr.mxu0 0.0
        %2661 = vmatpush2.msra.mxu0 0.0
        %2662 = vmatprep.subr.mxu0 0.0
        %2663 = vmatpush2.msra.mxu0 0.0
        %2664 = vmatprep.mubr.f32.mxu0 0.0
        %v2665 = vand.u32 %v281, 4294901760
        %2666 = vmatmul.mubr.f32.gmra.mxu0 %v2665
        %v2667 = vpop.f32.mrf.mxu0
        %v2668 = vadd.f32 %v2567, %v2667
        %v2669 = vpop.f32.mrf.mxu0
        %2670 = vmatprep.mubr.f32.mxu0 0.0
        %v2671 = vand.u32 %v284, 4294901760
        %2672 = vmatmul.mubr.f32.gmra.mxu0 %v2671
        %v2673 = vpop.f32.mrf.mxu0
        %v2674 = vadd.f32 %v2577, %v2673
        %v2675 = vpop.f32.mrf.mxu0
        %2676 = vmatprep.mubr.f32.mxu0 0.0
        %v2677 = vand.u32 %v287, 4294901760
        %2678 = vmatmul.mubr.f32.gmra.mxu0 %v2677
        %v2679 = vpop.f32.mrf.mxu0
        %v2680 = vadd.f32 %v2587, %v2679
        %v2681 = vpop.f32.mrf.mxu0
        %2682 = vdwg.mxu0
        %2683 = vmatprep.subr.mxu0 0.0
        %2684 = vmatpush1.msra.mxu0 0.0
        %2685 = vmatprep.subr.mxu0 0.0
        %2686 = vmatpush1.msra.mxu0 0.0
        %2687 = vmatprep.subr.mxu0 0.0
        %2688 = vmatpush1.msra.mxu0 0.0
        %2689 = vmatprep.subr.mxu0 0.0
        %2690 = vmatpush1.msra.mxu0 0.0
        %2691 = vmatprep.subr.mxu0 0.0
        %2692 = vmatpush1.msra.mxu0 0.0
        %2693 = vmatprep.subr.mxu0 0.0
        %2694 = vmatpush1.msra.mxu0 0.0
        %2695 = vmatprep.subr.mxu0 0.0
        %2696 = vmatpush1.msra.mxu0 0.0
        %2697 = vmatprep.subr.mxu0 0.0
        %2698 = vmatpush1.msra.mxu0 0.0
        %2699 = vmatprep.subr.mxu0 0.0
        %2700 = vmatpush1.msra.mxu0 0.0
        %2701 = vmatprep.subr.mxu0 0.0
        %2702 = vmatpush1.msra.mxu0 0.0
        %2703 = vmatprep.subr.mxu0 0.0
        %2704 = vmatpush1.msra.mxu0 0.0
        %2705 = vmatprep.subr.mxu0 0.0
        %2706 = vmatpush1.msra.mxu0 0.0
        %2707 = vmatprep.subr.mxu0 0.0
        %2708 = vmatpush1.msra.mxu0 0.0
        %2709 = vmatprep.subr.mxu0 0.0
        %2710 = vmatpush1.msra.mxu0 0.0
        %2711 = vmatprep.subr.mxu0 0.0
        %v2712 = vand.u32 %v2492, 4294901760
        %v2713 = vsub.f32 %v2492, %v2712
        %2714 = vmatpush1.msra.mxu0 %v2713
        %2715 = vmatprep.subr.mxu0 0.0
        %v2716 = vand.u32 %v2491, 4294901760
        %v2717 = vsub.f32 %v2491, %v2716
        %2718 = vmatpush1.msra.mxu0 %v2717
        %2719 = vmatprep.subr.mxu0 0.0
        %2720 = vmatpush2.msra.mxu0 0.0
        %2721 = vmatprep.subr.mxu0 0.0
        %2722 = vmatpush2.msra.mxu0 0.0
        %2723 = vmatprep.subr.mxu0 0.0
        %2724 = vmatpush2.msra.mxu0 0.0
        %2725 = vmatprep.subr.mxu0 0.0
        %2726 = vmatpush2.msra.mxu0 0.0
        %2727 = vmatprep.subr.mxu0 0.0
        %2728 = vmatpush2.msra.mxu0 0.0
        %2729 = vmatprep.subr.mxu0 0.0
        %2730 = vmatpush2.msra.mxu0 0.0
        %2731 = vmatprep.subr.mxu0 0.0
        %2732 = vmatpush2.msra.mxu0 0.0
        %2733 = vmatprep.subr.mxu0 0.0
        %2734 = vmatpush2.msra.mxu0 0.0
        %2735 = vmatprep.subr.mxu0 0.0
        %2736 = vmatpush2.msra.mxu0 0.0
        %2737 = vmatprep.subr.mxu0 0.0
        %2738 = vmatpush2.msra.mxu0 0.0
        %2739 = vmatprep.subr.mxu0 0.0
        %2740 = vmatpush2.msra.mxu0 0.0
        %2741 = vmatprep.subr.mxu0 0.0
        %2742 = vmatpush2.msra.mxu0 0.0
        %2743 = vmatprep.subr.mxu0 0.0
        %2744 = vmatpush2.msra.mxu0 0.0
        %2745 = vmatprep.subr.mxu0 0.0
        %2746 = vmatpush2.msra.mxu0 0.0
        %2747 = vmatprep.subr.mxu0 0.0
        %2748 = vmatpush2.msra.mxu0 0.0
        %2749 = vmatprep.subr.mxu0 0.0
        %2750 = vmatpush2.msra.mxu0 0.0
        %2751 = vmatprep.mubr.f32.mxu0 0.0
        %v2752 = vand.u32 %v281, 4294901760
        %v2753 = vsub.f32 %v281, %v2752
        %2754 = vmatmul.mubr.f32.gmra.mxu0 %v2753
        %v2755 = vpop.f32.mrf.mxu0
        %v2756 = vadd.f32 %v2668, %v2755
        %v2757 = vpop.f32.mrf.mxu0
        %2758 = vmatprep.mubr.f32.mxu0 0.0
        %v2759 = vand.u32 %v284, 4294901760
        %v2760 = vsub.f32 %v284, %v2759
        %2761 = vmatmul.mubr.f32.gmra.mxu0 %v2760
        %v2762 = vpop.f32.mrf.mxu0
        %v2763 = vadd.f32 %v2674, %v2762
        %v2764 = vpop.f32.mrf.mxu0
        %2765 = vmatprep.mubr.f32.mxu0 0.0
        %v2766 = vand.u32 %v287, 4294901760
        %v2767 = vsub.f32 %v287, %v2766
        %2768 = vmatmul.mubr.f32.gmra.mxu0 %v2767
        %v2769 = vpop.f32.mrf.mxu0
        %v2770 = vadd.f32 %v2680, %v2769
        %v2771 = vpop.f32.mrf.mxu0
        %2772 = vdwg.mxu0
        %2773 = vmatprep.subr.mxu0 0.0
        %2774 = vmatpush1.msra.mxu0 0.0
        %2775 = vmatprep.subr.mxu0 0.0
        %2776 = vmatpush1.msra.mxu0 0.0
        %2777 = vmatprep.subr.mxu0 0.0
        %2778 = vmatpush1.msra.mxu0 0.0
        %2779 = vmatprep.subr.mxu0 0.0
        %2780 = vmatpush1.msra.mxu0 0.0
        %2781 = vmatprep.subr.mxu0 0.0
        %2782 = vmatpush1.msra.mxu0 0.0
        %2783 = vmatprep.subr.mxu0 0.0
        %2784 = vmatpush1.msra.mxu0 0.0
        %2785 = vmatprep.subr.mxu0 0.0
        %2786 = vmatpush1.msra.mxu0 0.0
        %2787 = vmatprep.subr.mxu0 0.0
        %2788 = vmatpush1.msra.mxu0 0.0
        %2789 = vmatprep.subr.mxu0 0.0
        %2790 = vmatpush1.msra.mxu0 0.0
        %2791 = vmatprep.subr.mxu0 0.0
        %2792 = vmatpush1.msra.mxu0 0.0
        %2793 = vmatprep.subr.mxu0 0.0
        %2794 = vmatpush1.msra.mxu0 0.0
        %2795 = vmatprep.subr.mxu0 0.0
        %2796 = vmatpush1.msra.mxu0 0.0
        %2797 = vmatprep.subr.mxu0 0.0
        %2798 = vmatpush1.msra.mxu0 0.0
        %2799 = vmatprep.subr.mxu0 0.0
        %2800 = vmatpush1.msra.mxu0 0.0
        %2801 = vmatprep.subr.mxu0 0.0
        %v2802 = vand.u32 %v2492, 4294901760
        %2803 = vmatpush1.msra.mxu0 %v2802
        %2804 = vmatprep.subr.mxu0 0.0
        %v2805 = vand.u32 %v2491, 4294901760
        %2806 = vmatpush1.msra.mxu0 %v2805
        %2807 = vmatprep.subr.mxu0 0.0
        %2808 = vmatpush2.msra.mxu0 0.0
        %2809 = vmatprep.subr.mxu0 0.0
        %2810 = vmatpush2.msra.mxu0 0.0
        %2811 = vmatprep.subr.mxu0 0.0
        %2812 = vmatpush2.msra.mxu0 0.0
        %2813 = vmatprep.subr.mxu0 0.0
        %2814 = vmatpush2.msra.mxu0 0.0
        %2815 = vmatprep.subr.mxu0 0.0
        %2816 = vmatpush2.msra.mxu0 0.0
        %2817 = vmatprep.subr.mxu0 0.0
        %2818 = vmatpush2.msra.mxu0 0.0
        %2819 = vmatprep.subr.mxu0 0.0
        %2820 = vmatpush2.msra.mxu0 0.0
        %2821 = vmatprep.subr.mxu0 0.0
        %2822 = vmatpush2.msra.mxu0 0.0
        %2823 = vmatprep.subr.mxu0 0.0
        %2824 = vmatpush2.msra.mxu0 0.0
        %2825 = vmatprep.subr.mxu0 0.0
        %2826 = vmatpush2.msra.mxu0 0.0
        %2827 = vmatprep.subr.mxu0 0.0
        %2828 = vmatpush2.msra.mxu0 0.0
        %2829 = vmatprep.subr.mxu0 0.0
        %2830 = vmatpush2.msra.mxu0 0.0
        %2831 = vmatprep.subr.mxu0 0.0
        %2832 = vmatpush2.msra.mxu0 0.0
        %2833 = vmatprep.subr.mxu0 0.0
        %2834 = vmatpush2.msra.mxu0 0.0
        %2835 = vmatprep.subr.mxu0 0.0
        %2836 = vmatpush2.msra.mxu0 0.0
        %2837 = vmatprep.subr.mxu0 0.0
        %2838 = vmatpush2.msra.mxu0 0.0
        %2839 = vmatprep.mubr.f32.mxu0 0.0
        %v2840 = vand.u32 %v281, 4294901760
        %v2841 = vsub.f32 %v281, %v2840
        %v2842 = vand.u32 %v2841, 4294901760
        %2843 = vmatmul.mubr.f32.gmra.mxu0 %v2842
        %v2844 = vpop.f32.mrf.mxu0
        %v2845 = vadd.f32 %v2756, %v2844
        %v2846 = vpop.f32.mrf.mxu0
        %2847 = vmatprep.mubr.f32.mxu0 0.0
        %v2848 = vand.u32 %v284, 4294901760
        %v2849 = vsub.f32 %v284, %v2848
        %v2850 = vand.u32 %v2849, 4294901760
        %2851 = vmatmul.mubr.f32.gmra.mxu0 %v2850
        %v2852 = vpop.f32.mrf.mxu0
        %v2853 = vadd.f32 %v2763, %v2852
        %v2854 = vpop.f32.mrf.mxu0
        %2855 = vmatprep.mubr.f32.mxu0 0.0
        %v2856 = vand.u32 %v287, 4294901760
        %v2857 = vsub.f32 %v287, %v2856
        %v2858 = vand.u32 %v2857, 4294901760
        %2859 = vmatmul.mubr.f32.gmra.mxu0 %v2858
        %v2860 = vpop.f32.mrf.mxu0
        %v2861 = vadd.f32 %v2770, %v2860
        %v2862 = vpop.f32.mrf.mxu0
        %2863 = vdwg.mxu0
        %2864 = vmatprep.subr.mxu0 0.0
        %2865 = vmatpush1.msra.mxu0 0.0
        %2866 = vmatprep.subr.mxu0 0.0
        %2867 = vmatpush1.msra.mxu0 0.0
        %2868 = vmatprep.subr.mxu0 0.0
        %2869 = vmatpush1.msra.mxu0 0.0
        %2870 = vmatprep.subr.mxu0 0.0
        %2871 = vmatpush1.msra.mxu0 0.0
        %2872 = vmatprep.subr.mxu0 0.0
        %2873 = vmatpush1.msra.mxu0 0.0
        %2874 = vmatprep.subr.mxu0 0.0
        %2875 = vmatpush1.msra.mxu0 0.0
        %2876 = vmatprep.subr.mxu0 0.0
        %2877 = vmatpush1.msra.mxu0 0.0
        %2878 = vmatprep.subr.mxu0 0.0
        %2879 = vmatpush1.msra.mxu0 0.0
        %2880 = vmatprep.subr.mxu0 0.0
        %2881 = vmatpush1.msra.mxu0 0.0
        %2882 = vmatprep.subr.mxu0 0.0
        %2883 = vmatpush1.msra.mxu0 0.0
        %2884 = vmatprep.subr.mxu0 0.0
        %2885 = vmatpush1.msra.mxu0 0.0
        %2886 = vmatprep.subr.mxu0 0.0
        %2887 = vmatpush1.msra.mxu0 0.0
        %2888 = vmatprep.subr.mxu0 0.0
        %2889 = vmatpush1.msra.mxu0 0.0
        %2890 = vmatprep.subr.mxu0 0.0
        %2891 = vmatpush1.msra.mxu0 0.0
        %2892 = vmatprep.subr.mxu0 0.0
        %v2893 = vand.u32 %v2492, 4294901760
        %v2894 = vsub.f32 %v2492, %v2893
        %v2895 = vand.u32 %v2894, 4294901760
        %2896 = vmatpush1.msra.mxu0 %v2895
        %2897 = vmatprep.subr.mxu0 0.0
        %v2898 = vand.u32 %v2491, 4294901760
        %v2899 = vsub.f32 %v2491, %v2898
        %v2900 = vand.u32 %v2899, 4294901760
        %2901 = vmatpush1.msra.mxu0 %v2900
        %2902 = vmatprep.subr.mxu0 0.0
        %2903 = vmatpush2.msra.mxu0 0.0
        %2904 = vmatprep.subr.mxu0 0.0
        %2905 = vmatpush2.msra.mxu0 0.0
        %2906 = vmatprep.subr.mxu0 0.0
        %2907 = vmatpush2.msra.mxu0 0.0
        %2908 = vmatprep.subr.mxu0 0.0
        %2909 = vmatpush2.msra.mxu0 0.0
        %2910 = vmatprep.subr.mxu0 0.0
        %2911 = vmatpush2.msra.mxu0 0.0
        %2912 = vmatprep.subr.mxu0 0.0
        %2913 = vmatpush2.msra.mxu0 0.0
        %2914 = vmatprep.subr.mxu0 0.0
        %2915 = vmatpush2.msra.mxu0 0.0
        %2916 = vmatprep.subr.mxu0 0.0
        %2917 = vmatpush2.msra.mxu0 0.0
        %2918 = vmatprep.subr.mxu0 0.0
        %2919 = vmatpush2.msra.mxu0 0.0
        %2920 = vmatprep.subr.mxu0 0.0
        %2921 = vmatpush2.msra.mxu0 0.0
        %2922 = vmatprep.subr.mxu0 0.0
        %2923 = vmatpush2.msra.mxu0 0.0
        %2924 = vmatprep.subr.mxu0 0.0
        %2925 = vmatpush2.msra.mxu0 0.0
        %2926 = vmatprep.subr.mxu0 0.0
        %2927 = vmatpush2.msra.mxu0 0.0
        %2928 = vmatprep.subr.mxu0 0.0
        %2929 = vmatpush2.msra.mxu0 0.0
        %2930 = vmatprep.subr.mxu0 0.0
        %2931 = vmatpush2.msra.mxu0 0.0
        %2932 = vmatprep.subr.mxu0 0.0
        %2933 = vmatpush2.msra.mxu0 0.0
        %2934 = vmatprep.mubr.f32.mxu0 0.0
        %v2935 = vand.u32 %v281, 4294901760
        %2936 = vmatmul.mubr.f32.gmra.mxu0 %v2935
        %v2937 = vpop.f32.mrf.mxu0
        %v2938 = vadd.f32 %v2845, %v2937
        %v2939 = vpop.f32.mrf.mxu0
        %2940 = vmatprep.mubr.f32.mxu0 0.0
        %v2941 = vand.u32 %v284, 4294901760
        %2942 = vmatmul.mubr.f32.gmra.mxu0 %v2941
        %v2943 = vpop.f32.mrf.mxu0
        %v2944 = vadd.f32 %v2853, %v2943
        %v2945 = vpop.f32.mrf.mxu0
        %2946 = vmatprep.mubr.f32.mxu0 0.0
        %v2947 = vand.u32 %v287, 4294901760
        %2948 = vmatmul.mubr.f32.gmra.mxu0 %v2947
        %v2949 = vpop.f32.mrf.mxu0
        %v2950 = vadd.f32 %v2861, %v2949
        %v2951 = vpop.f32.mrf.mxu0
        %2952 = vdwg.mxu0
        %2953 = vmatprep.subr.mxu0 0.0
        %2954 = vmatpush1.msra.mxu0 0.0
        %2955 = vmatprep.subr.mxu0 0.0
        %2956 = vmatpush1.msra.mxu0 0.0
        %2957 = vmatprep.subr.mxu0 0.0
        %2958 = vmatpush1.msra.mxu0 0.0
        %2959 = vmatprep.subr.mxu0 0.0
        %2960 = vmatpush1.msra.mxu0 0.0
        %2961 = vmatprep.subr.mxu0 0.0
        %2962 = vmatpush1.msra.mxu0 0.0
        %2963 = vmatprep.subr.mxu0 0.0
        %2964 = vmatpush1.msra.mxu0 0.0
        %2965 = vmatprep.subr.mxu0 0.0
        %2966 = vmatpush1.msra.mxu0 0.0
        %2967 = vmatprep.subr.mxu0 0.0
        %2968 = vmatpush1.msra.mxu0 0.0
        %2969 = vmatprep.subr.mxu0 0.0
        %2970 = vmatpush1.msra.mxu0 0.0
        %2971 = vmatprep.subr.mxu0 0.0
        %2972 = vmatpush1.msra.mxu0 0.0
        %2973 = vmatprep.subr.mxu0 0.0
        %2974 = vmatpush1.msra.mxu0 0.0
        %2975 = vmatprep.subr.mxu0 0.0
        %2976 = vmatpush1.msra.mxu0 0.0
        %2977 = vmatprep.subr.mxu0 0.0
        %2978 = vmatpush1.msra.mxu0 0.0
        %2979 = vmatprep.subr.mxu0 0.0
        %2980 = vmatpush1.msra.mxu0 0.0
        %2981 = vmatprep.subr.mxu0 0.0
        %v2982 = vand.u32 %v2492, 4294901760
        %2983 = vmatpush1.msra.mxu0 %v2982
        %2984 = vmatprep.subr.mxu0 0.0
        %v2985 = vand.u32 %v2491, 4294901760
        %2986 = vmatpush1.msra.mxu0 %v2985
        %2987 = vmatprep.subr.mxu0 0.0
        %2988 = vmatpush2.msra.mxu0 0.0
        %2989 = vmatprep.subr.mxu0 0.0
        %2990 = vmatpush2.msra.mxu0 0.0
        %2991 = vmatprep.subr.mxu0 0.0
        %2992 = vmatpush2.msra.mxu0 0.0
        %2993 = vmatprep.subr.mxu0 0.0
        %2994 = vmatpush2.msra.mxu0 0.0
        %2995 = vmatprep.subr.mxu0 0.0
        %2996 = vmatpush2.msra.mxu0 0.0
        %2997 = vmatprep.subr.mxu0 0.0
        %2998 = vmatpush2.msra.mxu0 0.0
        %2999 = vmatprep.subr.mxu0 0.0
        %3000 = vmatpush2.msra.mxu0 0.0
        %3001 = vmatprep.subr.mxu0 0.0
        %3002 = vmatpush2.msra.mxu0 0.0
        %3003 = vmatprep.subr.mxu0 0.0
        %3004 = vmatpush2.msra.mxu0 0.0
        %3005 = vmatprep.subr.mxu0 0.0
        %3006 = vmatpush2.msra.mxu0 0.0
        %3007 = vmatprep.subr.mxu0 0.0
        %3008 = vmatpush2.msra.mxu0 0.0
        %3009 = vmatprep.subr.mxu0 0.0
        %3010 = vmatpush2.msra.mxu0 0.0
        %3011 = vmatprep.subr.mxu0 0.0
        %3012 = vmatpush2.msra.mxu0 0.0
        %3013 = vmatprep.subr.mxu0 0.0
        %3014 = vmatpush2.msra.mxu0 0.0
        %3015 = vmatprep.subr.mxu0 0.0
        %3016 = vmatpush2.msra.mxu0 0.0
        %3017 = vmatprep.subr.mxu0 0.0
        %3018 = vmatpush2.msra.mxu0 0.0
        %3019 = vmatprep.mubr.f32.mxu0 0.0
        %v3020 = vand.u32 %v281, 4294901760
        %3021 = vmatmul.mubr.f32.gmra.mxu0 %v3020
        %v3022 = vpop.f32.mrf.mxu0
        %v3023 = vadd.f32 %v2938, %v3022
        %v3024 = vpop.f32.mrf.mxu0
        %3025 = vmatprep.mubr.f32.mxu0 0.0
        %v3026 = vand.u32 %v284, 4294901760
        %3027 = vmatmul.mubr.f32.gmra.mxu0 %v3026
        %v3028 = vpop.f32.mrf.mxu0
        %v3029 = vadd.f32 %v2944, %v3028
        %v3030 = vpop.f32.mrf.mxu0
        %3031 = vmatprep.mubr.f32.mxu0 0.0
        %v3032 = vand.u32 %v287, 4294901760
        %3033 = vmatmul.mubr.f32.gmra.mxu0 %v3032
        %v3034 = vpop.f32.mrf.mxu0
        %v3035 = vadd.f32 %v2950, %v3034
        %v3036 = vpop.f32.mrf.mxu0
        %3037 = vdwg.mxu0
        %v3039 = vsel %vm279, %v3023, 0
        %v3042 = vsel %vm279, %v3029, 0
        %v3045 = vsel %vm279, %v3035, 0
        %3047 = vmatprep.subr.mxu0 0.0
        %3048 = vmatpush1.msra.mxu0 0.0
        %3049 = vmatprep.subr.mxu0 0.0
        %3050 = vmatpush1.msra.mxu0 0.0
        %3051 = vmatprep.subr.mxu0 0.0
        %3052 = vmatpush1.msra.mxu0 0.0
        %3053 = vmatprep.subr.mxu0 0.0
        %3054 = vmatpush1.msra.mxu0 0.0
        %3055 = vmatprep.subr.mxu0 0.0
        %3056 = vmatpush1.msra.mxu0 0.0
        %3057 = vmatprep.subr.mxu0 0.0
        %3058 = vmatpush1.msra.mxu0 0.0
        %3059 = vmatprep.subr.mxu0 0.0
        %3060 = vmatpush1.msra.mxu0 0.0
        %3061 = vmatprep.subr.mxu0 0.0
        %3062 = vmatpush1.msra.mxu0 0.0
        %3063 = vmatprep.subr.mxu0 0.0
        %3064 = vmatpush1.msra.mxu0 0.0
        %3065 = vmatprep.subr.mxu0 0.0
        %3066 = vmatpush1.msra.mxu0 0.0
        %3067 = vmatprep.subr.mxu0 0.0
        %3068 = vmatpush1.msra.mxu0 0.0
        %3069 = vmatprep.subr.mxu0 0.0
        %3070 = vmatpush1.msra.mxu0 0.0
        %3071 = vmatprep.subr.mxu0 0.0
        %3072 = vmatpush1.msra.mxu0 0.0
        %3073 = vmatprep.subr.mxu0 0.0
        %3074 = vmatpush1.msra.mxu0 0.0
        %3075 = vmatprep.subr.mxu0 0.0
        %v3076 = vand.u32 %v276, 4294901760
        %3077 = vmatpush1.msra.mxu0 %v3076
        %3078 = vmatprep.subr.mxu0 0.0
        %v3079 = vand.u32 %v275, 4294901760
        %3080 = vmatpush1.msra.mxu0 %v3079
        %3081 = vmatprep.subr.mxu0 0.0
        %3082 = vmatpush2.msra.mxu0 0.0
        %3083 = vmatprep.subr.mxu0 0.0
        %3084 = vmatpush2.msra.mxu0 0.0
        %3085 = vmatprep.subr.mxu0 0.0
        %3086 = vmatpush2.msra.mxu0 0.0
        %3087 = vmatprep.subr.mxu0 0.0
        %3088 = vmatpush2.msra.mxu0 0.0
        %3089 = vmatprep.subr.mxu0 0.0
        %3090 = vmatpush2.msra.mxu0 0.0
        %3091 = vmatprep.subr.mxu0 0.0
        %3092 = vmatpush2.msra.mxu0 0.0
        %3093 = vmatprep.subr.mxu0 0.0
        %3094 = vmatpush2.msra.mxu0 0.0
        %3095 = vmatprep.subr.mxu0 0.0
        %3096 = vmatpush2.msra.mxu0 0.0
        %3097 = vmatprep.subr.mxu0 0.0
        %3098 = vmatpush2.msra.mxu0 0.0
        %3099 = vmatprep.subr.mxu0 0.0
        %3100 = vmatpush2.msra.mxu0 0.0
        %3101 = vmatprep.subr.mxu0 0.0
        %3102 = vmatpush2.msra.mxu0 0.0
        %3103 = vmatprep.subr.mxu0 0.0
        %3104 = vmatpush2.msra.mxu0 0.0
        %3105 = vmatprep.subr.mxu0 0.0
        %3106 = vmatpush2.msra.mxu0 0.0
        %3107 = vmatprep.subr.mxu0 0.0
        %3108 = vmatpush2.msra.mxu0 0.0
        %3109 = vmatprep.subr.mxu0 0.0
        %3110 = vmatpush2.msra.mxu0 0.0
        %3111 = vmatprep.subr.mxu0 0.0
        %3112 = vmatpush2.msra.mxu0 0.0
        %3113 = vmatprep.mubr.f32.mxu0 0.0
        %v3114 = vand.u32 %v3039, 4294901760
        %v3115 = vsub.f32 %v3039, %v3114
        %v3116 = vand.u32 %v3115, 4294901760
        %v3117 = vsub.f32 %v3115, %v3116
        %v3118 = vand.u32 %v3117, 4294901760
        %3119 = vmatmul.mubr.f32.gmra.mxu0 %v3118
        %v3120 = vpop.f32.mrf.mxu0
        %v3121 = vadd.f32 0.0, %v3120
        %v3122 = vpop.f32.mrf.mxu0
        %3123 = vmatprep.mubr.f32.mxu0 0.0
        %v3124 = vand.u32 %v3042, 4294901760
        %v3125 = vsub.f32 %v3042, %v3124
        %v3126 = vand.u32 %v3125, 4294901760
        %v3127 = vsub.f32 %v3125, %v3126
        %v3128 = vand.u32 %v3127, 4294901760
        %3129 = vmatmul.mubr.f32.gmra.mxu0 %v3128
        %v3130 = vpop.f32.mrf.mxu0
        %v3131 = vadd.f32 0.0, %v3130
        %v3132 = vpop.f32.mrf.mxu0
        %3133 = vmatprep.mubr.f32.mxu0 0.0
        %v3134 = vand.u32 %v3045, 4294901760
        %v3135 = vsub.f32 %v3045, %v3134
        %v3136 = vand.u32 %v3135, 4294901760
        %v3137 = vsub.f32 %v3135, %v3136
        %v3138 = vand.u32 %v3137, 4294901760
        %3139 = vmatmul.mubr.f32.gmra.mxu0 %v3138
        %v3140 = vpop.f32.mrf.mxu0
        %v3141 = vadd.f32 0.0, %v3140
        %v3142 = vpop.f32.mrf.mxu0
        %3143 = vdwg.mxu0
        %3144 = vmatprep.subr.mxu0 0.0
        %3145 = vmatpush1.msra.mxu0 0.0
        %3146 = vmatprep.subr.mxu0 0.0
        %3147 = vmatpush1.msra.mxu0 0.0
        %3148 = vmatprep.subr.mxu0 0.0
        %3149 = vmatpush1.msra.mxu0 0.0
        %3150 = vmatprep.subr.mxu0 0.0
        %3151 = vmatpush1.msra.mxu0 0.0
        %3152 = vmatprep.subr.mxu0 0.0
        %3153 = vmatpush1.msra.mxu0 0.0
        %3154 = vmatprep.subr.mxu0 0.0
        %3155 = vmatpush1.msra.mxu0 0.0
        %3156 = vmatprep.subr.mxu0 0.0
        %3157 = vmatpush1.msra.mxu0 0.0
        %3158 = vmatprep.subr.mxu0 0.0
        %3159 = vmatpush1.msra.mxu0 0.0
        %3160 = vmatprep.subr.mxu0 0.0
        %3161 = vmatpush1.msra.mxu0 0.0
        %3162 = vmatprep.subr.mxu0 0.0
        %3163 = vmatpush1.msra.mxu0 0.0
        %3164 = vmatprep.subr.mxu0 0.0
        %3165 = vmatpush1.msra.mxu0 0.0
        %3166 = vmatprep.subr.mxu0 0.0
        %3167 = vmatpush1.msra.mxu0 0.0
        %3168 = vmatprep.subr.mxu0 0.0
        %3169 = vmatpush1.msra.mxu0 0.0
        %3170 = vmatprep.subr.mxu0 0.0
        %3171 = vmatpush1.msra.mxu0 0.0
        %3172 = vmatprep.subr.mxu0 0.0
        %v3173 = vand.u32 %v276, 4294901760
        %v3174 = vsub.f32 %v276, %v3173
        %v3175 = vand.u32 %v3174, 4294901760
        %v3176 = vsub.f32 %v3174, %v3175
        %v3177 = vand.u32 %v3176, 4294901760
        %3178 = vmatpush1.msra.mxu0 %v3177
        %3179 = vmatprep.subr.mxu0 0.0
        %v3180 = vand.u32 %v275, 4294901760
        %v3181 = vsub.f32 %v275, %v3180
        %v3182 = vand.u32 %v3181, 4294901760
        %v3183 = vsub.f32 %v3181, %v3182
        %v3184 = vand.u32 %v3183, 4294901760
        %3185 = vmatpush1.msra.mxu0 %v3184
        %3186 = vmatprep.subr.mxu0 0.0
        %3187 = vmatpush2.msra.mxu0 0.0
        %3188 = vmatprep.subr.mxu0 0.0
        %3189 = vmatpush2.msra.mxu0 0.0
        %3190 = vmatprep.subr.mxu0 0.0
        %3191 = vmatpush2.msra.mxu0 0.0
        %3192 = vmatprep.subr.mxu0 0.0
        %3193 = vmatpush2.msra.mxu0 0.0
        %3194 = vmatprep.subr.mxu0 0.0
        %3195 = vmatpush2.msra.mxu0 0.0
        %3196 = vmatprep.subr.mxu0 0.0
        %3197 = vmatpush2.msra.mxu0 0.0
        %3198 = vmatprep.subr.mxu0 0.0
        %3199 = vmatpush2.msra.mxu0 0.0
        %3200 = vmatprep.subr.mxu0 0.0
        %3201 = vmatpush2.msra.mxu0 0.0
        %3202 = vmatprep.subr.mxu0 0.0
        %3203 = vmatpush2.msra.mxu0 0.0
        %3204 = vmatprep.subr.mxu0 0.0
        %3205 = vmatpush2.msra.mxu0 0.0
        %3206 = vmatprep.subr.mxu0 0.0
        %3207 = vmatpush2.msra.mxu0 0.0
        %3208 = vmatprep.subr.mxu0 0.0
        %3209 = vmatpush2.msra.mxu0 0.0
        %3210 = vmatprep.subr.mxu0 0.0
        %3211 = vmatpush2.msra.mxu0 0.0
        %3212 = vmatprep.subr.mxu0 0.0
        %3213 = vmatpush2.msra.mxu0 0.0
        %3214 = vmatprep.subr.mxu0 0.0
        %3215 = vmatpush2.msra.mxu0 0.0
        %3216 = vmatprep.subr.mxu0 0.0
        %3217 = vmatpush2.msra.mxu0 0.0
        %3218 = vmatprep.mubr.f32.mxu0 0.0
        %v3219 = vand.u32 %v3039, 4294901760
        %3220 = vmatmul.mubr.f32.gmra.mxu0 %v3219
        %v3221 = vpop.f32.mrf.mxu0
        %v3222 = vadd.f32 %v3121, %v3221
        %v3223 = vpop.f32.mrf.mxu0
        %3224 = vmatprep.mubr.f32.mxu0 0.0
        %v3225 = vand.u32 %v3042, 4294901760
        %3226 = vmatmul.mubr.f32.gmra.mxu0 %v3225
        %v3227 = vpop.f32.mrf.mxu0
        %v3228 = vadd.f32 %v3131, %v3227
        %v3229 = vpop.f32.mrf.mxu0
        %3230 = vmatprep.mubr.f32.mxu0 0.0
        %v3231 = vand.u32 %v3045, 4294901760
        %3232 = vmatmul.mubr.f32.gmra.mxu0 %v3231
        %v3233 = vpop.f32.mrf.mxu0
        %v3234 = vadd.f32 %v3141, %v3233
        %v3235 = vpop.f32.mrf.mxu0
        %3236 = vdwg.mxu0
        %3237 = vmatprep.subr.mxu0 0.0
        %3238 = vmatpush1.msra.mxu0 0.0
        %3239 = vmatprep.subr.mxu0 0.0
        %3240 = vmatpush1.msra.mxu0 0.0
        %3241 = vmatprep.subr.mxu0 0.0
        %3242 = vmatpush1.msra.mxu0 0.0
        %3243 = vmatprep.subr.mxu0 0.0
        %3244 = vmatpush1.msra.mxu0 0.0
        %3245 = vmatprep.subr.mxu0 0.0
        %3246 = vmatpush1.msra.mxu0 0.0
        %3247 = vmatprep.subr.mxu0 0.0
        %3248 = vmatpush1.msra.mxu0 0.0
        %3249 = vmatprep.subr.mxu0 0.0
        %3250 = vmatpush1.msra.mxu0 0.0
        %3251 = vmatprep.subr.mxu0 0.0
        %3252 = vmatpush1.msra.mxu0 0.0
        %3253 = vmatprep.subr.mxu0 0.0
        %3254 = vmatpush1.msra.mxu0 0.0
        %3255 = vmatprep.subr.mxu0 0.0
        %3256 = vmatpush1.msra.mxu0 0.0
        %3257 = vmatprep.subr.mxu0 0.0
        %3258 = vmatpush1.msra.mxu0 0.0
        %3259 = vmatprep.subr.mxu0 0.0
        %3260 = vmatpush1.msra.mxu0 0.0
        %3261 = vmatprep.subr.mxu0 0.0
        %3262 = vmatpush1.msra.mxu0 0.0
        %3263 = vmatprep.subr.mxu0 0.0
        %3264 = vmatpush1.msra.mxu0 0.0
        %3265 = vmatprep.subr.mxu0 0.0
        %v3266 = vand.u32 %v276, 4294901760
        %v3267 = vsub.f32 %v276, %v3266
        %3268 = vmatpush1.msra.mxu0 %v3267
        %3269 = vmatprep.subr.mxu0 0.0
        %v3270 = vand.u32 %v275, 4294901760
        %v3271 = vsub.f32 %v275, %v3270
        %3272 = vmatpush1.msra.mxu0 %v3271
        %3273 = vmatprep.subr.mxu0 0.0
        %3274 = vmatpush2.msra.mxu0 0.0
        %3275 = vmatprep.subr.mxu0 0.0
        %3276 = vmatpush2.msra.mxu0 0.0
        %3277 = vmatprep.subr.mxu0 0.0
        %3278 = vmatpush2.msra.mxu0 0.0
        %3279 = vmatprep.subr.mxu0 0.0
        %3280 = vmatpush2.msra.mxu0 0.0
        %3281 = vmatprep.subr.mxu0 0.0
        %3282 = vmatpush2.msra.mxu0 0.0
        %3283 = vmatprep.subr.mxu0 0.0
        %3284 = vmatpush2.msra.mxu0 0.0
        %3285 = vmatprep.subr.mxu0 0.0
        %3286 = vmatpush2.msra.mxu0 0.0
        %3287 = vmatprep.subr.mxu0 0.0
        %3288 = vmatpush2.msra.mxu0 0.0
        %3289 = vmatprep.subr.mxu0 0.0
        %3290 = vmatpush2.msra.mxu0 0.0
        %3291 = vmatprep.subr.mxu0 0.0
        %3292 = vmatpush2.msra.mxu0 0.0
        %3293 = vmatprep.subr.mxu0 0.0
        %3294 = vmatpush2.msra.mxu0 0.0
        %3295 = vmatprep.subr.mxu0 0.0
        %3296 = vmatpush2.msra.mxu0 0.0
        %3297 = vmatprep.subr.mxu0 0.0
        %3298 = vmatpush2.msra.mxu0 0.0
        %3299 = vmatprep.subr.mxu0 0.0
        %3300 = vmatpush2.msra.mxu0 0.0
        %3301 = vmatprep.subr.mxu0 0.0
        %3302 = vmatpush2.msra.mxu0 0.0
        %3303 = vmatprep.subr.mxu0 0.0
        %3304 = vmatpush2.msra.mxu0 0.0
        %3305 = vmatprep.mubr.f32.mxu0 0.0
        %v3306 = vand.u32 %v3039, 4294901760
        %v3307 = vsub.f32 %v3039, %v3306
        %3308 = vmatmul.mubr.f32.gmra.mxu0 %v3307
        %v3309 = vpop.f32.mrf.mxu0
        %v3310 = vadd.f32 %v3222, %v3309
        %v3311 = vpop.f32.mrf.mxu0
        %3312 = vmatprep.mubr.f32.mxu0 0.0
        %v3313 = vand.u32 %v3042, 4294901760
        %v3314 = vsub.f32 %v3042, %v3313
        %3315 = vmatmul.mubr.f32.gmra.mxu0 %v3314
        %v3316 = vpop.f32.mrf.mxu0
        %v3317 = vadd.f32 %v3228, %v3316
        %v3318 = vpop.f32.mrf.mxu0
        %3319 = vmatprep.mubr.f32.mxu0 0.0
        %v3320 = vand.u32 %v3045, 4294901760
        %v3321 = vsub.f32 %v3045, %v3320
        %3322 = vmatmul.mubr.f32.gmra.mxu0 %v3321
        %v3323 = vpop.f32.mrf.mxu0
        %v3324 = vadd.f32 %v3234, %v3323
        %v3325 = vpop.f32.mrf.mxu0
        %3326 = vdwg.mxu0
        %3327 = vmatprep.subr.mxu0 0.0
        %3328 = vmatpush1.msra.mxu0 0.0
        %3329 = vmatprep.subr.mxu0 0.0
        %3330 = vmatpush1.msra.mxu0 0.0
        %3331 = vmatprep.subr.mxu0 0.0
        %3332 = vmatpush1.msra.mxu0 0.0
        %3333 = vmatprep.subr.mxu0 0.0
        %3334 = vmatpush1.msra.mxu0 0.0
        %3335 = vmatprep.subr.mxu0 0.0
        %3336 = vmatpush1.msra.mxu0 0.0
        %3337 = vmatprep.subr.mxu0 0.0
        %3338 = vmatpush1.msra.mxu0 0.0
        %3339 = vmatprep.subr.mxu0 0.0
        %3340 = vmatpush1.msra.mxu0 0.0
        %3341 = vmatprep.subr.mxu0 0.0
        %3342 = vmatpush1.msra.mxu0 0.0
        %3343 = vmatprep.subr.mxu0 0.0
        %3344 = vmatpush1.msra.mxu0 0.0
        %3345 = vmatprep.subr.mxu0 0.0
        %3346 = vmatpush1.msra.mxu0 0.0
        %3347 = vmatprep.subr.mxu0 0.0
        %3348 = vmatpush1.msra.mxu0 0.0
        %3349 = vmatprep.subr.mxu0 0.0
        %3350 = vmatpush1.msra.mxu0 0.0
        %3351 = vmatprep.subr.mxu0 0.0
        %3352 = vmatpush1.msra.mxu0 0.0
        %3353 = vmatprep.subr.mxu0 0.0
        %3354 = vmatpush1.msra.mxu0 0.0
        %3355 = vmatprep.subr.mxu0 0.0
        %v3356 = vand.u32 %v276, 4294901760
        %3357 = vmatpush1.msra.mxu0 %v3356
        %3358 = vmatprep.subr.mxu0 0.0
        %v3359 = vand.u32 %v275, 4294901760
        %3360 = vmatpush1.msra.mxu0 %v3359
        %3361 = vmatprep.subr.mxu0 0.0
        %3362 = vmatpush2.msra.mxu0 0.0
        %3363 = vmatprep.subr.mxu0 0.0
        %3364 = vmatpush2.msra.mxu0 0.0
        %3365 = vmatprep.subr.mxu0 0.0
        %3366 = vmatpush2.msra.mxu0 0.0
        %3367 = vmatprep.subr.mxu0 0.0
        %3368 = vmatpush2.msra.mxu0 0.0
        %3369 = vmatprep.subr.mxu0 0.0
        %3370 = vmatpush2.msra.mxu0 0.0
        %3371 = vmatprep.subr.mxu0 0.0
        %3372 = vmatpush2.msra.mxu0 0.0
        %3373 = vmatprep.subr.mxu0 0.0
        %3374 = vmatpush2.msra.mxu0 0.0
        %3375 = vmatprep.subr.mxu0 0.0
        %3376 = vmatpush2.msra.mxu0 0.0
        %3377 = vmatprep.subr.mxu0 0.0
        %3378 = vmatpush2.msra.mxu0 0.0
        %3379 = vmatprep.subr.mxu0 0.0
        %3380 = vmatpush2.msra.mxu0 0.0
        %3381 = vmatprep.subr.mxu0 0.0
        %3382 = vmatpush2.msra.mxu0 0.0
        %3383 = vmatprep.subr.mxu0 0.0
        %3384 = vmatpush2.msra.mxu0 0.0
        %3385 = vmatprep.subr.mxu0 0.0
        %3386 = vmatpush2.msra.mxu0 0.0
        %3387 = vmatprep.subr.mxu0 0.0
        %3388 = vmatpush2.msra.mxu0 0.0
        %3389 = vmatprep.subr.mxu0 0.0
        %3390 = vmatpush2.msra.mxu0 0.0
        %3391 = vmatprep.subr.mxu0 0.0
        %3392 = vmatpush2.msra.mxu0 0.0
        %3393 = vmatprep.mubr.f32.mxu0 0.0
        %v3394 = vand.u32 %v3039, 4294901760
        %v3395 = vsub.f32 %v3039, %v3394
        %v3396 = vand.u32 %v3395, 4294901760
        %3397 = vmatmul.mubr.f32.gmra.mxu0 %v3396
        %v3398 = vpop.f32.mrf.mxu0
        %v3399 = vadd.f32 %v3310, %v3398
        %v3400 = vpop.f32.mrf.mxu0
        %3401 = vmatprep.mubr.f32.mxu0 0.0
        %v3402 = vand.u32 %v3042, 4294901760
        %v3403 = vsub.f32 %v3042, %v3402
        %v3404 = vand.u32 %v3403, 4294901760
        %3405 = vmatmul.mubr.f32.gmra.mxu0 %v3404
        %v3406 = vpop.f32.mrf.mxu0
        %v3407 = vadd.f32 %v3317, %v3406
        %v3408 = vpop.f32.mrf.mxu0
        %3409 = vmatprep.mubr.f32.mxu0 0.0
        %v3410 = vand.u32 %v3045, 4294901760
        %v3411 = vsub.f32 %v3045, %v3410
        %v3412 = vand.u32 %v3411, 4294901760
        %3413 = vmatmul.mubr.f32.gmra.mxu0 %v3412
        %v3414 = vpop.f32.mrf.mxu0
        %v3415 = vadd.f32 %v3324, %v3414
        %v3416 = vpop.f32.mrf.mxu0
        %3417 = vdwg.mxu0
        %3418 = vmatprep.subr.mxu0 0.0
        %3419 = vmatpush1.msra.mxu0 0.0
        %3420 = vmatprep.subr.mxu0 0.0
        %3421 = vmatpush1.msra.mxu0 0.0
        %3422 = vmatprep.subr.mxu0 0.0
        %3423 = vmatpush1.msra.mxu0 0.0
        %3424 = vmatprep.subr.mxu0 0.0
        %3425 = vmatpush1.msra.mxu0 0.0
        %3426 = vmatprep.subr.mxu0 0.0
        %3427 = vmatpush1.msra.mxu0 0.0
        %3428 = vmatprep.subr.mxu0 0.0
        %3429 = vmatpush1.msra.mxu0 0.0
        %3430 = vmatprep.subr.mxu0 0.0
        %3431 = vmatpush1.msra.mxu0 0.0
        %3432 = vmatprep.subr.mxu0 0.0
        %3433 = vmatpush1.msra.mxu0 0.0
        %3434 = vmatprep.subr.mxu0 0.0
        %3435 = vmatpush1.msra.mxu0 0.0
        %3436 = vmatprep.subr.mxu0 0.0
        %3437 = vmatpush1.msra.mxu0 0.0
        %3438 = vmatprep.subr.mxu0 0.0
        %3439 = vmatpush1.msra.mxu0 0.0
        %3440 = vmatprep.subr.mxu0 0.0
        %3441 = vmatpush1.msra.mxu0 0.0
        %3442 = vmatprep.subr.mxu0 0.0
        %3443 = vmatpush1.msra.mxu0 0.0
        %3444 = vmatprep.subr.mxu0 0.0
        %3445 = vmatpush1.msra.mxu0 0.0
        %3446 = vmatprep.subr.mxu0 0.0
        %v3447 = vand.u32 %v276, 4294901760
        %v3448 = vsub.f32 %v276, %v3447
        %v3449 = vand.u32 %v3448, 4294901760
        %3450 = vmatpush1.msra.mxu0 %v3449
        %3451 = vmatprep.subr.mxu0 0.0
        %v3452 = vand.u32 %v275, 4294901760
        %v3453 = vsub.f32 %v275, %v3452
        %v3454 = vand.u32 %v3453, 4294901760
        %3455 = vmatpush1.msra.mxu0 %v3454
        %3456 = vmatprep.subr.mxu0 0.0
        %3457 = vmatpush2.msra.mxu0 0.0
        %3458 = vmatprep.subr.mxu0 0.0
        %3459 = vmatpush2.msra.mxu0 0.0
        %3460 = vmatprep.subr.mxu0 0.0
        %3461 = vmatpush2.msra.mxu0 0.0
        %3462 = vmatprep.subr.mxu0 0.0
        %3463 = vmatpush2.msra.mxu0 0.0
        %3464 = vmatprep.subr.mxu0 0.0
        %3465 = vmatpush2.msra.mxu0 0.0
        %3466 = vmatprep.subr.mxu0 0.0
        %3467 = vmatpush2.msra.mxu0 0.0
        %3468 = vmatprep.subr.mxu0 0.0
        %3469 = vmatpush2.msra.mxu0 0.0
        %3470 = vmatprep.subr.mxu0 0.0
        %3471 = vmatpush2.msra.mxu0 0.0
        %3472 = vmatprep.subr.mxu0 0.0
        %3473 = vmatpush2.msra.mxu0 0.0
        %3474 = vmatprep.subr.mxu0 0.0
        %3475 = vmatpush2.msra.mxu0 0.0
        %3476 = vmatprep.subr.mxu0 0.0
        %3477 = vmatpush2.msra.mxu0 0.0
        %3478 = vmatprep.subr.mxu0 0.0
        %3479 = vmatpush2.msra.mxu0 0.0
        %3480 = vmatprep.subr.mxu0 0.0
        %3481 = vmatpush2.msra.mxu0 0.0
        %3482 = vmatprep.subr.mxu0 0.0
        %3483 = vmatpush2.msra.mxu0 0.0
        %3484 = vmatprep.subr.mxu0 0.0
        %3485 = vmatpush2.msra.mxu0 0.0
        %3486 = vmatprep.subr.mxu0 0.0
        %3487 = vmatpush2.msra.mxu0 0.0
        %3488 = vmatprep.mubr.f32.mxu0 0.0
        %v3489 = vand.u32 %v3039, 4294901760
        %3490 = vmatmul.mubr.f32.gmra.mxu0 %v3489
        %v3491 = vpop.f32.mrf.mxu0
        %v3492 = vadd.f32 %v3399, %v3491
        %v3493 = vpop.f32.mrf.mxu0
        %3494 = vmatprep.mubr.f32.mxu0 0.0
        %v3495 = vand.u32 %v3042, 4294901760
        %3496 = vmatmul.mubr.f32.gmra.mxu0 %v3495
        %v3497 = vpop.f32.mrf.mxu0
        %v3498 = vadd.f32 %v3407, %v3497
        %v3499 = vpop.f32.mrf.mxu0
        %3500 = vmatprep.mubr.f32.mxu0 0.0
        %v3501 = vand.u32 %v3045, 4294901760
        %3502 = vmatmul.mubr.f32.gmra.mxu0 %v3501
        %v3503 = vpop.f32.mrf.mxu0
        %v3504 = vadd.f32 %v3415, %v3503
        %v3505 = vpop.f32.mrf.mxu0
        %3506 = vdwg.mxu0
        %3507 = vmatprep.subr.mxu0 0.0
        %3508 = vmatpush1.msra.mxu0 0.0
        %3509 = vmatprep.subr.mxu0 0.0
        %3510 = vmatpush1.msra.mxu0 0.0
        %3511 = vmatprep.subr.mxu0 0.0
        %3512 = vmatpush1.msra.mxu0 0.0
        %3513 = vmatprep.subr.mxu0 0.0
        %3514 = vmatpush1.msra.mxu0 0.0
        %3515 = vmatprep.subr.mxu0 0.0
        %3516 = vmatpush1.msra.mxu0 0.0
        %3517 = vmatprep.subr.mxu0 0.0
        %3518 = vmatpush1.msra.mxu0 0.0
        %3519 = vmatprep.subr.mxu0 0.0
        %3520 = vmatpush1.msra.mxu0 0.0
        %3521 = vmatprep.subr.mxu0 0.0
        %3522 = vmatpush1.msra.mxu0 0.0
        %3523 = vmatprep.subr.mxu0 0.0
        %3524 = vmatpush1.msra.mxu0 0.0
        %3525 = vmatprep.subr.mxu0 0.0
        %3526 = vmatpush1.msra.mxu0 0.0
        %3527 = vmatprep.subr.mxu0 0.0
        %3528 = vmatpush1.msra.mxu0 0.0
        %3529 = vmatprep.subr.mxu0 0.0
        %3530 = vmatpush1.msra.mxu0 0.0
        %3531 = vmatprep.subr.mxu0 0.0
        %3532 = vmatpush1.msra.mxu0 0.0
        %3533 = vmatprep.subr.mxu0 0.0
        %3534 = vmatpush1.msra.mxu0 0.0
        %3535 = vmatprep.subr.mxu0 0.0
        %v3536 = vand.u32 %v276, 4294901760
        %3537 = vmatpush1.msra.mxu0 %v3536
        %3538 = vmatprep.subr.mxu0 0.0
        %v3539 = vand.u32 %v275, 4294901760
        %3540 = vmatpush1.msra.mxu0 %v3539
        %3541 = vmatprep.subr.mxu0 0.0
        %3542 = vmatpush2.msra.mxu0 0.0
        %3543 = vmatprep.subr.mxu0 0.0
        %3544 = vmatpush2.msra.mxu0 0.0
        %3545 = vmatprep.subr.mxu0 0.0
        %3546 = vmatpush2.msra.mxu0 0.0
        %3547 = vmatprep.subr.mxu0 0.0
        %3548 = vmatpush2.msra.mxu0 0.0
        %3549 = vmatprep.subr.mxu0 0.0
        %3550 = vmatpush2.msra.mxu0 0.0
        %3551 = vmatprep.subr.mxu0 0.0
        %3552 = vmatpush2.msra.mxu0 0.0
        %3553 = vmatprep.subr.mxu0 0.0
        %3554 = vmatpush2.msra.mxu0 0.0
        %3555 = vmatprep.subr.mxu0 0.0
        %3556 = vmatpush2.msra.mxu0 0.0
        %3557 = vmatprep.subr.mxu0 0.0
        %3558 = vmatpush2.msra.mxu0 0.0
        %3559 = vmatprep.subr.mxu0 0.0
        %3560 = vmatpush2.msra.mxu0 0.0
        %3561 = vmatprep.subr.mxu0 0.0
        %3562 = vmatpush2.msra.mxu0 0.0
        %3563 = vmatprep.subr.mxu0 0.0
        %3564 = vmatpush2.msra.mxu0 0.0
        %3565 = vmatprep.subr.mxu0 0.0
        %3566 = vmatpush2.msra.mxu0 0.0
        %3567 = vmatprep.subr.mxu0 0.0
        %3568 = vmatpush2.msra.mxu0 0.0
        %3569 = vmatprep.subr.mxu0 0.0
        %3570 = vmatpush2.msra.mxu0 0.0
        %3571 = vmatprep.subr.mxu0 0.0
        %3572 = vmatpush2.msra.mxu0 0.0
        %3573 = vmatprep.mubr.f32.mxu0 0.0
        %v3574 = vand.u32 %v3039, 4294901760
        %3575 = vmatmul.mubr.f32.gmra.mxu0 %v3574
        %v3576 = vpop.f32.mrf.mxu0
        %v3577 = vadd.f32 %v3492, %v3576
        %v3578 = vpop.f32.mrf.mxu0
        %3579 = vmatprep.mubr.f32.mxu0 0.0
        %v3580 = vand.u32 %v3042, 4294901760
        %3581 = vmatmul.mubr.f32.gmra.mxu0 %v3580
        %v3582 = vpop.f32.mrf.mxu0
        %v3583 = vadd.f32 %v3498, %v3582
        %v3584 = vpop.f32.mrf.mxu0
        %3585 = vmatprep.mubr.f32.mxu0 0.0
        %v3586 = vand.u32 %v3045, 4294901760
        %3587 = vmatmul.mubr.f32.gmra.mxu0 %v3586
        %v3588 = vpop.f32.mrf.mxu0
        %v3589 = vadd.f32 %v3504, %v3588
        %v3590 = vpop.f32.mrf.mxu0
        %3591 = vdwg.mxu0
        %s3592 = sld [smem:[#allocation6]]
        %s3593 = sld [smem:[#allocation5]]
        %v3594 = vstv %s3593
        %v3595 = vmul.f32 %v3594, %v1373
        %v3596 = vmul.f32 %v3594, %v1379
        %v3597 = vmul.f32 %v3594, %v1385
        %v3598 = vstv %s3592
        %v3599 = vadd.f32 %v3598, %v3595
        %v3600 = vadd.f32 %v3598, %v3596
        %v3601 = vadd.f32 %v3598, %v3597
        %s3602 = sld [smem:[#allocation5 + $0x1]]
        %v3603 = vstv %s3602
        %v3604 = vmul.f32 %v3603, %v2475
        %v3605 = vmul.f32 %v3603, %v2481
        %v3606 = vmul.f32 %v3603, %v2487
        %v3607 = vadd.f32 %v3599, %v3604
        %v3608 = vadd.f32 %v3600, %v3605
        %v3609 = vadd.f32 %v3601, %v3606
        %s3610 = sld [smem:[#allocation5 + $0x2]]
        %v3611 = vstv %s3610
        %v3612 = vmul.f32 %v3611, %v3577
        %v3613 = vmul.f32 %v3611, %v3583
        %v3614 = vmul.f32 %v3611, %v3589
        %v3615 = vadd.f32 %v3607, %v3612
        %v3616 = vadd.f32 %v3608, %v3613
        %v3617 = vadd.f32 %v3609, %v3614
        %v3618 = vmax.f32 %v3615, -3.0
        %v3619 = vmax.f32 %v3616, -3.0
        %v3620 = vmax.f32 %v3617, -3.0
        %v3621 = vmin.f32 %v3618, 6.0
        %v3622 = vmin.f32 %v3619, 6.0
        %v3623 = vmin.f32 %v3620, 6.0
        %v3624 = vmul.f32 %v3621, 0.16666667
        %v3625 = vmul.f32 %v3622, 0.16666667
        %v3626 = vmul.f32 %v3623, 0.16666667
        %vm3627 = vcmask 146432
        %3628 = vst.msk [vmem:[%s271] sm:$0xff] %vm3627, %v3624
        %3629 = vst.msk [vmem:[%s271 + $0x8] sm:$0xff] %vm3627, %v3625
        %vm3630 = vcmask 140288
        %3631 = vst.msk [vmem:[%s271 + $0x10] sm:$0x3] %vm3630, %v3626
        %s3632 = sld [smem:[#allocation6 + $0x1]]
        %s3633 = sld [smem:[#allocation5 + $0x80]]
        %v3634 = vstv %s3633
        %v3635 = vmul.f32 %v3634, %v1373
        %v3636 = vmul.f32 %v3634, %v1379
        %v3637 = vmul.f32 %v3634, %v1385
        %v3638 = vstv %s3632
        %v3639 = vadd.f32 %v3638, %v3635
        %v3640 = vadd.f32 %v3638, %v3636
        %v3641 = vadd.f32 %v3638, %v3637
        %s3642 = sld [smem:[#allocation5 + $0x81]]
        %v3643 = vstv %s3642
        %v3644 = vmul.f32 %v3643, %v2475
        %v3645 = vmul.f32 %v3643, %v2481
        %v3646 = vmul.f32 %v3643, %v2487
        %v3647 = vadd.f32 %v3639, %v3644
        %v3648 = vadd.f32 %v3640, %v3645
        %v3649 = vadd.f32 %v3641, %v3646
        %s3650 = sld [smem:[#allocation5 + $0x82]]
        %v3651 = vstv %s3650
        %v3652 = vmul.f32 %v3651, %v3577
        %v3653 = vmul.f32 %v3651, %v3583
        %v3654 = vmul.f32 %v3651, %v3589
        %v3655 = vadd.f32 %v3647, %v3652
        %v3656 = vadd.f32 %v3648, %v3653
        %v3657 = vadd.f32 %v3649, %v3654
        %v3658 = vmax.f32 %v3655, -3.0
        %v3659 = vmax.f32 %v3656, -3.0
        %v3660 = vmax.f32 %v3657, -3.0
        %v3661 = vmin.f32 %v3658, 6.0
        %v3662 = vmin.f32 %v3659, 6.0
        %v3663 = vmin.f32 %v3660, 6.0
        %v3664 = vmul.f32 %v3661, 0.16666667
        %v3665 = vmul.f32 %v3662, 0.16666667
        %v3666 = vmul.f32 %v3663, 0.16666667
        %s3667 = scalar_lea.vmem %s271, 24
        %3668 = vst.msk [vmem:[%s3667] sm:$0xff] %vm3627, %v3664
        %3669 = vst.msk [vmem:[%s3667 + $0x8] sm:$0xff] %vm3627, %v3665
        %3670 = vst.msk [vmem:[%s3667 + $0x10] sm:$0x3] %vm3630, %v3666
        %s3671 = sld [smem:[#allocation6 + $0x2]]
        %s3672 = sld [smem:[#allocation5 + $0x100]]
        %v3673 = vstv %s3672
        %v3674 = vmul.f32 %v3673, %v1373
        %v3675 = vmul.f32 %v3673, %v1379
        %v3676 = vmul.f32 %v3673, %v1385
        %v3677 = vstv %s3671
        %v3678 = vadd.f32 %v3677, %v3674
        %v3679 = vadd.f32 %v3677, %v3675
        %v3680 = vadd.f32 %v3677, %v3676
        %s3681 = sld [smem:[#allocation5 + $0x101]]
        %v3682 = vstv %s3681
        %v3683 = vmul.f32 %v3682, %v2475
        %v3684 = vmul.f32 %v3682, %v2481
        %v3685 = vmul.f32 %v3682, %v2487
        %v3686 = vadd.f32 %v3678, %v3683
        %v3687 = vadd.f32 %v3679, %v3684
        %v3688 = vadd.f32 %v3680, %v3685
        %s3689 = sld [smem:[#allocation5 + $0x102]]
        %v3690 = vstv %s3689
        %v3691 = vmul.f32 %v3690, %v3577
        %v3692 = vmul.f32 %v3690, %v3583
        %v3693 = vmul.f32 %v3690, %v3589
        %v3694 = vadd.f32 %v3686, %v3691
        %v3695 = vadd.f32 %v3687, %v3692
        %v3696 = vadd.f32 %v3688, %v3693
        %v3697 = vmax.f32 %v3694, -3.0
        %v3698 = vmax.f32 %v3695, -3.0
        %v3699 = vmax.f32 %v3696, -3.0
        %v3700 = vmin.f32 %v3697, 6.0
        %v3701 = vmin.f32 %v3698, 6.0
        %v3702 = vmin.f32 %v3699, 6.0
        %v3703 = vmul.f32 %v3700, 0.16666667
        %v3704 = vmul.f32 %v3701, 0.16666667
        %v3705 = vmul.f32 %v3702, 0.16666667
        %s3706 = scalar_lea.vmem %s271, 48
        %3707 = vst.msk [vmem:[%s3706] sm:$0xff] %vm3627, %v3703
        %3708 = vst.msk [vmem:[%s3706 + $0x8] sm:$0xff] %vm3627, %v3704
        %3709 = vst.msk [vmem:[%s3706 + $0x10] sm:$0x3] %vm3630, %v3705
        %s3710 = sld [smem:[#allocation6 + $0x3]]
        %s3711 = sld [smem:[#allocation5 + $0x180]]
        %v3712 = vstv %s3711
        %v3713 = vmul.f32 %v3712, %v1373
        %v3714 = vmul.f32 %v3712, %v1379
        %v3715 = vmul.f32 %v3712, %v1385
        %v3716 = vstv %s3710
        %v3717 = vadd.f32 %v3716, %v3713
        %v3718 = vadd.f32 %v3716, %v3714
        %v3719 = vadd.f32 %v3716, %v3715
        %s3720 = sld [smem:[#allocation5 + $0x181]]
        %v3721 = vstv %s3720
        %v3722 = vmul.f32 %v3721, %v2475
        %v3723 = vmul.f32 %v3721, %v2481
        %v3724 = vmul.f32 %v3721, %v2487
        %v3725 = vadd.f32 %v3717, %v3722
        %v3726 = vadd.f32 %v3718, %v3723
        %v3727 = vadd.f32 %v3719, %v3724
        %s3728 = sld [smem:[#allocation5 + $0x182]]
        %v3729 = vstv %s3728
        %v3730 = vmul.f32 %v3729, %v3577
        %v3731 = vmul.f32 %v3729, %v3583
        %v3732 = vmul.f32 %v3729, %v3589
        %v3733 = vadd.f32 %v3725, %v3730
        %v3734 = vadd.f32 %v3726, %v3731
        %v3735 = vadd.f32 %v3727, %v3732
        %v3736 = vmax.f32 %v3733, -3.0
        %v3737 = vmax.f32 %v3734, -3.0
        %v3738 = vmax.f32 %v3735, -3.0
        %v3739 = vmin.f32 %v3736, 6.0
        %v3740 = vmin.f32 %v3737, 6.0
        %v3741 = vmin.f32 %v3738, 6.0
        %v3742 = vmul.f32 %v3739, 0.16666667
        %v3743 = vmul.f32 %v3740, 0.16666667
        %v3744 = vmul.f32 %v3741, 0.16666667
        %s3745 = scalar_lea.vmem %s271, 72
        %3746 = vst.msk [vmem:[%s3745] sm:$0xff] %vm3627, %v3742
        %3747 = vst.msk [vmem:[%s3745 + $0x8] sm:$0xff] %vm3627, %v3743
        %3748 = vst.msk [vmem:[%s3745 + $0x10] sm:$0x3] %vm3630, %v3744
        %s3749 = sld [smem:[#allocation6 + $0x4]]
        %s3750 = sld [smem:[#allocation5 + $0x200]]
        %v3751 = vstv %s3750
        %v3752 = vmul.f32 %v3751, %v1373
        %v3753 = vmul.f32 %v3751, %v1379
        %v3754 = vmul.f32 %v3751, %v1385
        %v3755 = vstv %s3749
        %v3756 = vadd.f32 %v3755, %v3752
        %v3757 = vadd.f32 %v3755, %v3753
        %v3758 = vadd.f32 %v3755, %v3754
        %s3759 = sld [smem:[#allocation5 + $0x201]]
        %v3760 = vstv %s3759
        %v3761 = vmul.f32 %v3760, %v2475
        %v3762 = vmul.f32 %v3760, %v2481
        %v3763 = vmul.f32 %v3760, %v2487
        %v3764 = vadd.f32 %v3756, %v3761
        %v3765 = vadd.f32 %v3757, %v3762
        %v3766 = vadd.f32 %v3758, %v3763
        %s3767 = sld [smem:[#allocation5 + $0x202]]
        %v3768 = vstv %s3767
        %v3769 = vmul.f32 %v3768, %v3577
        %v3770 = vmul.f32 %v3768, %v3583
        %v3771 = vmul.f32 %v3768, %v3589
        %v3772 = vadd.f32 %v3764, %v3769
        %v3773 = vadd.f32 %v3765, %v3770
        %v3774 = vadd.f32 %v3766, %v3771
        %v3775 = vmax.f32 %v3772, -3.0
        %v3776 = vmax.f32 %v3773, -3.0
        %v3777 = vmax.f32 %v3774, -3.0
        %v3778 = vmin.f32 %v3775, 6.0
        %v3779 = vmin.f32 %v3776, 6.0
        %v3780 = vmin.f32 %v3777, 6.0
        %v3781 = vmul.f32 %v3778, 0.16666667
        %v3782 = vmul.f32 %v3779, 0.16666667
        %v3783 = vmul.f32 %v3780, 0.16666667
        %s3784 = scalar_lea.vmem %s271, 96
        %3785 = vst.msk [vmem:[%s3784] sm:$0xff] %vm3627, %v3781
        %3786 = vst.msk [vmem:[%s3784 + $0x8] sm:$0xff] %vm3627, %v3782
        %3787 = vst.msk [vmem:[%s3784 + $0x10] sm:$0x3] %vm3630, %v3783
        %s3788 = sld [smem:[#allocation6 + $0x5]]
        %s3789 = sld [smem:[#allocation5 + $0x280]]
        %v3790 = vstv %s3789
        %v3791 = vmul.f32 %v3790, %v1373
        %v3792 = vmul.f32 %v3790, %v1379
        %v3793 = vmul.f32 %v3790, %v1385
        %v3794 = vstv %s3788
        %v3795 = vadd.f32 %v3794, %v3791
        %v3796 = vadd.f32 %v3794, %v3792
        %v3797 = vadd.f32 %v3794, %v3793
        %s3798 = sld [smem:[#allocation5 + $0x281]]
        %v3799 = vstv %s3798
        %v3800 = vmul.f32 %v3799, %v2475
        %v3801 = vmul.f32 %v3799, %v2481
        %v3802 = vmul.f32 %v3799, %v2487
        %v3803 = vadd.f32 %v3795, %v3800
        %v3804 = vadd.f32 %v3796, %v3801
        %v3805 = vadd.f32 %v3797, %v3802
        %s3806 = sld [smem:[#allocation5 + $0x282]]
        %v3807 = vstv %s3806
        %v3808 = vmul.f32 %v3807, %v3577
        %v3809 = vmul.f32 %v3807, %v3583
        %v3810 = vmul.f32 %v3807, %v3589
        %v3811 = vadd.f32 %v3803, %v3808
        %v3812 = vadd.f32 %v3804, %v3809
        %v3813 = vadd.f32 %v3805, %v3810
        %v3814 = vmax.f32 %v3811, -3.0
        %v3815 = vmax.f32 %v3812, -3.0
        %v3816 = vmax.f32 %v3813, -3.0
        %v3817 = vmin.f32 %v3814, 6.0
        %v3818 = vmin.f32 %v3815, 6.0
        %v3819 = vmin.f32 %v3816, 6.0
        %v3820 = vmul.f32 %v3817, 0.16666667
        %v3821 = vmul.f32 %v3818, 0.16666667
        %v3822 = vmul.f32 %v3819, 0.16666667
        %s3823 = scalar_lea.vmem %s271, 120
        %3824 = vst.msk [vmem:[%s3823] sm:$0xff] %vm3627, %v3820
        %3825 = vst.msk [vmem:[%s3823 + $0x8] sm:$0xff] %vm3627, %v3821
        %3826 = vst.msk [vmem:[%s3823 + $0x10] sm:$0x3] %vm3630, %v3822
        %s3827 = sld [smem:[#allocation6 + $0x6]]
        %s3828 = sld [smem:[#allocation5 + $0x300]]
        %v3829 = vstv %s3828
        %v3830 = vmul.f32 %v3829, %v1373
        %v3831 = vmul.f32 %v3829, %v1379
        %v3832 = vmul.f32 %v3829, %v1385
        %v3833 = vstv %s3827
        %v3834 = vadd.f32 %v3833, %v3830
        %v3835 = vadd.f32 %v3833, %v3831
        %v3836 = vadd.f32 %v3833, %v3832
        %s3837 = sld [smem:[#allocation5 + $0x301]]
        %v3838 = vstv %s3837
        %v3839 = vmul.f32 %v3838, %v2475
        %v3840 = vmul.f32 %v3838, %v2481
        %v3841 = vmul.f32 %v3838, %v2487
        %v3842 = vadd.f32 %v3834, %v3839
        %v3843 = vadd.f32 %v3835, %v3840
        %v3844 = vadd.f32 %v3836, %v3841
        %s3845 = sld [smem:[#allocation5 + $0x302]]
        %v3846 = vstv %s3845
        %v3847 = vmul.f32 %v3846, %v3577
        %v3848 = vmul.f32 %v3846, %v3583
        %v3849 = vmul.f32 %v3846, %v3589
        %v3850 = vadd.f32 %v3842, %v3847
        %v3851 = vadd.f32 %v3843, %v3848
        %v3852 = vadd.f32 %v3844, %v3849
        %v3853 = vmax.f32 %v3850, -3.0
        %v3854 = vmax.f32 %v3851, -3.0
        %v3855 = vmax.f32 %v3852, -3.0
        %v3856 = vmin.f32 %v3853, 6.0
        %v3857 = vmin.f32 %v3854, 6.0
        %v3858 = vmin.f32 %v3855, 6.0
        %v3859 = vmul.f32 %v3856, 0.16666667
        %v3860 = vmul.f32 %v3857, 0.16666667
        %v3861 = vmul.f32 %v3858, 0.16666667
        %s3862 = scalar_lea.vmem %s271, 144
        %3863 = vst.msk [vmem:[%s3862] sm:$0xff] %vm3627, %v3859
        %3864 = vst.msk [vmem:[%s3862 + $0x8] sm:$0xff] %vm3627, %v3860
        %3865 = vst.msk [vmem:[%s3862 + $0x10] sm:$0x3] %vm3630, %v3861
        %s3866 = sld [smem:[#allocation6 + $0x7]]
        %s3867 = sld [smem:[#allocation5 + $0x380]]
        %v3868 = vstv %s3867
        %v3869 = vmul.f32 %v3868, %v1373
        %v3870 = vmul.f32 %v3868, %v1379
        %v3871 = vmul.f32 %v3868, %v1385
        %v3872 = vstv %s3866
        %v3873 = vadd.f32 %v3872, %v3869
        %v3874 = vadd.f32 %v3872, %v3870
        %v3875 = vadd.f32 %v3872, %v3871
        %s3876 = sld [smem:[#allocation5 + $0x381]]
        %v3877 = vstv %s3876
        %v3878 = vmul.f32 %v3877, %v2475
        %v3879 = vmul.f32 %v3877, %v2481
        %v3880 = vmul.f32 %v3877, %v2487
        %v3881 = vadd.f32 %v3873, %v3878
        %v3882 = vadd.f32 %v3874, %v3879
        %v3883 = vadd.f32 %v3875, %v3880
        %s3884 = sld [smem:[#allocation5 + $0x382]]
        %v3885 = vstv %s3884
        %v3886 = vmul.f32 %v3885, %v3577
        %v3887 = vmul.f32 %v3885, %v3583
        %v3888 = vmul.f32 %v3885, %v3589
        %v3889 = vadd.f32 %v3881, %v3886
        %v3890 = vadd.f32 %v3882, %v3887
        %v3891 = vadd.f32 %v3883, %v3888
        %v3892 = vmax.f32 %v3889, -3.0
        %v3893 = vmax.f32 %v3890, -3.0
        %v3894 = vmax.f32 %v3891, -3.0
        %v3895 = vmin.f32 %v3892, 6.0
        %v3896 = vmin.f32 %v3893, 6.0
        %v3897 = vmin.f32 %v3894, 6.0
        %v3898 = vmul.f32 %v3895, 0.16666667
        %v3899 = vmul.f32 %v3896, 0.16666667
        %v3900 = vmul.f32 %v3897, 0.16666667
        %s3901 = scalar_lea.vmem %s271, 168
        %3902 = vst.msk [vmem:[%s3901] sm:$0xff] %vm3627, %v3898
        %3903 = vst.msk [vmem:[%s3901 + $0x8] sm:$0xff] %vm3627, %v3899
        %3904 = vst.msk [vmem:[%s3901 + $0x10] sm:$0x3] %vm3630, %v3900
        %p3905 = scmp.lt.s32.totalorder %s21, 1
        %s3906 = scalar_select %p3905, %s21, 1
        %s3907 = smul.addr %s3906, 24
        %s3908 = smul.addr %s3907, 8
        %s3909 = scalar_lea.vmem %s5, %s3908
        // Predicated region
        $region53: #{tpu_custom_call.1} parent=39 // pred_check
          %p3910 = pneg %p149
        $region54: #{tpu_custom_call.1} parent=39 // pred_check_branch
          %3912 = sbr.rel (%p3910) target = $region56
        $region55: #{tpu_custom_call.1} parent=39 // pred_region
          _
        $region56: #{tpu_custom_call.1} parent=39 // pred_fallthru
          _
      $region40: #{tpu_custom_call.1} parent=5 // pred_fallthru
        _
      %p3913 = scmp.le.s32.totalorder 2, %s16
      // Predicated region
      $region57: #{tpu_custom_call.1} parent=5 // pred_check
        %p3914 = pneg %p3913
      $region58: #{tpu_custom_call.1} parent=5 // pred_check_branch
        %3916 = sbr.rel (%p3914) target = $region60
      $region59: #{tpu_custom_call.1} parent=5 // pred_region
        %s3917 = ssub.s32 %s16, 2
        // Predicated region
        $region61: #{tpu_custom_call.1} parent=59 // pred_check
          %p3918 = pneg %p155
        $region62: #{tpu_custom_call.1} parent=59 // pred_check_branch
          %3920 = sbr.rel (%p3918) target = $region64
        $region63: #{tpu_custom_call.1} parent=59 // pred_region
          %p3921 = scmp.lt.s32.totalorder %s22, 1
          %s3922 = scalar_select %p3921, %s22, 1
          %s3923 = smul.addr %s3922, 24
          %s3924 = smul.addr %s3923, 8
          %s3925 = scalar_lea.vmem %s5, %s3924
        $region64: #{tpu_custom_call.1} parent=59 // pred_fallthru
          _
      $region60: #{tpu_custom_call.1} parent=5 // pred_fallthru
        _
    $region6: #{tpu_custom_call.1} parent=1 // loop_footer
      %s20 = sadd.s32 1, %s16
    $region7: #{tpu_custom_call.1} parent=1 // loop_footer_branch
      %15 = sbr.rel target = $region3
    $region8: #{tpu_custom_call.1} parent=1 // loop_exit
      _
    %3926 = vsyncpa [#allocation3], 1
    %s3927 = scalar_lea.sflag [#allocation3], 1
    %3928 = vsyncpa %s3927, 1
    %3929 = vsyncpa [#allocation4], 1
    %s3930 = scalar_lea.sflag [#allocation4], 1
    %3931 = vsyncpa %s3930, 1
    %3932 = vsyncpa [#allocation7], 1

</llo_original>
